<compile_context>
chip_gen: v6e
topology: v6e:2x2x1
jax: 0.10.0
libtpu: 0.0.40
codegen_flags: <defaults>
</compile_context>

<pallas_src>
import functools

import jax
import jax.numpy as jnp
from jax import lax
from jax.experimental import pallas as pl
from jax.experimental.pallas import tpu as pltpu


def _layernorm(x, gamma, beta, eps=1e-5):
    mu = jnp.mean(x, axis=-1, keepdims=True)
    var = jnp.mean((x - mu) * (x - mu), axis=-1, keepdims=True)
    return (x - mu) * lax.rsqrt(var + eps) * gamma + beta


def _transformer_block_kernel(*refs, heads, head_dim, causal):
    bf16 = jnp.bfloat16
    embed = heads * head_dim
    inv_sqrt_e = 1.0 / (float(embed) ** 0.5)

    if causal:
        (v_ref, k_ref, q_ref,
         wv_ref, wk_ref, wq_ref, wo_ref, bo_ref,
         g1_ref, be1_ref, w1_ref, b1_ref, w2_ref, b2_ref, g2_ref, be2_ref,
         out_ref, kp_sc, vp_sc) = refs
        mask_ref = None
    else:
        (v_ref, k_ref, q_ref, mask_ref,
         wv_ref, wk_ref, wq_ref, wo_ref, bo_ref,
         g1_ref, be1_ref, w1_ref, b1_ref, w2_ref, b2_ref, g2_ref, be2_ref,
         out_ref, kp_sc, vp_sc) = refs

    tq = q_ref.shape[1]          # q-tile rows
    lk = kp_sc.shape[0]          # full key/value length

    # --- cache projected K / V (bf16) once per batch element -----------------
    @pl.when(pl.program_id(1) == 0)
    def _():
        kp_sc[...] = jnp.dot(k_ref[0], wk_ref[...],
                             preferred_element_type=jnp.float32).astype(bf16)
        vp_sc[...] = jnp.dot(v_ref[0], wv_ref[...],
                             preferred_element_type=jnp.float32).astype(bf16)

    q_res = q_ref[0].astype(jnp.float32)                 # residual kept in f32
    qp = jnp.dot(q_ref[0], wq_ref[...], preferred_element_type=jnp.float32)
    qp = (qp * inv_sqrt_e).astype(bf16)                  # fold 1/sqrt(E) once

    # --- attention mask: generated in-kernel (causal) or int8 operand --------
    if causal:
        row0 = pl.program_id(1) * tq
        rows = lax.broadcasted_iota(jnp.int32, (tq, lk), 0) + row0
        cols = lax.broadcasted_iota(jnp.int32, (tq, lk), 1)
        valid = rows >= cols                             # (TQ, L) bool
    else:
        valid = mask_ref[0] != 0                         # int8 block -> bool

    # --- head-batched attention (no per-head lane slicing / tiny matmuls) ----
    q3 = qp.reshape(tq, heads, head_dim).transpose(1, 0, 2)          # (H,TQ,D)
    k3 = kp_sc[...].reshape(lk, heads, head_dim).transpose(1, 0, 2)  # (H,L,D)
    v3 = vp_sc[...].reshape(lk, heads, head_dim).transpose(1, 0, 2)  # (H,L,D)

    s = jnp.einsum("hqd,hkd->hqk", q3, k3,
                   preferred_element_type=jnp.float32)               # (H,TQ,L)
    s = jnp.where(valid[None, :, :], s, jnp.float32(-1e20))
    m = jnp.max(s, axis=-1, keepdims=True)
    e = jnp.exp(s - m)                                               # f32
    denom = jnp.sum(e, axis=-1, keepdims=True)                       # (H,TQ,1)
    o = jnp.einsum("hqk,hkd->hqd", e.astype(bf16), v3,
                   preferred_element_type=jnp.float32)               # (H,TQ,D)
    # deferred softmax normalization on the small (H,TQ,D) result (EUP recip).
    o = o * pl.reciprocal(denom, approx=True)
    attn = o.transpose(1, 0, 2).reshape(tq, embed)                   # (TQ,E) f32

    # --- output projection + residual + norm1 --------------------------------
    attn_out = jnp.dot(attn.astype(bf16), wo_ref[...],
                       preferred_element_type=jnp.float32) + bo_ref[...]
    x = _layernorm(attn_out + q_res, g1_ref[...], be1_ref[...])

    # --- feed forward: Linear -> ReLU -> Linear -------------------------------
    h1 = jnp.dot(x.astype(bf16), w1_ref[...],
                 preferred_element_type=jnp.float32) + b1_ref[...]
    h1 = jnp.maximum(h1, 0.0)
    ff = jnp.dot(h1.astype(bf16), w2_ref[...],
                 preferred_element_type=jnp.float32) + b2_ref[...]

    # --- residual + norm2 (dropout = identity, eval mode) ---------------------
    out_ref[0] = _layernorm(ff + x, g2_ref[...], be2_ref[...]).astype(out_ref.dtype)


def _vmem_limit_bytes(L, E, HF, heads, q_block, with_mask):
    """Size the scoped-VMEM limit from the actual resident set (+ headroom)."""
    bf, f32 = 2, 4
    weights = (4 * E * E + 2 * E * HF) * bf              # kron q/k/v + wo + w1 + w2
    small = 32 * max(E, HF) * f32                        # biases / gammas / betas
    blocks = (2 * L * E * bf                             # raw k / v blocks
              + q_block * E * bf                         # q block
              + q_block * E * f32                        # out block (f32 worst case)
              + (q_block * L if with_mask else 0))       # int8 mask block
    scratch = 2 * L * E * bf                             # projected K/V caches
    interm = (2 * heads * q_block * L * f32              # scores + exp
              + q_block * HF * f32                       # FFN hidden
              + 8 * q_block * E * f32)                   # attn / x / ff temporaries
    est = 2 * (weights + blocks) + small + scratch + interm   # x2 double buffers
    est = int(est * 1.25) + (4 << 20)                    # compiler-internal headroom
    # Clamp to v7x's 64 MiB physical VMEM (v5e/v6e have 128 MiB and can go higher).
    return int(max(min(est, 64 << 20), 32 << 20))


def transformer_block(value, key, query, mask, params, *, heads,
                      q_block=None, causal=False, out_dtype=jnp.float32):
    """TransformerBlock forward (eval mode).  mask nonzero = attend; pass
    mask=None with causal=True to generate the causal mask in-kernel."""
    N, L, E = query.shape
    D = E // heads
    assert D * heads == E, "embed_size must be divisible by heads"
    if q_block is None:
        q_block = L if L <= 256 else 256                 # fill the 256-wide MXU
    assert L % q_block == 0, "seq_len must be divisible by q_block"
    bf16 = jnp.bfloat16
    HF = params["w1"].shape[1]

    # Block-diagonal per-head projection weights (E, E): full-depth K=E MXU
    # contraction (good shape for small head counts).
    # TODO(synk): for heads >= 8 use head-batched (D,D) projections instead
    # (kron wastes heads-x FLOPs on zeros) and cache this outside the step fn.
    kron = lambda w: jnp.kron(jnp.eye(heads, dtype=w.dtype), w).astype(bf16)
    wv_blk, wk_blk, wq_blk = kron(params["wv"]), kron(params["wk"]), kron(params["wq"])

    row2 = lambda a: a.reshape(1, -1).astype(jnp.float32)

    operands = [value.astype(bf16), key.astype(bf16), query.astype(bf16)]
    if not causal:
        assert mask is not None, "provide a mask or set causal=True"
        operands.append((mask != 0).astype(jnp.int8))    # 1 B/elem HBM, never f32
    operands += [
        wv_blk, wk_blk, wq_blk,
        params["wo"].astype(bf16), row2(params["bo"]),
        row2(params["g1"]), row2(params["be1"]),
        params["w1"].astype(bf16), row2(params["b1"]),
        params["w2"].astype(bf16), row2(params["b2"]),
        row2(params["g2"]), row2(params["be2"]),
    ]

    kv_spec = pl.BlockSpec((1, L, E), lambda b, qi: (b, 0, 0))       # per-batch resident
    q_spec = pl.BlockSpec((1, q_block, E), lambda b, qi: (b, qi, 0))
    mask_spec = pl.BlockSpec((1, q_block, L), lambda b, qi: (b, qi, 0))

    def full_spec(shape):
        zeros = tuple(0 for _ in shape)
        return pl.BlockSpec(shape, lambda b, qi, _z=zeros: _z)       # grid-invariant

    n_act = 3 if causal else 4
    in_specs = ([kv_spec, kv_spec, q_spec] + ([] if causal else [mask_spec]) +
                [full_spec(op.shape) for op in operands[n_act:]])
    out_spec = pl.BlockSpec((1, q_block, E), lambda b, qi: (b, qi, 0))

    kernel = functools.partial(_transformer_block_kernel,
                               heads=heads, head_dim=D, causal=causal)

    return pl.pallas_call(
        kernel,
        out_shape=jax.ShapeDtypeStruct((N, L, E), out_dtype),
        grid_spec=pltpu.PrefetchScalarGridSpec(
            num_scalar_prefetch=0,
            grid=(N, L // q_block),
            in_specs=in_specs,
            out_specs=out_spec,
            scratch_shapes=[
                pltpu.VMEM((L, E), bf16),                # cached projected K
                pltpu.VMEM((L, E), bf16),                # cached projected V
            ],
        ),
        # q-tile axis is "arbitrary" (sequential) because of the K/V projection
        # cache carried in scratch; batch axis stays "parallel" for megacore.
        compiler_params=pltpu.CompilerParams(
            dimension_semantics=("parallel", "arbitrary"),
            vmem_limit_bytes=_vmem_limit_bytes(L, E, HF, heads, q_block,
                                               with_mask=not causal)),
    )(*operands)


def reference(value, key, query, mask, params, heads, matmul_dtype=jnp.float32):
    # Pure-JAX reference mirroring the PyTorch forward; matmul_dtype=bfloat16
    # mirrors the kernel's bf16 activation transport + bf16 MXU inputs.
    N, L, E = query.shape
    D = E // heads
    if matmul_dtype == jnp.bfloat16:                    # mirror bf16 HBM transport
        value = value.astype(jnp.bfloat16).astype(jnp.float32)
        key = key.astype(jnp.bfloat16).astype(jnp.float32)
        query = query.astype(jnp.bfloat16).astype(jnp.float32)
    c = lambda a: a.astype(matmul_dtype)
    mm = functools.partial(jnp.einsum, precision=jax.lax.Precision.HIGHEST,
                           preferred_element_type=jnp.float32)
    split = lambda x: x.reshape(N, L, heads, D)
    v = mm("nlhd,de->nlhe", c(split(value)), c(params["wv"]))
    k = mm("nlhd,de->nlhe", c(split(key)), c(params["wk"]))
    q = mm("nlhd,de->nlhe", c(split(query)), c(params["wq"]))
    energy = mm("nqhd,nkhd->nhqk", c(q), c(k))
    energy = jnp.where(mask[:, None, :, :] == 0.0, jnp.float32(-1e20), energy)
    attn = jax.nn.softmax(energy / (E ** 0.5), axis=3)
    out = mm("nhqk,nkhd->nqhd", c(attn), c(v)).reshape(N, L, E)
    out = mm("nqe,ef->nqf", c(out), c(params["wo"])) + params["bo"]

    def ln(x, g, b):
        mu = x.mean(-1, keepdims=True)
        var = ((x - mu) ** 2).mean(-1, keepdims=True)
        return (x - mu) / jnp.sqrt(var + 1e-5) * g + b

    x = ln(out + query, params["g1"], params["be1"])
    h1 = jnp.maximum(mm("nqe,ef->nqf", c(x), c(params["w1"])) + params["b1"], 0.0)
    ff = mm("nqf,fe->nqe", c(h1), c(params["w2"])) + params["b2"]
    return ln(ff + x, params["g2"], params["be2"])


if __name__ == "__main__":
    # batch, seq, embed, heads, forward_expansion.  E=128 keeps lanes dense;
    # q_block=32 gives two q-tiles per batch and respects bf16 sublane packing.
    N, L, E, H, FE = 2, 64, 128, 4, 4
    D = E // H
    HF = FE * E
    TQ = 32

    key0 = jax.random.PRNGKey(0)
    ks = jax.random.split(key0, 16)
    init = lambda k, shape, s: s * jax.random.normal(k, shape, jnp.float32)

    params = dict(
        wv=init(ks[0], (D, D), 0.2),
        wk=init(ks[1], (D, D), 0.2),
        wq=init(ks[2], (D, D), 0.2),
        wo=init(ks[3], (E, E), 0.1),
        bo=init(ks[4], (E,), 0.05),
        g1=jnp.ones((E,), jnp.float32),
        be1=jnp.zeros((E,), jnp.float32),
        w1=init(ks[5], (E, HF), 0.1),
        b1=init(ks[6], (HF,), 0.05),
        w2=init(ks[7], (HF, E), 0.08),
        b2=init(ks[8], (E,), 0.05),
        g2=1.0 + init(ks[9], (E,), 0.1),
        be2=init(ks[10], (E,), 0.05),
    )

    value = init(ks[11], (N, L, E), 1.0)
    key_t = init(ks[12], (N, L, E), 1.0)
    query = init(ks[13], (N, L, E), 1.0)
    mask = jnp.broadcast_to(jnp.tril(jnp.ones((L, L), jnp.float32)), (N, L, L))

    # Path 1: causal mask generated in-kernel (no mask HBM traffic at all).
    out = transformer_block(value, key_t, query, None, params,
                            heads=H, q_block=TQ, causal=True)
    out = jax.block_until_ready(out)
    assert out.shape == (N, L, E)
    assert bool(jnp.isfinite(out).all())

    # Tight check vs a reference mirroring kernel numerics (bf16 transport /
    # MXU inputs, f32 accumulation).
    ref_b = reference(value, key_t, query, mask, params, H, matmul_dtype=jnp.bfloat16)
    if not jnp.allclose(out, ref_b, atol=2e-2, rtol=2e-2):
        raise SystemExit("causal path mismatch vs bf16 reference, max abs err = %e"
                         % float(jnp.max(jnp.abs(out - ref_b))))

    # Loose sanity check vs the full-f32 reference.
    ref_f = reference(value, key_t, query, mask, params, H, matmul_dtype=jnp.float32)
    if not jnp.allclose(out, ref_f, atol=1e-1, rtol=1e-1):
        raise SystemExit("causal path mismatch vs f32 reference, max abs err = %e"
                         % float(jnp.max(jnp.abs(out - ref_f))))

    # Path 2: arbitrary mask supplied explicitly (DMA'd as int8, not f32).
    out2 = transformer_block(value, key_t, query, mask, params,
                             heads=H, q_block=TQ, causal=False)
    out2 = jax.block_until_ready(out2)
    if not jnp.allclose(out2, ref_b, atol=2e-2, rtol=2e-2):
        raise SystemExit("explicit-mask path mismatch vs bf16 reference, max abs err = %e"
                         % float(jnp.max(jnp.abs(out2 - ref_b))))

    print("KERNEL_OK")
</pallas_src>

<mosaic_0001>
module attributes {stable_mosaic.version = 11 : i64} {
  func.func @_transformer_block_kernel(%arg0: i32, %arg1: i32, %arg2: memref<1x64x128xbf16, #tpu.memory_space<vmem>>, %arg3: memref<1x64x128xbf16, #tpu.memory_space<vmem>>, %arg4: memref<1x32x128xbf16, #tpu.memory_space<vmem>>, %arg5: memref<128x128xbf16, #tpu.memory_space<vmem>>, %arg6: memref<128x128xbf16, #tpu.memory_space<vmem>>, %arg7: memref<128x128xbf16, #tpu.memory_space<vmem>>, %arg8: memref<128x128xbf16, #tpu.memory_space<vmem>>, %arg9: memref<1x128xf32, #tpu.memory_space<vmem>>, %arg10: memref<1x128xf32, #tpu.memory_space<vmem>>, %arg11: memref<1x128xf32, #tpu.memory_space<vmem>>, %arg12: memref<128x512xbf16, #tpu.memory_space<vmem>>, %arg13: memref<1x512xf32, #tpu.memory_space<vmem>>, %arg14: memref<512x128xbf16, #tpu.memory_space<vmem>>, %arg15: memref<1x128xf32, #tpu.memory_space<vmem>>, %arg16: memref<1x128xf32, #tpu.memory_space<vmem>>, %arg17: memref<1x128xf32, #tpu.memory_space<vmem>>, %arg18: memref<1x32x128xf32, #tpu.memory_space<vmem>>, %arg19: memref<64x128xbf16, #tpu.memory_space<vmem>>, %arg20: memref<64x128xbf16, #tpu.memory_space<vmem>>) attributes {dimension_semantics = [#tpu.dimension_semantics<parallel>, #tpu.dimension_semantics<arbitrary>], iteration_bounds = array<i64: 2, 2>, scalar_prefetch = 0 : i64, scratch_operands = 2 : i64, tpu.core_type = #tpu.core_type<tc>, window_params = [{transform_indices = @transform_0, window_bounds = array<i64: 1, 64, 128>}, {transform_indices = @transform_1, window_bounds = array<i64: 1, 64, 128>}, {transform_indices = @transform_2, window_bounds = array<i64: 1, 32, 128>}, {pipeline_mode = #tpu.pipeline_mode<synchronous>, transform_indices = @transform_3, window_bounds = array<i64: 128, 128>}, {pipeline_mode = #tpu.pipeline_mode<synchronous>, transform_indices = @transform_4, window_bounds = array<i64: 128, 128>}, {pipeline_mode = #tpu.pipeline_mode<synchronous>, transform_indices = @transform_5, window_bounds = array<i64: 128, 128>}, {pipeline_mode = #tpu.pipeline_mode<synchronous>, transform_indices = @transform_6, window_bounds = array<i64: 128, 128>}, {pipeline_mode = #tpu.pipeline_mode<synchronous>, transform_indices = @transform_7, window_bounds = array<i64: 1, 128>}, {pipeline_mode = #tpu.pipeline_mode<synchronous>, transform_indices = @transform_8, window_bounds = array<i64: 1, 128>}, {pipeline_mode = #tpu.pipeline_mode<synchronous>, transform_indices = @transform_9, window_bounds = array<i64: 1, 128>}, {pipeline_mode = #tpu.pipeline_mode<synchronous>, transform_indices = @transform_10, window_bounds = array<i64: 128, 512>}, {pipeline_mode = #tpu.pipeline_mode<synchronous>, transform_indices = @transform_11, window_bounds = array<i64: 1, 512>}, {pipeline_mode = #tpu.pipeline_mode<synchronous>, transform_indices = @transform_12, window_bounds = array<i64: 512, 128>}, {pipeline_mode = #tpu.pipeline_mode<synchronous>, transform_indices = @transform_13, window_bounds = array<i64: 1, 128>}, {pipeline_mode = #tpu.pipeline_mode<synchronous>, transform_indices = @transform_14, window_bounds = array<i64: 1, 128>}, {pipeline_mode = #tpu.pipeline_mode<synchronous>, transform_indices = @transform_15, window_bounds = array<i64: 1, 128>}, {transform_indices = @transform_16, window_bounds = array<i64: 1, 32, 128>}]} {
    %c0_i32 = arith.constant 0 : i32
    %0 = arith.cmpi eq, %arg1, %c0_i32 : i32
    %1 = arith.extui %0 : i1 to i32
    %c0_i32_0 = arith.constant 0 : i32
    %2 = arith.cmpi ne, %1, %c0_i32_0 : i32
    scf.if %2 {
      %c0_55 = arith.constant 0 : index
      %c0_56 = arith.constant 0 : index
      %c0_57 = arith.constant 0 : index
      %124 = vector.load %arg3[%c0_55, %c0_56, %c0_57] : memref<1x64x128xbf16, #tpu.memory_space<vmem>>, vector<1x64x128xbf16>
      %125 = vector.shape_cast %124 : vector<1x64x128xbf16> to vector<64x128xbf16>
      %c0_58 = arith.constant 0 : index
      %c0_59 = arith.constant 0 : index
      %126 = vector.load %arg6[%c0_58, %c0_59] : memref<128x128xbf16, #tpu.memory_space<vmem>>, vector<128x128xbf16>
      %cst_60 = arith.constant dense<0.000000e+00> : vector<64x128xf32>
      %127 = tpu.matmul %125, %126, %cst_60 {dimension_numbers = #tpu.dot_dimension_numbers<[1], [0], [0], [1], [0, 0, 1, 1], [], []>} : vector<64x128xbf16>, vector<128x128xbf16>, vector<64x128xf32> -> vector<64x128xf32>
      %128 = arith.truncf %127 : vector<64x128xf32> to vector<64x128xbf16>
      %c0_61 = arith.constant 0 : index
      %c0_62 = arith.constant 0 : index
      %129 = vector.load %arg19[%c0_61, %c0_62] : memref<64x128xbf16, #tpu.memory_space<vmem>>, vector<64x128xbf16>
      tpu.vector_store %arg19[%c0_61, %c0_62], %128 {strides = array<i32>} : memref<64x128xbf16, #tpu.memory_space<vmem>>, vector<64x128xbf16>,
      %c0_63 = arith.constant 0 : index
      %c0_64 = arith.constant 0 : index
      %c0_65 = arith.constant 0 : index
      %130 = vector.load %arg2[%c0_63, %c0_64, %c0_65] : memref<1x64x128xbf16, #tpu.memory_space<vmem>>, vector<1x64x128xbf16>
      %131 = vector.shape_cast %130 : vector<1x64x128xbf16> to vector<64x128xbf16>
      %c0_66 = arith.constant 0 : index
      %c0_67 = arith.constant 0 : index
      %132 = vector.load %arg5[%c0_66, %c0_67] : memref<128x128xbf16, #tpu.memory_space<vmem>>, vector<128x128xbf16>
      %cst_68 = arith.constant dense<0.000000e+00> : vector<64x128xf32>
      %133 = tpu.matmul %131, %132, %cst_68 {dimension_numbers = #tpu.dot_dimension_numbers<[1], [0], [0], [1], [0, 0, 1, 1], [], []>} : vector<64x128xbf16>, vector<128x128xbf16>, vector<64x128xf32> -> vector<64x128xf32>
      %134 = arith.truncf %133 : vector<64x128xf32> to vector<64x128xbf16>
      %c0_69 = arith.constant 0 : index
      %c0_70 = arith.constant 0 : index
      %135 = vector.load %arg20[%c0_69, %c0_70] : memref<64x128xbf16, #tpu.memory_space<vmem>>, vector<64x128xbf16>
      tpu.vector_store %arg20[%c0_69, %c0_70], %134 {strides = array<i32>} : memref<64x128xbf16, #tpu.memory_space<vmem>>, vector<64x128xbf16>,
    } else {
    }
    %c0 = arith.constant 0 : index
    %c0_1 = arith.constant 0 : index
    %c0_2 = arith.constant 0 : index
    %3 = vector.load %arg4[%c0, %c0_1, %c0_2] : memref<1x32x128xbf16, #tpu.memory_space<vmem>>, vector<1x32x128xbf16>
    %4 = vector.shape_cast %3 : vector<1x32x128xbf16> to vector<32x128xbf16>
    %5 = arith.extf %4 : vector<32x128xbf16> to vector<32x128xf32>
    %c0_3 = arith.constant 0 : index
    %c0_4 = arith.constant 0 : index
    %c0_5 = arith.constant 0 : index
    %6 = vector.load %arg4[%c0_3, %c0_4, %c0_5] : memref<1x32x128xbf16, #tpu.memory_space<vmem>>, vector<1x32x128xbf16>
    %7 = vector.shape_cast %6 : vector<1x32x128xbf16> to vector<32x128xbf16>
    %c0_6 = arith.constant 0 : index
    %c0_7 = arith.constant 0 : index
    %8 = vector.load %arg7[%c0_6, %c0_7] : memref<128x128xbf16, #tpu.memory_space<vmem>>, vector<128x128xbf16>
    %cst = arith.constant dense<0.000000e+00> : vector<32x128xf32>
    %9 = tpu.matmul %7, %8, %cst {dimension_numbers = #tpu.dot_dimension_numbers<[1], [0], [0], [1], [0, 0, 1, 1], [], []>} : vector<32x128xbf16>, vector<128x128xbf16>, vector<32x128xf32> -> vector<32x128xf32>
    %cst_8 = arith.constant 0.0883883461 : f32
    %10 = vector.broadcast %cst_8 : f32 to vector<32x128xf32>
    %11 = arith.mulf %9, %10 : vector<32x128xf32>
    %12 = arith.truncf %11 : vector<32x128xf32> to vector<32x128xbf16>
    %c32_i32 = arith.constant 32 : i32
    %13 = arith.muli %arg1, %c32_i32 : i32
    %14 = tpu.iota {dimensions = array<i32: 0>} : vector<32x64xi32>
    %15 = vector.broadcast %13 : i32 to vector<32x64xi32>
    %16 = arith.addi %14, %15 : vector<32x64xi32>
    %17 = tpu.iota {dimensions = array<i32: 1>} : vector<32x64xi32>
    %18 = arith.cmpi sge, %16, %17 : vector<32x64xi32>
    %19 = vector.shape_cast %12 : vector<32x128xbf16> to vector<32x4x32xbf16>
    %20 = tpu.transpose %19, [1, 0, 2] : vector<32x4x32xbf16> -> vector<4x32x32xbf16>
    %c0_9 = arith.constant 0 : index
    %c0_10 = arith.constant 0 : index
    %21 = vector.load %arg19[%c0_9, %c0_10] : memref<64x128xbf16, #tpu.memory_space<vmem>>, vector<64x128xbf16>
    %22 = vector.shape_cast %21 : vector<64x128xbf16> to vector<64x4x32xbf16>
    %23 = tpu.transpose %22, [1, 0, 2] : vector<64x4x32xbf16> -> vector<4x64x32xbf16>
    %c0_11 = arith.constant 0 : index
    %c0_12 = arith.constant 0 : index
    %24 = vector.load %arg20[%c0_11, %c0_12] : memref<64x128xbf16, #tpu.memory_space<vmem>>, vector<64x128xbf16>
    %25 = vector.shape_cast %24 : vector<64x128xbf16> to vector<64x4x32xbf16>
    %26 = tpu.transpose %25, [1, 0, 2] : vector<64x4x32xbf16> -> vector<4x64x32xbf16>
    "tpu.trace_start"() <{level = 10 : i32, message = "hqd,hkd->hqk"}> : () -> ()
    %cst_13 = arith.constant dense<0.000000e+00> : vector<4x32x64xf32>
    %27 = tpu.matmul %20, %23, %cst_13 {dimension_numbers = #tpu.dot_dimension_numbers<[2], [2], [1], [1], [0, 0, 0, 1, 1, 1], [0], [0]>} : vector<4x32x32xbf16>, vector<4x64x32xbf16>, vector<4x32x64xf32> -> vector<4x32x64xf32>
    "tpu.trace_stop"() : () -> ()
    %28 = vector.shape_cast %18 : vector<32x64xi1> to vector<1x32x64xi1>
    %cst_14 = arith.constant -1.000000e+20 : f32
    %29 = vector.shape_cast %28 : vector<1x32x64xi1> to vector<1x32x64xi1>
    %30 = vector.broadcast %29 : vector<1x32x64xi1> to vector<4x32x64xi1>
    %31 = vector.broadcast %cst_14 : f32 to vector<4x32x64xf32>
    %32 = arith.select %30, %27, %31 : vector<4x32x64xi1>, vector<4x32x64xf32>
    %cst_15 = arith.constant dense<0xFF800000> : vector<4x32xf32>
    %33 = vector.multi_reduction <maximumf>, %32, %cst_15 [2] : vector<4x32x64xf32> to vector<4x32xf32>
    %34 = vector.shape_cast %33 : vector<4x32xf32> to vector<4x32x1xf32>
    %35 = vector.broadcast %34 : vector<4x32x1xf32> to vector<4x32x64xf32>
    %36 = arith.subf %32, %35 : vector<4x32x64xf32>
    %37 = math.exp %36 : vector<4x32x64xf32>
    %cst_16 = arith.constant dense<0.000000e+00> : vector<4x32xf32>
    %38 = vector.multi_reduction <add>, %37, %cst_16 [2] : vector<4x32x64xf32> to vector<4x32xf32>
    %39 = vector.shape_cast %38 : vector<4x32xf32> to vector<4x32x1xf32>
    %40 = arith.truncf %37 : vector<4x32x64xf32> to vector<4x32x64xbf16>
    "tpu.trace_start"() <{level = 10 : i32, message = "hqk,hkd->hqd"}> : () -> ()
    %cst_17 = arith.constant dense<0.000000e+00> : vector<4x32x32xf32>
    %41 = tpu.matmul %40, %26, %cst_17 {dimension_numbers = #tpu.dot_dimension_numbers<[2], [1], [1], [2], [0, 0, 0, 1, 1, 2], [0], [0]>} : vector<4x32x64xbf16>, vector<4x64x32xbf16>, vector<4x32x32xf32> -> vector<4x32x32xf32>
    "tpu.trace_stop"() : () -> ()
    %42 = tpu.reciprocal %39 {approx = true} : vector<4x32x1xf32> -> vector<4x32x1xf32>
    %43 = vector.broadcast %42 : vector<4x32x1xf32> to vector<4x32x32xf32>
    %44 = arith.mulf %41, %43 : vector<4x32x32xf32>
    %45 = tpu.transpose %44, [1, 0, 2] : vector<4x32x32xf32> -> vector<32x4x32xf32>
    %46 = vector.shape_cast %45 : vector<32x4x32xf32> to vector<32x128xf32>
    %47 = arith.truncf %46 : vector<32x128xf32> to vector<32x128xbf16>
    %c0_18 = arith.constant 0 : index
    %c0_19 = arith.constant 0 : index
    %48 = vector.load %arg8[%c0_18, %c0_19] : memref<128x128xbf16, #tpu.memory_space<vmem>>, vector<128x128xbf16>
    %cst_20 = arith.constant dense<0.000000e+00> : vector<32x128xf32>
    %49 = tpu.matmul %47, %48, %cst_20 {dimension_numbers = #tpu.dot_dimension_numbers<[1], [0], [0], [1], [0, 0, 1, 1], [], []>} : vector<32x128xbf16>, vector<128x128xbf16>, vector<32x128xf32> -> vector<32x128xf32>
    %c0_21 = arith.constant 0 : index
    %c0_22 = arith.constant 0 : index
    %50 = vector.load %arg9[%c0_21, %c0_22] : memref<1x128xf32, #tpu.memory_space<vmem>>, vector<1x128xf32>
    %51 = vector.broadcast %50 : vector<1x128xf32> to vector<32x128xf32>
    %52 = arith.addf %49, %51 : vector<32x128xf32>
    %53 = arith.addf %52, %5 : vector<32x128xf32>
    %c0_23 = arith.constant 0 : index
    %c0_24 = arith.constant 0 : index
    %54 = vector.load %arg10[%c0_23, %c0_24] : memref<1x128xf32, #tpu.memory_space<vmem>>, vector<1x128xf32>
    %c0_25 = arith.constant 0 : index
    %c0_26 = arith.constant 0 : index
    %55 = vector.load %arg11[%c0_25, %c0_26] : memref<1x128xf32, #tpu.memory_space<vmem>>, vector<1x128xf32>
    %cst_27 = arith.constant dense<0.000000e+00> : vector<32xf32>
    %56 = vector.multi_reduction <add>, %53, %cst_27 [1] : vector<32x128xf32> to vector<32xf32>
    %57 = vector.shape_cast %56 : vector<32xf32> to vector<32x1xf32>
    %cst_28 = arith.constant 1.280000e+02 : f32
    %58 = vector.broadcast %cst_28 : f32 to vector<32x1xf32>
    %59 = arith.divf %57, %58 : vector<32x1xf32>
    %60 = vector.broadcast %59 : vector<32x1xf32> to vector<32x128xf32>
    %61 = arith.subf %53, %60 : vector<32x128xf32>
    %62 = vector.broadcast %59 : vector<32x1xf32> to vector<32x128xf32>
    %63 = arith.subf %53, %62 : vector<32x128xf32>
    %64 = arith.mulf %61, %63 : vector<32x128xf32>
    %cst_29 = arith.constant dense<0.000000e+00> : vector<32xf32>
    %65 = vector.multi_reduction <add>, %64, %cst_29 [1] : vector<32x128xf32> to vector<32xf32>
    %66 = vector.shape_cast %65 : vector<32xf32> to vector<32x1xf32>
    %cst_30 = arith.constant 1.280000e+02 : f32
    %67 = vector.broadcast %cst_30 : f32 to vector<32x1xf32>
    %68 = arith.divf %66, %67 : vector<32x1xf32>
    %69 = vector.broadcast %59 : vector<32x1xf32> to vector<32x128xf32>
    %70 = arith.subf %53, %69 : vector<32x128xf32>
    %cst_31 = arith.constant 9.99999974E-6 : f32
    %71 = vector.broadcast %cst_31 : f32 to vector<32x1xf32>
    %72 = arith.addf %68, %71 : vector<32x1xf32>
    %73 = math.rsqrt %72 : vector<32x1xf32>
    %74 = vector.broadcast %73 : vector<32x1xf32> to vector<32x128xf32>
    %75 = arith.mulf %70, %74 : vector<32x128xf32>
    %76 = vector.broadcast %54 : vector<1x128xf32> to vector<32x128xf32>
    %77 = arith.mulf %75, %76 : vector<32x128xf32>
    %78 = vector.broadcast %55 : vector<1x128xf32> to vector<32x128xf32>
    %79 = arith.addf %77, %78 : vector<32x128xf32>
    %80 = arith.truncf %79 : vector<32x128xf32> to vector<32x128xbf16>
    %c0_32 = arith.constant 0 : index
    %c0_33 = arith.constant 0 : index
    %81 = vector.load %arg12[%c0_32, %c0_33] : memref<128x512xbf16, #tpu.memory_space<vmem>>, vector<128x512xbf16>
    %cst_34 = arith.constant dense<0.000000e+00> : vector<32x512xf32>
    %82 = tpu.matmul %80, %81, %cst_34 {dimension_numbers = #tpu.dot_dimension_numbers<[1], [0], [0], [1], [0, 0, 1, 1], [], []>} : vector<32x128xbf16>, vector<128x512xbf16>, vector<32x512xf32> -> vector<32x512xf32>
    %c0_35 = arith.constant 0 : index
    %c0_36 = arith.constant 0 : index
    %83 = vector.load %arg13[%c0_35, %c0_36] : memref<1x512xf32, #tpu.memory_space<vmem>>, vector<1x512xf32>
    %84 = vector.broadcast %83 : vector<1x512xf32> to vector<32x512xf32>
    %85 = arith.addf %82, %84 : vector<32x512xf32>
    %cst_37 = arith.constant 0.000000e+00 : f32
    %86 = vector.broadcast %cst_37 : f32 to vector<32x512xf32>
    %87 = arith.maximumf %85, %86 : vector<32x512xf32>
    %88 = arith.truncf %87 : vector<32x512xf32> to vector<32x512xbf16>
    %c0_38 = arith.constant 0 : index
    %c0_39 = arith.constant 0 : index
    %89 = vector.load %arg14[%c0_38, %c0_39] : memref<512x128xbf16, #tpu.memory_space<vmem>>, vector<512x128xbf16>
    %cst_40 = arith.constant dense<0.000000e+00> : vector<32x128xf32>
    %90 = tpu.matmul %88, %89, %cst_40 {dimension_numbers = #tpu.dot_dimension_numbers<[1], [0], [0], [1], [0, 0, 1, 1], [], []>} : vector<32x512xbf16>, vector<512x128xbf16>, vector<32x128xf32> -> vector<32x128xf32>
    %c0_41 = arith.constant 0 : index
    %c0_42 = arith.constant 0 : index
    %91 = vector.load %arg15[%c0_41, %c0_42] : memref<1x128xf32, #tpu.memory_space<vmem>>, vector<1x128xf32>
    %92 = vector.broadcast %91 : vector<1x128xf32> to vector<32x128xf32>
    %93 = arith.addf %90, %92 : vector<32x128xf32>
    %94 = arith.addf %93, %79 : vector<32x128xf32>
    %c0_43 = arith.constant 0 : index
    %c0_44 = arith.constant 0 : index
    %95 = vector.load %arg16[%c0_43, %c0_44] : memref<1x128xf32, #tpu.memory_space<vmem>>, vector<1x128xf32>
    %c0_45 = arith.constant 0 : index
    %c0_46 = arith.constant 0 : index
    %96 = vector.load %arg17[%c0_45, %c0_46] : memref<1x128xf32, #tpu.memory_space<vmem>>, vector<1x128xf32>
    %cst_47 = arith.constant dense<0.000000e+00> : vector<32xf32>
    %97 = vector.multi_reduction <add>, %94, %cst_47 [1] : vector<32x128xf32> to vector<32xf32>
    %98 = vector.shape_cast %97 : vector<32xf32> to vector<32x1xf32>
    %cst_48 = arith.constant 1.280000e+02 : f32
    %99 = vector.broadcast %cst_48 : f32 to vector<32x1xf32>
    %100 = arith.divf %98, %99 : vector<32x1xf32>
    %101 = vector.broadcast %100 : vector<32x1xf32> to vector<32x128xf32>
    %102 = arith.subf %94, %101 : vector<32x128xf32>
    %103 = vector.broadcast %100 : vector<32x1xf32> to vector<32x128xf32>
    %104 = arith.subf %94, %103 : vector<32x128xf32>
    %105 = arith.mulf %102, %104 : vector<32x128xf32>
    %cst_49 = arith.constant dense<0.000000e+00> : vector<32xf32>
    %106 = vector.multi_reduction <add>, %105, %cst_49 [1] : vector<32x128xf32> to vector<32xf32>
    %107 = vector.shape_cast %106 : vector<32xf32> to vector<32x1xf32>
    %cst_50 = arith.constant 1.280000e+02 : f32
    %108 = vector.broadcast %cst_50 : f32 to vector<32x1xf32>
    %109 = arith.divf %107, %108 : vector<32x1xf32>
    %110 = vector.broadcast %100 : vector<32x1xf32> to vector<32x128xf32>
    %111 = arith.subf %94, %110 : vector<32x128xf32>
    %cst_51 = arith.constant 9.99999974E-6 : f32
    %112 = vector.broadcast %cst_51 : f32 to vector<32x1xf32>
    %113 = arith.addf %109, %112 : vector<32x1xf32>
    %114 = math.rsqrt %113 : vector<32x1xf32>
    %115 = vector.broadcast %114 : vector<32x1xf32> to vector<32x128xf32>
    %116 = arith.mulf %111, %115 : vector<32x128xf32>
    %117 = vector.broadcast %95 : vector<1x128xf32> to vector<32x128xf32>
    %118 = arith.mulf %116, %117 : vector<32x128xf32>
    %119 = vector.broadcast %96 : vector<1x128xf32> to vector<32x128xf32>
    %120 = arith.addf %118, %119 : vector<32x128xf32>
    %c0_52 = arith.constant 0 : index
    %c0_53 = arith.constant 0 : index
    %c0_54 = arith.constant 0 : index
    %121 = vector.load %arg18[%c0_52, %c0_53, %c0_54] : memref<1x32x128xf32, #tpu.memory_space<vmem>>, vector<1x32x128xf32>
    %122 = vector.shape_cast %121 : vector<1x32x128xf32> to vector<32x128xf32>
    %123 = vector.shape_cast %120 : vector<32x128xf32> to vector<1x32x128xf32>
    tpu.vector_store %arg18[%c0_52, %c0_53, %c0_54], %123 {strides = array<i32>} : memref<1x32x128xf32, #tpu.memory_space<vmem>>, vector<1x32x128xf32>,
    return
  }
  func.func @transform_0(%arg0: i32, %arg1: i32) -> (i32, i32, i32) {
    %c0_i32 = arith.constant 0 : i32
    %c0_i32_0 = arith.constant 0 : i32
    %c0_i32_1 = arith.constant 0 : i32
    return %arg0, %c0_i32, %c0_i32_0 : i32, i32, i32
  }
  func.func @transform_1(%arg0: i32, %arg1: i32) -> (i32, i32, i32) {
    %c0_i32 = arith.constant 0 : i32
    %c0_i32_0 = arith.constant 0 : i32
    %c0_i32_1 = arith.constant 0 : i32
    return %arg0, %c0_i32, %c0_i32_0 : i32, i32, i32
  }
  func.func @transform_2(%arg0: i32, %arg1: i32) -> (i32, i32, i32) {
    %c0_i32 = arith.constant 0 : i32
    %c0_i32_0 = arith.constant 0 : i32
    return %arg0, %arg1, %c0_i32 : i32, i32, i32
  }
  func.func @transform_3(%arg0: i32, %arg1: i32) -> (i32, i32) {
    %c0_i32 = arith.constant 0 : i32
    %c0_i32_0 = arith.constant 0 : i32
    %c0_i32_1 = arith.constant 0 : i32
    return %c0_i32, %c0_i32_0 : i32, i32
  }
  func.func @transform_4(%arg0: i32, %arg1: i32) -> (i32, i32) {
    %c0_i32 = arith.constant 0 : i32
    %c0_i32_0 = arith.constant 0 : i32
    %c0_i32_1 = arith.constant 0 : i32
    return %c0_i32, %c0_i32_0 : i32, i32
  }
  func.func @transform_5(%arg0: i32, %arg1: i32) -> (i32, i32) {
    %c0_i32 = arith.constant 0 : i32
    %c0_i32_0 = arith.constant 0 : i32
    %c0_i32_1 = arith.constant 0 : i32
    return %c0_i32, %c0_i32_0 : i32, i32
  }
  func.func @transform_6(%arg0: i32, %arg1: i32) -> (i32, i32) {
    %c0_i32 = arith.constant 0 : i32
    %c0_i32_0 = arith.constant 0 : i32
    %c0_i32_1 = arith.constant 0 : i32
    return %c0_i32, %c0_i32_0 : i32, i32
  }
  func.func @transform_7(%arg0: i32, %arg1: i32) -> (i32, i32) {
    %c0_i32 = arith.constant 0 : i32
    %c0_i32_0 = arith.constant 0 : i32
    %c0_i32_1 = arith.constant 0 : i32
    return %c0_i32, %c0_i32_0 : i32, i32
  }
  func.func @transform_8(%arg0: i32, %arg1: i32) -> (i32, i32) {
    %c0_i32 = arith.constant 0 : i32
    %c0_i32_0 = arith.constant 0 : i32
    %c0_i32_1 = arith.constant 0 : i32
    return %c0_i32, %c0_i32_0 : i32, i32
  }
  func.func @transform_9(%arg0: i32, %arg1: i32) -> (i32, i32) {
    %c0_i32 = arith.constant 0 : i32
    %c0_i32_0 = arith.constant 0 : i32
    %c0_i32_1 = arith.constant 0 : i32
    return %c0_i32, %c0_i32_0 : i32, i32
  }
  func.func @transform_10(%arg0: i32, %arg1: i32) -> (i32, i32) {
    %c0_i32 = arith.constant 0 : i32
    %c0_i32_0 = arith.constant 0 : i32
    %c0_i32_1 = arith.constant 0 : i32
    return %c0_i32, %c0_i32_0 : i32, i32
  }
  func.func @transform_11(%arg0: i32, %arg1: i32) -> (i32, i32) {
    %c0_i32 = arith.constant 0 : i32
    %c0_i32_0 = arith.constant 0 : i32
    %c0_i32_1 = arith.constant 0 : i32
    return %c0_i32, %c0_i32_0 : i32, i32
  }
  func.func @transform_12(%arg0: i32, %arg1: i32) -> (i32, i32) {
    %c0_i32 = arith.constant 0 : i32
    %c0_i32_0 = arith.constant 0 : i32
    %c0_i32_1 = arith.constant 0 : i32
    return %c0_i32, %c0_i32_0 : i32, i32
  }
  func.func @transform_13(%arg0: i32, %arg1: i32) -> (i32, i32) {
    %c0_i32 = arith.constant 0 : i32
    %c0_i32_0 = arith.constant 0 : i32
    %c0_i32_1 = arith.constant 0 : i32
    return %c0_i32, %c0_i32_0 : i32, i32
  }
  func.func @transform_14(%arg0: i32, %arg1: i32) -> (i32, i32) {
    %c0_i32 = arith.constant 0 : i32
    %c0_i32_0 = arith.constant 0 : i32
    %c0_i32_1 = arith.constant 0 : i32
    return %c0_i32, %c0_i32_0 : i32, i32
  }
  func.func @transform_15(%arg0: i32, %arg1: i32) -> (i32, i32) {
    %c0_i32 = arith.constant 0 : i32
    %c0_i32_0 = arith.constant 0 : i32
    %c0_i32_1 = arith.constant 0 : i32
    return %c0_i32, %c0_i32_0 : i32, i32
  }
  func.func @transform_16(%arg0: i32, %arg1: i32) -> (i32, i32, i32) {
    %c0_i32 = arith.constant 0 : i32
    %c0_i32_0 = arith.constant 0 : i32
    return %arg0, %arg1, %c0_i32 : i32, i32, i32
  }
}

</mosaic_0001>

<llo_original>
// kernel: tpu_custom_call.1
$region0: #{tpu_custom_call.1}
  #allocation0 [shape = 'u32[]', space=smem, size = 0x4, offset = 0x4, fixed_abs, tag = 'smem constant byte address 0x4 - core index']
  #allocation1 [shape = 'u32[144,128]{1,0:T(1,128)}', space=vmem, size = 0x12000, scoped, tag = 'internal scratch']
  #allocation2 [shape = 'bf16[64,128]{1,0:T(8,128)(2,1)}', space=vmem, size = 0x4000, scoped, tag = 'scratch operand']
  #allocation3 [shape = 'bf16[64,128]{1,0:T(8,128)(2,1)}', space=vmem, size = 0x4000, scoped, tag = 'scratch operand']
  %s0 = inlined_call_operand.hbm [shape: bf16[2,64,128], index: 0, kind: input, shape index: {}]
  %s1 = inlined_call_operand.hbm [shape: bf16[2,64,128], index: 1, kind: input, shape index: {}]
  %s2 = inlined_call_operand.hbm [shape: bf16[2,64,128], index: 2, kind: input, shape index: {}]
  %s3 = inlined_call_operand.hbm [shape: bf16[128,128], index: 3, kind: input, shape index: {}]
  %s4 = inlined_call_operand.hbm [shape: bf16[128,128], index: 4, kind: input, shape index: {}]
  %s5 = inlined_call_operand.hbm [shape: bf16[128,128], index: 5, kind: input, shape index: {}]
  %s6 = inlined_call_operand.hbm [shape: bf16[128,128], index: 6, kind: input, shape index: {}]
  %s7 = inlined_call_operand.vmem [shape: f32[1,128], index: 7, kind: input, shape index: {}]
  %s8 = inlined_call_operand.vmem [shape: f32[1,128], index: 8, kind: input, shape index: {}]
  %s9 = inlined_call_operand.vmem [shape: f32[1,128], index: 9, kind: input, shape index: {}]
  %s10 = inlined_call_operand.hbm [shape: bf16[128,512], index: 10, kind: input, shape index: {}]
  %s11 = inlined_call_operand.vmem [shape: f32[1,512], index: 11, kind: input, shape index: {}]
  %s12 = inlined_call_operand.hbm [shape: bf16[512,128], index: 12, kind: input, shape index: {}]
  %s13 = inlined_call_operand.vmem [shape: f32[1,128], index: 13, kind: input, shape index: {}]
  %s14 = inlined_call_operand.vmem [shape: f32[1,128], index: 14, kind: input, shape index: {}]
  %s15 = inlined_call_operand.vmem [shape: f32[1,128], index: 15, kind: input, shape index: {}]
  %s16 = inlined_call_operand.hbm [shape: f32[2,64,128], index: 16, kind: output, shape index: {}]
  %s17 = sld [smem:[#allocation0]]
  $region137: #{tpu_custom_call.1} parent=0
    _
  %s19 = ssub.s32 1, %s17
  %s20 = scalar_select 0, %s19, %s17
  $region1: #{tpu_custom_call.1} parent=0
    #allocation4 [shape = 'u8[32768]{0}', space=vmem, size = 0x8000, scoped, tag = 'input window, operand 0']
    #allocation5 [shape = 's32[2]{0}', space=sflag, size = 0x8, scoped, tag = 'scoped memory for tpu_custom_call.1']
    #allocation6 [shape = 's32[2]{0}', space=sflag, size = 0x8, scoped, tag = 'scoped memory for tpu_custom_call.1']
    #allocation7 [shape = 'u8[32768]{0}', space=vmem, size = 0x8000, scoped, tag = 'input window, operand 1']
    #allocation8 [shape = 's32[2]{0}', space=sflag, size = 0x8, scoped, tag = 'scoped memory for tpu_custom_call.1']
    #allocation9 [shape = 'u8[16384]{0}', space=vmem, size = 0x4000, scoped, tag = 'input window, operand 2']
    #allocation10 [shape = 'u8[32768]{0}', space=vmem, size = 0x8000, scoped, tag = 'input window, operand 3, single buffered']
    #allocation11 [shape = 's32[1]{0}', space=sflag, size = 0x4, scoped, tag = 'scoped memory for tpu_custom_call.1']
    #allocation12 [shape = 'u8[32768]{0}', space=vmem, size = 0x8000, scoped, tag = 'input window, operand 4, single buffered']
    #allocation13 [shape = 'u8[32768]{0}', space=vmem, size = 0x8000, scoped, tag = 'input window, operand 5, single buffered']
    #allocation14 [shape = 's32[1]{0}', space=sflag, size = 0x4, scoped, tag = 'scoped memory for tpu_custom_call.1']
    #allocation15 [shape = 'u8[32768]{0}', space=vmem, size = 0x8000, scoped, tag = 'input window, operand 6, single buffered']
    #allocation16 [shape = 'u8[131072]{0}', space=vmem, size = 0x20000, scoped, tag = 'input window, operand 10, single buffered']
    #allocation17 [shape = 's32[1]{0}', space=sflag, size = 0x4, scoped, tag = 'scoped memory for tpu_custom_call.1']
    #allocation18 [shape = 'u8[131072]{0}', space=vmem, size = 0x20000, scoped, tag = 'input window, operand 12, single buffered']
    #allocation19 [shape = 'u8[32768]{0}', space=vmem, size = 0x8000, scoped, tag = 'output window, operand 0']
    %21 = vsyncpa [#allocation5], 0
    %s22 = scalar_lea.sflag [#allocation5], 1
    %23 = vsyncpa %s22, 0
    %24 = vsyncpa [#allocation8], 0
    %s25 = scalar_lea.sflag [#allocation8], 1
    %26 = vsyncpa %s25, 0
    %27 = vsyncpa [#allocation11], 0
    %28 = vsyncpa [#allocation14], 0
    %29 = vsyncpa [#allocation17], 0
    %30 = vsyncpa [#allocation6], 0
    %s31 = scalar_lea.sflag [#allocation6], 1
    %32 = vsyncpa %s31, 0
    loop: start=0, step=1, limit=6
    $region2: #{tpu_custom_call.1} parent=1 // loop_pre_header
      _
    $region3: #{tpu_custom_call.1} parent=1 // loop_header
      %s34 = sphi 0, %s38
      %p35 = scmp.ge.s32.totalorder %s34, 6
      %s41 = sphi 0, %s53
      %s42 = sphi 0, %s49
      %s43 = sphi 0, %s41
      %s44 = sphi 0, %s42
      %s45 = sphi 0, %s43
      %s46 = sphi 0, %s44
      %s56 = sphi 0, %s58
      %s59 = sphi 0, %s56
      %s60 = sphi 0, %s59
      %s76 = sphi 0, %s60
      %s82 = sphi 0, %s84
      %s85 = sphi 0, %s82
      %s86 = sphi 0, %s85
      %s102 = sphi 0, %s86
      %s110 = sphi 0, %s112
      %s113 = sphi 0, %s110
      %s114 = sphi 0, %s113
      %s130 = sphi 0, %s114
      %s134 = sphi 0, %s134
      %s136 = sphi 0, %s134
      %s137 = sphi 0, %s136
      %s151 = sphi 0, %s137
      %s155 = sphi 0, %s155
      %s157 = sphi 0, %s155
      %s158 = sphi 0, %s157
      %s172 = sphi 0, %s158
      %s176 = sphi 0, %s176
      %s178 = sphi 0, %s176
      %s179 = sphi 0, %s178
      %s193 = sphi 0, %s179
      %s197 = sphi 0, %s197
      %s199 = sphi 0, %s197
      %s200 = sphi 0, %s199
      %s214 = sphi 0, %s200
      %s218 = sphi 0, %s218
      %s220 = sphi 0, %s218
      %s221 = sphi 0, %s220
      %s235 = sphi 0, %s221
      %s239 = sphi 0, %s239
      %s241 = sphi 0, %s239
      %s242 = sphi 0, %s241
      %s256 = sphi 0, %s242
      %s260 = sphi 0, %s260
      %s262 = sphi 0, %s260
      %s263 = sphi 0, %s262
      %s277 = sphi 0, %s263
      %s281 = sphi 0, %s281
      %s283 = sphi 0, %s281
      %s284 = sphi 0, %s283
      %s298 = sphi 0, %s284
      %s302 = sphi 0, %s302
      %s304 = sphi 0, %s302
      %s305 = sphi 0, %s304
      %s319 = sphi 0, %s305
      %s323 = sphi 0, %s323
      %s325 = sphi 0, %s323
      %s326 = sphi 0, %s325
      %s340 = sphi 0, %s326
      %s344 = sphi 0, %s344
      %s346 = sphi 0, %s344
      %s347 = sphi 0, %s346
      %s361 = sphi 0, %s347
      %s365 = sphi 0, %s365
      %s367 = sphi 0, %s365
      %s368 = sphi 0, %s367
      %s382 = sphi 0, %s368
      %s386 = sphi 0, %s386
      %s388 = sphi 0, %s386
      %s389 = sphi 0, %s388
      %s403 = sphi 0, %s389
      %s411 = sphi 0, %s413
      %s414 = sphi 0, %s411
      %s415 = sphi 0, %s414
      %s431 = sphi 0, %s415
    $region4: #{tpu_custom_call.1} parent=1 // loop_header_branch
      %37 = sbr.rel (%p35) target = $region8
    $region5: #{tpu_custom_call.1} parent=1 // loop_body
      %s39 = ssub.s32 %s34, 1
      %s40 = ssub.s32 %s34, 2
      %s47 = sadd.s32 1, %s42
      %p48 = scmp.ge.s32.totalorder %s47, 2
      %s49 = scalar_select %p48, 0, %s47
      %s50 = sadd.s32 1, %s41
      %s51 = scalar_select %p48, %s50, %s41
      %p52 = scmp.ge.s32.totalorder %s51, 2
      %s53 = scalar_select %p52, 0, %s51
      %s54 = ssub.s32 %s41, %s53
      %p55 = scmp.eq.s32.totalorder %s54, 0
      %s57 = sadd.s32 %s56, 1
      %s58 = scalar_select %p55, %s56, %s57
      %p61 = pneg %p55
      %p62 = scmp.eq.s32.totalorder %s34, 3
      %p63 = por %p61, %p62
      %p64 = scmp.ne.s32.totalorder %s56, %s59
      %p65 = scmp.eq.s32.totalorder %s34, 0
      %p66 = por %p64, %p65
      %p67 = scmp.ne.s32.totalorder %s56, %s59
      %p68 = scmp.eq.s32.totalorder %s39, 3
      %p69 = por %p67, %p68
      %p70 = scmp.ne.s32.totalorder %s59, %s60
      %p71 = scmp.eq.s32.totalorder %s39, 0
      %p72 = por %p70, %p71
      %p73 = scmp.ne.s32.totalorder %s59, %s60
      %p74 = scmp.eq.s32.totalorder %s40, 3
      %p75 = por %p73, %p74
      %p77 = scmp.ne.s32.totalorder %s60, %s76
      %p78 = scmp.eq.s32.totalorder %s40, 0
      %p79 = por %p77, %p78
      %s80 = ssub.s32 %s41, %s53
      %p81 = scmp.eq.s32.totalorder %s80, 0
      %s83 = sadd.s32 %s82, 1
      %s84 = scalar_select %p81, %s82, %s83
      %p87 = pneg %p81
      %p88 = scmp.eq.s32.totalorder %s34, 3
      %p89 = por %p87, %p88
      %p90 = scmp.ne.s32.totalorder %s82, %s85
      %p91 = scmp.eq.s32.totalorder %s34, 0
      %p92 = por %p90, %p91
      %p93 = scmp.ne.s32.totalorder %s82, %s85
      %p94 = scmp.eq.s32.totalorder %s39, 3
      %p95 = por %p93, %p94
      %p96 = scmp.ne.s32.totalorder %s85, %s86
      %p97 = scmp.eq.s32.totalorder %s39, 0
      %p98 = por %p96, %p97
      %p99 = scmp.ne.s32.totalorder %s85, %s86
      %p100 = scmp.eq.s32.totalorder %s40, 3
      %p101 = por %p99, %p100
      %p103 = scmp.ne.s32.totalorder %s86, %s102
      %p104 = scmp.eq.s32.totalorder %s40, 0
      %p105 = por %p103, %p104
      %s106 = ssub.s32 %s41, %s53
      %s107 = ssub.s32 %s42, %s49
      %s108 = sor.u32 %s106, %s107
      %p109 = scmp.eq.s32.totalorder %s108, 0
      %s111 = sadd.s32 %s110, 1
      %s112 = scalar_select %p109, %s110, %s111
      %p115 = pneg %p109
      %p116 = scmp.eq.s32.totalorder %s34, 3
      %p117 = por %p115, %p116
      %p118 = scmp.ne.s32.totalorder %s110, %s113
      %p119 = scmp.eq.s32.totalorder %s34, 0
      %p120 = por %p118, %p119
      %p121 = scmp.ne.s32.totalorder %s110, %s113
      %p122 = scmp.eq.s32.totalorder %s39, 3
      %p123 = por %p121, %p122
      %p124 = scmp.ne.s32.totalorder %s113, %s114
      %p125 = scmp.eq.s32.totalorder %s39, 0
      %p126 = por %p124, %p125
      %p127 = scmp.ne.s32.totalorder %s113, %s114
      %p128 = scmp.eq.s32.totalorder %s40, 3
      %p129 = por %p127, %p128
      %p131 = scmp.ne.s32.totalorder %s114, %s130
      %p132 = scmp.eq.s32.totalorder %s40, 0
      %p133 = por %p131, %p132
      %s135 = sadd.s32 %s134, 1
      %p138 = scmp.eq.s32.totalorder %s34, 3
      %p139 = scmp.ne.s32.totalorder %s134, %s136
      %p140 = scmp.eq.s32.totalorder %s34, 0
      %p141 = por %p139, %p140
      %p142 = scmp.ne.s32.totalorder %s134, %s136
      %p143 = scmp.eq.s32.totalorder %s39, 3
      %p144 = por %p142, %p143
      %p145 = scmp.ne.s32.totalorder %s136, %s137
      %p146 = scmp.eq.s32.totalorder %s39, 0
      %p147 = por %p145, %p146
      %p148 = scmp.ne.s32.totalorder %s136, %s137
      %p149 = scmp.eq.s32.totalorder %s40, 3
      %p150 = por %p148, %p149
      %p152 = scmp.ne.s32.totalorder %s137, %s151
      %p153 = scmp.eq.s32.totalorder %s40, 0
      %p154 = por %p152, %p153
      %s156 = sadd.s32 %s155, 1
      %p159 = scmp.eq.s32.totalorder %s34, 3
      %p160 = scmp.ne.s32.totalorder %s155, %s157
      %p161 = scmp.eq.s32.totalorder %s34, 0
      %p162 = por %p160, %p161
      %p163 = scmp.ne.s32.totalorder %s155, %s157
      %p164 = scmp.eq.s32.totalorder %s39, 3
      %p165 = por %p163, %p164
      %p166 = scmp.ne.s32.totalorder %s157, %s158
      %p167 = scmp.eq.s32.totalorder %s39, 0
      %p168 = por %p166, %p167
      %p169 = scmp.ne.s32.totalorder %s157, %s158
      %p170 = scmp.eq.s32.totalorder %s40, 3
      %p171 = por %p169, %p170
      %p173 = scmp.ne.s32.totalorder %s158, %s172
      %p174 = scmp.eq.s32.totalorder %s40, 0
      %p175 = por %p173, %p174
      %s177 = sadd.s32 %s176, 1
      %p180 = scmp.eq.s32.totalorder %s34, 3
      %p181 = scmp.ne.s32.totalorder %s176, %s178
      %p182 = scmp.eq.s32.totalorder %s34, 0
      %p183 = por %p181, %p182
      %p184 = scmp.ne.s32.totalorder %s176, %s178
      %p185 = scmp.eq.s32.totalorder %s39, 3
      %p186 = por %p184, %p185
      %p187 = scmp.ne.s32.totalorder %s178, %s179
      %p188 = scmp.eq.s32.totalorder %s39, 0
      %p189 = por %p187, %p188
      %p190 = scmp.ne.s32.totalorder %s178, %s179
      %p191 = scmp.eq.s32.totalorder %s40, 3
      %p192 = por %p190, %p191
      %p194 = scmp.ne.s32.totalorder %s179, %s193
      %p195 = scmp.eq.s32.totalorder %s40, 0
      %p196 = por %p194, %p195
      %s198 = sadd.s32 %s197, 1
      %p201 = scmp.eq.s32.totalorder %s34, 3
      %p202 = scmp.ne.s32.totalorder %s197, %s199
      %p203 = scmp.eq.s32.totalorder %s34, 0
      %p204 = por %p202, %p203
      %p205 = scmp.ne.s32.totalorder %s197, %s199
      %p206 = scmp.eq.s32.totalorder %s39, 3
      %p207 = por %p205, %p206
      %p208 = scmp.ne.s32.totalorder %s199, %s200
      %p209 = scmp.eq.s32.totalorder %s39, 0
      %p210 = por %p208, %p209
      %p211 = scmp.ne.s32.totalorder %s199, %s200
      %p212 = scmp.eq.s32.totalorder %s40, 3
      %p213 = por %p211, %p212
      %p215 = scmp.ne.s32.totalorder %s200, %s214
      %p216 = scmp.eq.s32.totalorder %s40, 0
      %p217 = por %p215, %p216
      %s219 = sadd.s32 %s218, 1
      %p222 = scmp.eq.s32.totalorder %s34, 3
      %p223 = scmp.ne.s32.totalorder %s218, %s220
      %p224 = scmp.eq.s32.totalorder %s34, 0
      %p225 = por %p223, %p224
      %p226 = scmp.ne.s32.totalorder %s218, %s220
      %p227 = scmp.eq.s32.totalorder %s39, 3
      %p228 = por %p226, %p227
      %p229 = scmp.ne.s32.totalorder %s220, %s221
      %p230 = scmp.eq.s32.totalorder %s39, 0
      %p231 = por %p229, %p230
      %p232 = scmp.ne.s32.totalorder %s220, %s221
      %p233 = scmp.eq.s32.totalorder %s40, 3
      %p234 = por %p232, %p233
      %p236 = scmp.ne.s32.totalorder %s221, %s235
      %p237 = scmp.eq.s32.totalorder %s40, 0
      %p238 = por %p236, %p237
      %s240 = sadd.s32 %s239, 1
      %p243 = scmp.eq.s32.totalorder %s34, 3
      %p244 = scmp.ne.s32.totalorder %s239, %s241
      %p245 = scmp.eq.s32.totalorder %s34, 0
      %p246 = por %p244, %p245
      %p247 = scmp.ne.s32.totalorder %s239, %s241
      %p248 = scmp.eq.s32.totalorder %s39, 3
      %p249 = por %p247, %p248
      %p250 = scmp.ne.s32.totalorder %s241, %s242
      %p251 = scmp.eq.s32.totalorder %s39, 0
      %p252 = por %p250, %p251
      %p253 = scmp.ne.s32.totalorder %s241, %s242
      %p254 = scmp.eq.s32.totalorder %s40, 3
      %p255 = por %p253, %p254
      %p257 = scmp.ne.s32.totalorder %s242, %s256
      %p258 = scmp.eq.s32.totalorder %s40, 0
      %p259 = por %p257, %p258
      %s261 = sadd.s32 %s260, 1
      %p264 = scmp.eq.s32.totalorder %s34, 3
      %p265 = scmp.ne.s32.totalorder %s260, %s262
      %p266 = scmp.eq.s32.totalorder %s34, 0
      %p267 = por %p265, %p266
      %p268 = scmp.ne.s32.totalorder %s260, %s262
      %p269 = scmp.eq.s32.totalorder %s39, 3
      %p270 = por %p268, %p269
      %p271 = scmp.ne.s32.totalorder %s262, %s263
      %p272 = scmp.eq.s32.totalorder %s39, 0
      %p273 = por %p271, %p272
      %p274 = scmp.ne.s32.totalorder %s262, %s263
      %p275 = scmp.eq.s32.totalorder %s40, 3
      %p276 = por %p274, %p275
      %p278 = scmp.ne.s32.totalorder %s263, %s277
      %p279 = scmp.eq.s32.totalorder %s40, 0
      %p280 = por %p278, %p279
      %s282 = sadd.s32 %s281, 1
      %p285 = scmp.eq.s32.totalorder %s34, 3
      %p286 = scmp.ne.s32.totalorder %s281, %s283
      %p287 = scmp.eq.s32.totalorder %s34, 0
      %p288 = por %p286, %p287
      %p289 = scmp.ne.s32.totalorder %s281, %s283
      %p290 = scmp.eq.s32.totalorder %s39, 3
      %p291 = por %p289, %p290
      %p292 = scmp.ne.s32.totalorder %s283, %s284
      %p293 = scmp.eq.s32.totalorder %s39, 0
      %p294 = por %p292, %p293
      %p295 = scmp.ne.s32.totalorder %s283, %s284
      %p296 = scmp.eq.s32.totalorder %s40, 3
      %p297 = por %p295, %p296
      %p299 = scmp.ne.s32.totalorder %s284, %s298
      %p300 = scmp.eq.s32.totalorder %s40, 0
      %p301 = por %p299, %p300
      %s303 = sadd.s32 %s302, 1
      %p306 = scmp.eq.s32.totalorder %s34, 3
      %p307 = scmp.ne.s32.totalorder %s302, %s304
      %p308 = scmp.eq.s32.totalorder %s34, 0
      %p309 = por %p307, %p308
      %p310 = scmp.ne.s32.totalorder %s302, %s304
      %p311 = scmp.eq.s32.totalorder %s39, 3
      %p312 = por %p310, %p311
      %p313 = scmp.ne.s32.totalorder %s304, %s305
      %p314 = scmp.eq.s32.totalorder %s39, 0
      %p315 = por %p313, %p314
      %p316 = scmp.ne.s32.totalorder %s304, %s305
      %p317 = scmp.eq.s32.totalorder %s40, 3
      %p318 = por %p316, %p317
      %p320 = scmp.ne.s32.totalorder %s305, %s319
      %p321 = scmp.eq.s32.totalorder %s40, 0
      %p322 = por %p320, %p321
      %s324 = sadd.s32 %s323, 1
      %p327 = scmp.eq.s32.totalorder %s34, 3
      %p328 = scmp.ne.s32.totalorder %s323, %s325
      %p329 = scmp.eq.s32.totalorder %s34, 0
      %p330 = por %p328, %p329
      %p331 = scmp.ne.s32.totalorder %s323, %s325
      %p332 = scmp.eq.s32.totalorder %s39, 3
      %p333 = por %p331, %p332
      %p334 = scmp.ne.s32.totalorder %s325, %s326
      %p335 = scmp.eq.s32.totalorder %s39, 0
      %p336 = por %p334, %p335
      %p337 = scmp.ne.s32.totalorder %s325, %s326
      %p338 = scmp.eq.s32.totalorder %s40, 3
      %p339 = por %p337, %p338
      %p341 = scmp.ne.s32.totalorder %s326, %s340
      %p342 = scmp.eq.s32.totalorder %s40, 0
      %p343 = por %p341, %p342
      %s345 = sadd.s32 %s344, 1
      %p348 = scmp.eq.s32.totalorder %s34, 3
      %p349 = scmp.ne.s32.totalorder %s344, %s346
      %p350 = scmp.eq.s32.totalorder %s34, 0
      %p351 = por %p349, %p350
      %p352 = scmp.ne.s32.totalorder %s344, %s346
      %p353 = scmp.eq.s32.totalorder %s39, 3
      %p354 = por %p352, %p353
      %p355 = scmp.ne.s32.totalorder %s346, %s347
      %p356 = scmp.eq.s32.totalorder %s39, 0
      %p357 = por %p355, %p356
      %p358 = scmp.ne.s32.totalorder %s346, %s347
      %p359 = scmp.eq.s32.totalorder %s40, 3
      %p360 = por %p358, %p359
      %p362 = scmp.ne.s32.totalorder %s347, %s361
      %p363 = scmp.eq.s32.totalorder %s40, 0
      %p364 = por %p362, %p363
      %s366 = sadd.s32 %s365, 1
      %p369 = scmp.eq.s32.totalorder %s34, 3
      %p370 = scmp.ne.s32.totalorder %s365, %s367
      %p371 = scmp.eq.s32.totalorder %s34, 0
      %p372 = por %p370, %p371
      %p373 = scmp.ne.s32.totalorder %s365, %s367
      %p374 = scmp.eq.s32.totalorder %s39, 3
      %p375 = por %p373, %p374
      %p376 = scmp.ne.s32.totalorder %s367, %s368
      %p377 = scmp.eq.s32.totalorder %s39, 0
      %p378 = por %p376, %p377
      %p379 = scmp.ne.s32.totalorder %s367, %s368
      %p380 = scmp.eq.s32.totalorder %s40, 3
      %p381 = por %p379, %p380
      %p383 = scmp.ne.s32.totalorder %s368, %s382
      %p384 = scmp.eq.s32.totalorder %s40, 0
      %p385 = por %p383, %p384
      %s387 = sadd.s32 %s386, 1
      %p390 = scmp.eq.s32.totalorder %s34, 3
      %p391 = scmp.ne.s32.totalorder %s386, %s388
      %p392 = scmp.eq.s32.totalorder %s34, 0
      %p393 = por %p391, %p392
      %p394 = scmp.ne.s32.totalorder %s386, %s388
      %p395 = scmp.eq.s32.totalorder %s39, 3
      %p396 = por %p394, %p395
      %p397 = scmp.ne.s32.totalorder %s388, %s389
      %p398 = scmp.eq.s32.totalorder %s39, 0
      %p399 = por %p397, %p398
      %p400 = scmp.ne.s32.totalorder %s388, %s389
      %p401 = scmp.eq.s32.totalorder %s40, 3
      %p402 = por %p400, %p401
      %p404 = scmp.ne.s32.totalorder %s389, %s403
      %p405 = scmp.eq.s32.totalorder %s40, 0
      %p406 = por %p404, %p405
      %s407 = ssub.s32 %s41, %s53
      %s408 = ssub.s32 %s42, %s49
      %s409 = sor.u32 %s407, %s408
      %p410 = scmp.eq.s32.totalorder %s409, 0
      %s412 = sadd.s32 %s411, 1
      %s413 = scalar_select %p410, %s411, %s412
      %p416 = pneg %p410
      %p417 = scmp.eq.s32.totalorder %s34, 3
      %p418 = por %p416, %p417
      %p419 = scmp.ne.s32.totalorder %s411, %s414
      %p420 = scmp.eq.s32.totalorder %s34, 0
      %p421 = por %p419, %p420
      %p422 = scmp.ne.s32.totalorder %s411, %s414
      %p423 = scmp.eq.s32.totalorder %s39, 3
      %p424 = por %p422, %p423
      %p425 = scmp.ne.s32.totalorder %s414, %s415
      %p426 = scmp.eq.s32.totalorder %s39, 0
      %p427 = por %p425, %p426
      %p428 = scmp.ne.s32.totalorder %s414, %s415
      %p429 = scmp.eq.s32.totalorder %s40, 3
      %p430 = por %p428, %p429
      %p432 = scmp.ne.s32.totalorder %s415, %s431
      %p433 = scmp.eq.s32.totalorder %s40, 0
      %p434 = por %p432, %p433
      %p435 = scmp.le.s32.totalorder 1, %s34
      %p436 = scmp.lt.s32.totalorder %s34, 5
      %p437 = pnand %p435, %p436
      %p438 = pneg %p437
      // Predicated region
      $region9: #{tpu_custom_call.1} parent=5 // pred_check
        _
      $region10: #{tpu_custom_call.1} parent=5 // pred_check_branch
        %440 = sbr.rel (%p437) target = $region12
      $region11: #{tpu_custom_call.1} parent=5 // pred_region
        %s441 = ssub.s32 %s34, 1
        // Predicated region
        $region13: #{tpu_custom_call.1} parent=11 // pred_check
          %p442 = pneg %p147
        $region14: #{tpu_custom_call.1} parent=11 // pred_check_branch
          %444 = sbr.rel (%p442) target = $region16
        $region15: #{tpu_custom_call.1} parent=11 // pred_region
          %s446 = ssub.s32 1024, 1024
          %447 = vsyncadd [#allocation11], %s446
          %s448 = sshll.u32 [#allocation10], 4
          %s449 = int_to_ptr.vmem [resolvable:$true] %s448
          %454 = dma.hbm_to_vmem [thread:$0]  %s3, 1024, %s449, [#allocation11], 64, 64, 4
        $region16: #{tpu_custom_call.1} parent=11 // pred_fallthru
          _
        // Predicated region
        $region17: #{tpu_custom_call.1} parent=11 // pred_check
          %p455 = pneg %p168
        $region18: #{tpu_custom_call.1} parent=11 // pred_check_branch
          %457 = sbr.rel (%p455) target = $region20
        $region19: #{tpu_custom_call.1} parent=11 // pred_region
          %s459 = ssub.s32 1024, 1024
          %460 = vsyncadd [#allocation11], %s459
          %s461 = sshll.u32 [#allocation12], 4
          %s462 = int_to_ptr.vmem [resolvable:$true] %s461
          %467 = dma.hbm_to_vmem [thread:$0]  %s4, 1024, %s462, [#allocation11], 64, 64, 4
        $region20: #{tpu_custom_call.1} parent=11 // pred_fallthru
          _
        // Predicated region
        $region21: #{tpu_custom_call.1} parent=11 // pred_check
          %p468 = pneg %p189
        $region22: #{tpu_custom_call.1} parent=11 // pred_check_branch
          %470 = sbr.rel (%p468) target = $region24
        $region23: #{tpu_custom_call.1} parent=11 // pred_region
          %s472 = ssub.s32 1024, 1024
          %473 = vsyncadd [#allocation14], %s472
          %s474 = sshll.u32 [#allocation13], 4
          %s475 = int_to_ptr.vmem [resolvable:$true] %s474
          %480 = dma.hbm_to_vmem [thread:$0]  %s5, 1024, %s475, [#allocation14], 64, 64, 4
        $region24: #{tpu_custom_call.1} parent=11 // pred_fallthru
          _
        // Predicated region
        $region25: #{tpu_custom_call.1} parent=11 // pred_check
          %p481 = pneg %p210
        $region26: #{tpu_custom_call.1} parent=11 // pred_check_branch
          %483 = sbr.rel (%p481) target = $region28
        $region27: #{tpu_custom_call.1} parent=11 // pred_region
          %s485 = ssub.s32 1024, 1024
          %486 = vsyncadd [#allocation14], %s485
          %s487 = sshll.u32 [#allocation15], 4
          %s488 = int_to_ptr.vmem [resolvable:$true] %s487
          %493 = dma.hbm_to_vmem [thread:$0]  %s6, 1024, %s488, [#allocation14], 64, 64, 4
        $region28: #{tpu_custom_call.1} parent=11 // pred_fallthru
          _
        // Predicated region
        $region29: #{tpu_custom_call.1} parent=11 // pred_check
          %p494 = pneg %p231
        $region30: #{tpu_custom_call.1} parent=11 // pred_check_branch
          %496 = sbr.rel (%p494) target = $region32
        $region31: #{tpu_custom_call.1} parent=11 // pred_region
          _
        $region32: #{tpu_custom_call.1} parent=11 // pred_fallthru
          _
        // Predicated region
        $region33: #{tpu_custom_call.1} parent=11 // pred_check
          %p497 = pneg %p252
        $region34: #{tpu_custom_call.1} parent=11 // pred_check_branch
          %499 = sbr.rel (%p497) target = $region36
        $region35: #{tpu_custom_call.1} parent=11 // pred_region
          _
        $region36: #{tpu_custom_call.1} parent=11 // pred_fallthru
          _
        // Predicated region
        $region37: #{tpu_custom_call.1} parent=11 // pred_check
          %p500 = pneg %p273
        $region38: #{tpu_custom_call.1} parent=11 // pred_check_branch
          %502 = sbr.rel (%p500) target = $region40
        $region39: #{tpu_custom_call.1} parent=11 // pred_region
          _
        $region40: #{tpu_custom_call.1} parent=11 // pred_fallthru
          _
        // Predicated region
        $region41: #{tpu_custom_call.1} parent=11 // pred_check
          %p503 = pneg %p294
        $region42: #{tpu_custom_call.1} parent=11 // pred_check_branch
          %505 = sbr.rel (%p503) target = $region44
        $region43: #{tpu_custom_call.1} parent=11 // pred_region
          %s507 = ssub.s32 4096, 4096
          %508 = vsyncadd [#allocation17], %s507
          %s509 = sshll.u32 [#allocation16], 4
          %s510 = int_to_ptr.vmem [resolvable:$true] %s509
          %515 = dma.hbm_to_vmem [thread:$0]  %s10, 4096, %s510, [#allocation17], 256, 256, 16
        $region44: #{tpu_custom_call.1} parent=11 // pred_fallthru
          _
        // Predicated region
        $region45: #{tpu_custom_call.1} parent=11 // pred_check
          %p516 = pneg %p315
        $region46: #{tpu_custom_call.1} parent=11 // pred_check_branch
          %518 = sbr.rel (%p516) target = $region48
        $region47: #{tpu_custom_call.1} parent=11 // pred_region
          _
        $region48: #{tpu_custom_call.1} parent=11 // pred_fallthru
          _
        // Predicated region
        $region49: #{tpu_custom_call.1} parent=11 // pred_check
          %p519 = pneg %p336
        $region50: #{tpu_custom_call.1} parent=11 // pred_check_branch
          %521 = sbr.rel (%p519) target = $region52
        $region51: #{tpu_custom_call.1} parent=11 // pred_region
          %s523 = ssub.s32 4096, 4096
          %524 = vsyncadd [#allocation17], %s523
          %s525 = sshll.u32 [#allocation18], 4
          %s526 = int_to_ptr.vmem [resolvable:$true] %s525
          %531 = dma.hbm_to_vmem [thread:$0]  %s12, 4096, %s526, [#allocation17], 64, 64, 4
        $region52: #{tpu_custom_call.1} parent=11 // pred_fallthru
          _
        // Predicated region
        $region53: #{tpu_custom_call.1} parent=11 // pred_check
          %p532 = pneg %p357
        $region54: #{tpu_custom_call.1} parent=11 // pred_check_branch
          %534 = sbr.rel (%p532) target = $region56
        $region55: #{tpu_custom_call.1} parent=11 // pred_region
          _
        $region56: #{tpu_custom_call.1} parent=11 // pred_fallthru
          _
        // Predicated region
        $region57: #{tpu_custom_call.1} parent=11 // pred_check
          %p535 = pneg %p378
        $region58: #{tpu_custom_call.1} parent=11 // pred_check_branch
          %537 = sbr.rel (%p535) target = $region60
        $region59: #{tpu_custom_call.1} parent=11 // pred_region
          _
        $region60: #{tpu_custom_call.1} parent=11 // pred_fallthru
          _
        // Predicated region
        $region61: #{tpu_custom_call.1} parent=11 // pred_check
          %p538 = pneg %p399
        $region62: #{tpu_custom_call.1} parent=11 // pred_check_branch
          %540 = sbr.rel (%p538) target = $region64
        $region63: #{tpu_custom_call.1} parent=11 // pred_region
          _
        $region64: #{tpu_custom_call.1} parent=11 // pred_fallthru
          _
      $region12: #{tpu_custom_call.1} parent=5 // pred_fallthru
        _
      %p541 = scmp.lt.s32.totalorder %s34, 4
      // Predicated region
      $region65: #{tpu_custom_call.1} parent=5 // pred_check
        %p542 = pneg %p541
      $region66: #{tpu_custom_call.1} parent=5 // pred_check_branch
        %544 = sbr.rel (%p542) target = $region68
      $region67: #{tpu_custom_call.1} parent=5 // pred_region
        // Predicated region
        $region69: #{tpu_custom_call.1} parent=67 // pred_check
          %p545 = pneg %p66
        $region70: #{tpu_custom_call.1} parent=67 // pred_check_branch
          %547 = sbr.rel (%p545) target = $region72
        $region71: #{tpu_custom_call.1} parent=67 // pred_region
          %s548 = sand.u32 %s56, 1
          %s549 = scalar_lea.sflag [#allocation5], %s548
          %s550 = sand.u32 %s56, 1
          %s551 = smul.addr %s550, 32
          %s552 = scalar_lea.vmem [#allocation4], %s551
          %s554 = ssub.s32 512, 512
          %555 = vsyncadd %s549, %s554
          %s556 = smul.addr %s41, 8
          %s557 = smul.addr %s556, 64
          %s558 = scalar_lea.hbm %s0, %s557
          %s559 = sshll.u32 %s552, 4
          %s560 = int_to_ptr.vmem [resolvable:$true] %s559
          %565 = dma.hbm_to_vmem [thread:$0]  %s558, 512, %s560, %s549, 64, 64, 4
        $region72: #{tpu_custom_call.1} parent=67 // pred_fallthru
          _
        // Predicated region
        $region73: #{tpu_custom_call.1} parent=67 // pred_check
          %p566 = pneg %p92
        $region74: #{tpu_custom_call.1} parent=67 // pred_check_branch
          %568 = sbr.rel (%p566) target = $region76
        $region75: #{tpu_custom_call.1} parent=67 // pred_region
          %s569 = sand.u32 %s34, 1
          %s570 = scalar_lea.sflag [#allocation8], %s569
          %s571 = sand.u32 %s82, 1
          %s572 = smul.addr %s571, 32
          %s573 = scalar_lea.vmem [#allocation7], %s572
          %s575 = ssub.s32 512, 512
          %576 = vsyncadd %s570, %s575
          %s577 = smul.addr %s41, 8
          %s578 = smul.addr %s577, 64
          %s579 = scalar_lea.hbm %s1, %s578
          %s580 = sshll.u32 %s573, 4
          %s581 = int_to_ptr.vmem [resolvable:$true] %s580
          %586 = dma.hbm_to_vmem [thread:$0]  %s579, 512, %s581, %s570, 64, 64, 4
        $region76: #{tpu_custom_call.1} parent=67 // pred_fallthru
          _
        // Predicated region
        $region77: #{tpu_custom_call.1} parent=67 // pred_check
          %p587 = pneg %p120
        $region78: #{tpu_custom_call.1} parent=67 // pred_check_branch
          %589 = sbr.rel (%p587) target = $region80
        $region79: #{tpu_custom_call.1} parent=67 // pred_region
          %s590 = sand.u32 %s34, 1
          %s591 = scalar_lea.sflag [#allocation8], %s590
          %s592 = sand.u32 %s110, 1
          %s593 = smul.addr %s592, 16
          %s594 = scalar_lea.vmem [#allocation9], %s593
          %s595 = smul.u32 4, %s42
          %s597 = ssub.s32 256, 256
          %598 = vsyncadd %s591, %s597
          %s599 = smul.addr %s41, 8
          %s600 = sadd.s32 %s595, %s599
          %s601 = smul.addr %s600, 64
          %s602 = scalar_lea.hbm %s2, %s601
          %s603 = sshll.u32 %s594, 4
          %s604 = int_to_ptr.vmem [resolvable:$true] %s603
          %609 = dma.hbm_to_vmem [thread:$0]  %s602, 256, %s604, %s591, 64, 64, 4
        $region80: #{tpu_custom_call.1} parent=67 // pred_fallthru
          _
      $region68: #{tpu_custom_call.1} parent=5 // pred_fallthru
        _
      %p610 = scmp.le.s32.totalorder 1, %s34
      %p611 = scmp.lt.s32.totalorder %s34, 5
      %p612 = pnand %p610, %p611
      %p613 = pneg %p612
      // Predicated region
      $region81: #{tpu_custom_call.1} parent=5 // pred_check
        _
      $region82: #{tpu_custom_call.1} parent=5 // pred_check_branch
        %615 = sbr.rel (%p612) target = $region84
      $region83: #{tpu_custom_call.1} parent=5 // pred_region
        %s616 = ssub.s32 %s34, 1
        %s617 = sand.u32 %s59, 1
        %s618 = scalar_lea.sflag [#allocation5], %s617
        %s619 = sand.u32 %s59, 1
        %s620 = smul.addr %s619, 32
        %s621 = scalar_lea.vmem [#allocation4], %s620
        // Predicated region
        $region85: #{tpu_custom_call.1} parent=83 // pred_check
          %p622 = pneg %p72
        $region86: #{tpu_custom_call.1} parent=83 // pred_check_branch
          %624 = sbr.rel (%p622) target = $region88
        $region87: #{tpu_custom_call.1} parent=83 // pred_region
          %625 = dma.done %s618, 512
        $region88: #{tpu_custom_call.1} parent=83 // pred_fallthru
          _
        %s626 = sand.u32 %s39, 1
        %s627 = scalar_lea.sflag [#allocation8], %s626
        %s628 = sand.u32 %s85, 1
        %s629 = smul.addr %s628, 32
        %s630 = scalar_lea.vmem [#allocation7], %s629
        // Predicated region
        $region89: #{tpu_custom_call.1} parent=83 // pred_check
          %p631 = pneg %p98
        $region90: #{tpu_custom_call.1} parent=83 // pred_check_branch
          %633 = sbr.rel (%p631) target = $region92
        $region91: #{tpu_custom_call.1} parent=83 // pred_region
          %634 = dma.done %s627, 512
        $region92: #{tpu_custom_call.1} parent=83 // pred_fallthru
          _
        %s635 = sand.u32 %s39, 1
        %s636 = scalar_lea.sflag [#allocation8], %s635
        %s637 = sand.u32 %s113, 1
        %s638 = smul.addr %s637, 16
        %s639 = scalar_lea.vmem [#allocation9], %s638
        // Predicated region
        $region93: #{tpu_custom_call.1} parent=83 // pred_check
          %p640 = pneg %p126
        $region94: #{tpu_custom_call.1} parent=83 // pred_check_branch
          %642 = sbr.rel (%p640) target = $region96
        $region95: #{tpu_custom_call.1} parent=83 // pred_region
          %643 = dma.done %s636, 256
        $region96: #{tpu_custom_call.1} parent=83 // pred_fallthru
          _
        // Predicated region
        $region97: #{tpu_custom_call.1} parent=83 // pred_check
          %p644 = pneg %p147
        $region98: #{tpu_custom_call.1} parent=83 // pred_check_branch
          %646 = sbr.rel (%p644) target = $region100
        $region99: #{tpu_custom_call.1} parent=83 // pred_region
          %647 = dma.done [#allocation11], 1024
        $region100: #{tpu_custom_call.1} parent=83 // pred_fallthru
          _
        // Predicated region
        $region101: #{tpu_custom_call.1} parent=83 // pred_check
          %p648 = pneg %p168
        $region102: #{tpu_custom_call.1} parent=83 // pred_check_branch
          %650 = sbr.rel (%p648) target = $region104
        $region103: #{tpu_custom_call.1} parent=83 // pred_region
          %651 = dma.done [#allocation11], 1024
        $region104: #{tpu_custom_call.1} parent=83 // pred_fallthru
          _
        // Predicated region
        $region105: #{tpu_custom_call.1} parent=83 // pred_check
          %p652 = pneg %p189
        $region106: #{tpu_custom_call.1} parent=83 // pred_check_branch
          %654 = sbr.rel (%p652) target = $region108
        $region107: #{tpu_custom_call.1} parent=83 // pred_region
          %655 = dma.done [#allocation14], 1024
        $region108: #{tpu_custom_call.1} parent=83 // pred_fallthru
          _
        // Predicated region
        $region109: #{tpu_custom_call.1} parent=83 // pred_check
          %p656 = pneg %p210
        $region110: #{tpu_custom_call.1} parent=83 // pred_check_branch
          %658 = sbr.rel (%p656) target = $region112
        $region111: #{tpu_custom_call.1} parent=83 // pred_region
          %659 = dma.done [#allocation14], 1024
        $region112: #{tpu_custom_call.1} parent=83 // pred_fallthru
          _
        // Predicated region
        $region113: #{tpu_custom_call.1} parent=83 // pred_check
          %p660 = pneg %p294
        $region114: #{tpu_custom_call.1} parent=83 // pred_check_branch
          %662 = sbr.rel (%p660) target = $region116
        $region115: #{tpu_custom_call.1} parent=83 // pred_region
          %663 = dma.done [#allocation17], 4096
        $region116: #{tpu_custom_call.1} parent=83 // pred_fallthru
          _
        // Predicated region
        $region117: #{tpu_custom_call.1} parent=83 // pred_check
          %p664 = pneg %p336
        $region118: #{tpu_custom_call.1} parent=83 // pred_check_branch
          %666 = sbr.rel (%p664) target = $region120
        $region119: #{tpu_custom_call.1} parent=83 // pred_region
          %667 = dma.done [#allocation17], 4096
        $region120: #{tpu_custom_call.1} parent=83 // pred_fallthru
          _
        %s668 = sand.u32 %s59, 1
        %s669 = scalar_lea.sflag [#allocation5], %s668
        %s670 = sand.u32 %s59, 1
        %s671 = smul.addr %s670, 32
        %s672 = scalar_lea.vmem [#allocation4], %s671
        %p673 = pneg %p72
        %p674 = pneg %p69
        %s675 = sand.u32 %s39, 1
        %s676 = scalar_lea.sflag [#allocation8], %s675
        %s677 = sand.u32 %s85, 1
        %s678 = smul.addr %s677, 32
        %s679 = scalar_lea.vmem [#allocation7], %s678
        %p680 = pneg %p98
        %p681 = pneg %p95
        %s682 = sand.u32 %s39, 1
        %s683 = scalar_lea.sflag [#allocation8], %s682
        %s684 = sand.u32 %s113, 1
        %s685 = smul.addr %s684, 16
        %s686 = scalar_lea.vmem [#allocation9], %s685
        %p687 = pneg %p126
        %p688 = pneg %p123
        %p689 = pneg %p147
        %p690 = pneg %p144
        %p691 = pneg %p168
        %p692 = pneg %p165
        %p693 = pneg %p189
        %p694 = pneg %p186
        %p695 = pneg %p210
        %p696 = pneg %p207
        %p697 = pneg %p231
        %p698 = pneg %p228
        %p699 = pneg %p252
        %p700 = pneg %p249
        %p701 = pneg %p273
        %p702 = pneg %p270
        %p703 = pneg %p294
        %p704 = pneg %p291
        %p705 = pneg %p315
        %p706 = pneg %p312
        %p707 = pneg %p336
        %p708 = pneg %p333
        %p709 = pneg %p357
        %p710 = pneg %p354
        %p711 = pneg %p378
        %p712 = pneg %p375
        %p713 = pneg %p399
        %p714 = pneg %p396
        %p715 = pneg %p427
        %p716 = pneg %p424
        %s717 = sand.u32 %s414, 1
        %s718 = scalar_lea.sflag [#allocation6], %s717
        %s719 = sand.u32 %s414, 1
        %s720 = smul.addr %s719, 32
        %s721 = scalar_lea.vmem [#allocation19], %s720
        %s722 = smul.u32 4, %s44
        %s723 = smul.u32 4, %s44
        %p725 = scmp.eq.s32.totalorder %s44, 0
        // Predicated region
        $region121: #{tpu_custom_call.1} parent=83 // pred_check
          %p726 = pneg %p725
        $region122: #{tpu_custom_call.1} parent=83 // pred_check_branch
          %728 = sbr.rel (%p726) target = $region124
        $region123: #{tpu_custom_call.1} parent=83 // pred_region
          %v729 = vld [vmem:[%s630] sm:$0xf]
          %v730 = vld [vmem:[%s630 + $0x4] sm:$0xf]
          %v731 = vld [vmem:[%s630 + $0x8] sm:$0xf]
          %v732 = vld [vmem:[%s630 + $0xc] sm:$0xf]
          %v733 = vld [vmem:[%s630 + $0x10] sm:$0xf]
          %v734 = vld [vmem:[%s630 + $0x14] sm:$0xf]
          %v735 = vld [vmem:[%s630 + $0x18] sm:$0xf]
          %v736 = vld [vmem:[%s630 + $0x1c] sm:$0xf]
          %v737 = vld [vmem:[#allocation12] sm:$0xf]
          %v738 = vld [vmem:[#allocation12 + $0x4] sm:$0xf]
          %v739 = vld [vmem:[#allocation12 + $0x8] sm:$0xf]
          %v740 = vld [vmem:[#allocation12 + $0xc] sm:$0xf]
          %v741 = vld [vmem:[#allocation12 + $0x10] sm:$0xf]
          %v742 = vld [vmem:[#allocation12 + $0x14] sm:$0xf]
          %v743 = vld [vmem:[#allocation12 + $0x18] sm:$0xf]
          %v744 = vld [vmem:[#allocation12 + $0x1c] sm:$0xf]
          %v745 = vld [vmem:[#allocation12 + $0x20] sm:$0xf]
          %v746 = vld [vmem:[#allocation12 + $0x24] sm:$0xf]
          %v747 = vld [vmem:[#allocation12 + $0x28] sm:$0xf]
          %v748 = vld [vmem:[#allocation12 + $0x2c] sm:$0xf]
          %v749 = vld [vmem:[#allocation12 + $0x30] sm:$0xf]
          %v750 = vld [vmem:[#allocation12 + $0x34] sm:$0xf]
          %v751 = vld [vmem:[#allocation12 + $0x38] sm:$0xf]
          %v752 = vld [vmem:[#allocation12 + $0x3c] sm:$0xf]
          %v761 = vunpack.c.l.b16 %v729
          %v762 = vunpack.c.l.b16 %v730
          %v763 = vunpack.c.l.b16 %v731
          %v764 = vunpack.c.l.b16 %v732
          %v765 = vunpack.c.l.b16 %v733
          %v766 = vunpack.c.l.b16 %v734
          %v767 = vunpack.c.l.b16 %v735
          %v768 = vunpack.c.l.b16 %v736
          %v769 = vpack.c.b16 %v762, %v761
          %v770 = vpack.c.b16 %v764, %v763
          %v771 = vpack.c.b16 %v766, %v765
          %v772 = vpack.c.b16 %v768, %v767
          %v793 = vunpack.c.l.b16 %v737
          %v794 = vunpack.c.l.b16 %v738
          %v795 = vunpack.c.l.b16 %v739
          %v796 = vunpack.c.l.b16 %v740
          %v797 = vunpack.c.l.b16 %v741
          %v798 = vunpack.c.l.b16 %v742
          %v799 = vunpack.c.l.b16 %v743
          %v800 = vunpack.c.l.b16 %v744
          %v801 = vunpack.c.l.b16 %v745
          %v802 = vunpack.c.l.b16 %v746
          %v803 = vunpack.c.l.b16 %v747
          %v804 = vunpack.c.l.b16 %v748
          %v805 = vunpack.c.l.b16 %v749
          %v806 = vunpack.c.l.b16 %v750
          %v807 = vunpack.c.l.b16 %v751
          %v808 = vunpack.c.l.b16 %v752
          %v809 = vpack.c.b16 %v794, %v793
          %v810 = vpack.c.b16 %v796, %v795
          %v811 = vpack.c.b16 %v798, %v797
          %v812 = vpack.c.b16 %v800, %v799
          %v813 = vpack.c.b16 %v802, %v801
          %v814 = vpack.c.b16 %v804, %v803
          %v815 = vpack.c.b16 %v806, %v805
          %v816 = vpack.c.b16 %v808, %v807
          %825 = vmatprep.subr.bf16.mxu0 0
          %826 = vmatpush1.bf16.msra.mxu0 %v816
          %827 = vmatprep.subr.bf16.mxu0 0
          %828 = vmatpush1.bf16.msra.mxu0 %v815
          %829 = vmatprep.subr.bf16.mxu0 0
          %830 = vmatpush1.bf16.msra.mxu0 %v814
          %831 = vmatprep.subr.bf16.mxu0 0
          %832 = vmatpush1.bf16.msra.mxu0 %v813
          %833 = vmatprep.subr.bf16.mxu0 0
          %834 = vmatpush1.bf16.msra.mxu0 %v812
          %835 = vmatprep.subr.bf16.mxu0 0
          %836 = vmatpush1.bf16.msra.mxu0 %v811
          %837 = vmatprep.subr.bf16.mxu0 0
          %838 = vmatpush1.bf16.msra.mxu0 %v810
          %839 = vmatprep.subr.bf16.mxu0 0
          %840 = vmatpush1.bf16.msra.mxu0 %v809
          %841 = vmatprep.subr.bf16.mxu0 0
          %842 = vmatpush2.bf16.msra.mxu0 0
          %843 = vmatprep.subr.bf16.mxu0 0
          %844 = vmatpush2.bf16.msra.mxu0 0
          %845 = vmatprep.subr.bf16.mxu0 0
          %846 = vmatpush2.bf16.msra.mxu0 0
          %847 = vmatprep.subr.bf16.mxu0 0
          %848 = vmatpush2.bf16.msra.mxu0 0
          %849 = vmatprep.subr.bf16.mxu0 0
          %850 = vmatpush2.bf16.msra.mxu0 0
          %851 = vmatprep.subr.bf16.mxu0 0
          %852 = vmatpush2.bf16.msra.mxu0 0
          %853 = vmatprep.subr.bf16.mxu0 0
          %854 = vmatpush2.bf16.msra.mxu0 0
          %855 = vmatprep.subr.bf16.mxu0 0
          %856 = vmatpush2.bf16.msra.mxu0 0
          %857 = vmatprep.mubr.bf16.mxu0 0
          %858 = vmatmul.mubr.bf16.gmra.mxu0 %v769
          %v859 = vpop.f32.mrf.mxu0
          %v860 = vadd.f32 0.0, %v859
          %v861 = vpop.f32.mrf.mxu0
          %v862 = vpop.f32.mrf.mxu0
          %v863 = vadd.f32 0.0, %v862
          %v864 = vpop.f32.mrf.mxu0
          %865 = vmatprep.mubr.bf16.mxu0 0
          %866 = vmatmul.mubr.bf16.gmra.mxu0 %v770
          %v867 = vpop.f32.mrf.mxu0
          %v868 = vadd.f32 0.0, %v867
          %v869 = vpop.f32.mrf.mxu0
          %v870 = vpop.f32.mrf.mxu0
          %v871 = vadd.f32 0.0, %v870
          %v872 = vpop.f32.mrf.mxu0
          %873 = vmatprep.mubr.bf16.mxu0 0
          %874 = vmatmul.mubr.bf16.gmra.mxu0 %v771
          %v875 = vpop.f32.mrf.mxu0
          %v876 = vadd.f32 0.0, %v875
          %v877 = vpop.f32.mrf.mxu0
          %v878 = vpop.f32.mrf.mxu0
          %v879 = vadd.f32 0.0, %v878
          %v880 = vpop.f32.mrf.mxu0
          %881 = vmatprep.mubr.bf16.mxu0 0
          %882 = vmatmul.mubr.bf16.gmra.mxu0 %v772
          %v883 = vpop.f32.mrf.mxu0
          %v884 = vadd.f32 0.0, %v883
          %v885 = vpop.f32.mrf.mxu0
          %v886 = vpop.f32.mrf.mxu0
          %v887 = vadd.f32 0.0, %v886
          %v888 = vpop.f32.mrf.mxu0
          %889 = vdwg.mxu0
          %v890 = vpack.c.bf16 %v863, %v860
          %v891 = vpack.c.bf16 %v871, %v868
          %v892 = vpack.c.bf16 %v879, %v876
          %v893 = vpack.c.bf16 %v887, %v884
          %v898 = vunpack.c.l.b16 %v890
          %v899 = vunpack.c.h.b16 %v890
          %v900 = vunpack.c.l.b16 %v891
          %v901 = vunpack.c.h.b16 %v891
          %v902 = vunpack.c.l.b16 %v892
          %v903 = vunpack.c.h.b16 %v892
          %v904 = vunpack.c.l.b16 %v893
          %v905 = vunpack.c.h.b16 %v893
          %v906 = vpack.c.b16 %v898, %v898
          %v907 = vpack.c.b16 %v899, %v899
          %v908 = vpack.c.b16 %v900, %v900
          %v909 = vpack.c.b16 %v901, %v901
          %v910 = vpack.c.b16 %v902, %v902
          %v911 = vpack.c.b16 %v903, %v903
          %v912 = vpack.c.b16 %v904, %v904
          %v913 = vpack.c.b16 %v905, %v905
          %922 = vst [vmem:[#allocation2] sm:$0xf] %v906
          %923 = vst [vmem:[#allocation2 + $0x4] sm:$0xf] %v907
          %924 = vst [vmem:[#allocation2 + $0x8] sm:$0xf] %v908
          %925 = vst [vmem:[#allocation2 + $0xc] sm:$0xf] %v909
          %926 = vst [vmem:[#allocation2 + $0x10] sm:$0xf] %v910
          %927 = vst [vmem:[#allocation2 + $0x14] sm:$0xf] %v911
          %928 = vst [vmem:[#allocation2 + $0x18] sm:$0xf] %v912
          %929 = vst [vmem:[#allocation2 + $0x1c] sm:$0xf] %v913
          %v930 = vld [vmem:[%s621] sm:$0xf]
          %v931 = vld [vmem:[%s621 + $0x4] sm:$0xf]
          %v932 = vld [vmem:[%s621 + $0x8] sm:$0xf]
          %v933 = vld [vmem:[%s621 + $0xc] sm:$0xf]
          %v934 = vld [vmem:[%s621 + $0x10] sm:$0xf]
          %v935 = vld [vmem:[%s621 + $0x14] sm:$0xf]
          %v936 = vld [vmem:[%s621 + $0x18] sm:$0xf]
          %v937 = vld [vmem:[%s621 + $0x1c] sm:$0xf]
          %v938 = vld [vmem:[#allocation10] sm:$0xf]
          %v939 = vld [vmem:[#allocation10 + $0x4] sm:$0xf]
          %v940 = vld [vmem:[#allocation10 + $0x8] sm:$0xf]
          %v941 = vld [vmem:[#allocation10 + $0xc] sm:$0xf]
          %v942 = vld [vmem:[#allocation10 + $0x10] sm:$0xf]
          %v943 = vld [vmem:[#allocation10 + $0x14] sm:$0xf]
          %v944 = vld [vmem:[#allocation10 + $0x18] sm:$0xf]
          %v945 = vld [vmem:[#allocation10 + $0x1c] sm:$0xf]
          %v946 = vld [vmem:[#allocation10 + $0x20] sm:$0xf]
          %v947 = vld [vmem:[#allocation10 + $0x24] sm:$0xf]
          %v948 = vld [vmem:[#allocation10 + $0x28] sm:$0xf]
          %v949 = vld [vmem:[#allocation10 + $0x2c] sm:$0xf]
          %v950 = vld [vmem:[#allocation10 + $0x30] sm:$0xf]
          %v951 = vld [vmem:[#allocation10 + $0x34] sm:$0xf]
          %v952 = vld [vmem:[#allocation10 + $0x38] sm:$0xf]
          %v953 = vld [vmem:[#allocation10 + $0x3c] sm:$0xf]
          %v962 = vunpack.c.l.b16 %v930
          %v963 = vunpack.c.l.b16 %v931
          %v964 = vunpack.c.l.b16 %v932
          %v965 = vunpack.c.l.b16 %v933
          %v966 = vunpack.c.l.b16 %v934
          %v967 = vunpack.c.l.b16 %v935
          %v968 = vunpack.c.l.b16 %v936
          %v969 = vunpack.c.l.b16 %v937
          %v970 = vpack.c.b16 %v963, %v962
          %v971 = vpack.c.b16 %v965, %v964
          %v972 = vpack.c.b16 %v967, %v966
          %v973 = vpack.c.b16 %v969, %v968
          %v994 = vunpack.c.l.b16 %v938
          %v995 = vunpack.c.l.b16 %v939
          %v996 = vunpack.c.l.b16 %v940
          %v997 = vunpack.c.l.b16 %v941
          %v998 = vunpack.c.l.b16 %v942
          %v999 = vunpack.c.l.b16 %v943
          %v1000 = vunpack.c.l.b16 %v944
          %v1001 = vunpack.c.l.b16 %v945
          %v1002 = vunpack.c.l.b16 %v946
          %v1003 = vunpack.c.l.b16 %v947
          %v1004 = vunpack.c.l.b16 %v948
          %v1005 = vunpack.c.l.b16 %v949
          %v1006 = vunpack.c.l.b16 %v950
          %v1007 = vunpack.c.l.b16 %v951
          %v1008 = vunpack.c.l.b16 %v952
          %v1009 = vunpack.c.l.b16 %v953
          %v1010 = vpack.c.b16 %v995, %v994
          %v1011 = vpack.c.b16 %v997, %v996
          %v1012 = vpack.c.b16 %v999, %v998
          %v1013 = vpack.c.b16 %v1001, %v1000
          %v1014 = vpack.c.b16 %v1003, %v1002
          %v1015 = vpack.c.b16 %v1005, %v1004
          %v1016 = vpack.c.b16 %v1007, %v1006
          %v1017 = vpack.c.b16 %v1009, %v1008
          %1026 = vmatprep.subr.bf16.mxu0 0
          %1027 = vmatpush1.bf16.msra.mxu0 %v1017
          %1028 = vmatprep.subr.bf16.mxu0 0
          %1029 = vmatpush1.bf16.msra.mxu0 %v1016
          %1030 = vmatprep.subr.bf16.mxu0 0
          %1031 = vmatpush1.bf16.msra.mxu0 %v1015
          %1032 = vmatprep.subr.bf16.mxu0 0
          %1033 = vmatpush1.bf16.msra.mxu0 %v1014
          %1034 = vmatprep.subr.bf16.mxu0 0
          %1035 = vmatpush1.bf16.msra.mxu0 %v1013
          %1036 = vmatprep.subr.bf16.mxu0 0
          %1037 = vmatpush1.bf16.msra.mxu0 %v1012
          %1038 = vmatprep.subr.bf16.mxu0 0
          %1039 = vmatpush1.bf16.msra.mxu0 %v1011
          %1040 = vmatprep.subr.bf16.mxu0 0
          %1041 = vmatpush1.bf16.msra.mxu0 %v1010
          %1042 = vmatprep.subr.bf16.mxu0 0
          %1043 = vmatpush2.bf16.msra.mxu0 0
          %1044 = vmatprep.subr.bf16.mxu0 0
          %1045 = vmatpush2.bf16.msra.mxu0 0
          %1046 = vmatprep.subr.bf16.mxu0 0
          %1047 = vmatpush2.bf16.msra.mxu0 0
          %1048 = vmatprep.subr.bf16.mxu0 0
          %1049 = vmatpush2.bf16.msra.mxu0 0
          %1050 = vmatprep.subr.bf16.mxu0 0
          %1051 = vmatpush2.bf16.msra.mxu0 0
          %1052 = vmatprep.subr.bf16.mxu0 0
          %1053 = vmatpush2.bf16.msra.mxu0 0
          %1054 = vmatprep.subr.bf16.mxu0 0
          %1055 = vmatpush2.bf16.msra.mxu0 0
          %1056 = vmatprep.subr.bf16.mxu0 0
          %1057 = vmatpush2.bf16.msra.mxu0 0
          %1058 = vmatprep.mubr.bf16.mxu0 0
          %1059 = vmatmul.mubr.bf16.gmra.mxu0 %v970
          %v1060 = vpop.f32.mrf.mxu0
          %v1061 = vadd.f32 0.0, %v1060
          %v1062 = vpop.f32.mrf.mxu0
          %v1063 = vpop.f32.mrf.mxu0
          %v1064 = vadd.f32 0.0, %v1063
          %v1065 = vpop.f32.mrf.mxu0
          %1066 = vmatprep.mubr.bf16.mxu0 0
          %1067 = vmatmul.mubr.bf16.gmra.mxu0 %v971
          %v1068 = vpop.f32.mrf.mxu0
          %v1069 = vadd.f32 0.0, %v1068
          %v1070 = vpop.f32.mrf.mxu0
          %v1071 = vpop.f32.mrf.mxu0
          %v1072 = vadd.f32 0.0, %v1071
          %v1073 = vpop.f32.mrf.mxu0
          %1074 = vmatprep.mubr.bf16.mxu0 0
          %1075 = vmatmul.mubr.bf16.gmra.mxu0 %v972
          %v1076 = vpop.f32.mrf.mxu0
          %v1077 = vadd.f32 0.0, %v1076
          %v1078 = vpop.f32.mrf.mxu0
          %v1079 = vpop.f32.mrf.mxu0
          %v1080 = vadd.f32 0.0, %v1079
          %v1081 = vpop.f32.mrf.mxu0
          %1082 = vmatprep.mubr.bf16.mxu0 0
          %1083 = vmatmul.mubr.bf16.gmra.mxu0 %v973
          %v1084 = vpop.f32.mrf.mxu0
          %v1085 = vadd.f32 0.0, %v1084
          %v1086 = vpop.f32.mrf.mxu0
          %v1087 = vpop.f32.mrf.mxu0
          %v1088 = vadd.f32 0.0, %v1087
          %v1089 = vpop.f32.mrf.mxu0
          %1090 = vdwg.mxu0
          %v1091 = vpack.c.bf16 %v1064, %v1061
          %v1092 = vpack.c.bf16 %v1072, %v1069
          %v1093 = vpack.c.bf16 %v1080, %v1077
          %v1094 = vpack.c.bf16 %v1088, %v1085
          %v1099 = vunpack.c.l.b16 %v1091
          %v1100 = vunpack.c.h.b16 %v1091
          %v1101 = vunpack.c.l.b16 %v1092
          %v1102 = vunpack.c.h.b16 %v1092
          %v1103 = vunpack.c.l.b16 %v1093
          %v1104 = vunpack.c.h.b16 %v1093
          %v1105 = vunpack.c.l.b16 %v1094
          %v1106 = vunpack.c.h.b16 %v1094
          %v1107 = vpack.c.b16 %v1099, %v1099
          %v1108 = vpack.c.b16 %v1100, %v1100
          %v1109 = vpack.c.b16 %v1101, %v1101
          %v1110 = vpack.c.b16 %v1102, %v1102
          %v1111 = vpack.c.b16 %v1103, %v1103
          %v1112 = vpack.c.b16 %v1104, %v1104
          %v1113 = vpack.c.b16 %v1105, %v1105
          %v1114 = vpack.c.b16 %v1106, %v1106
          %1123 = vst [vmem:[#allocation3] sm:$0xf] %v1107
          %1124 = vst [vmem:[#allocation3 + $0x4] sm:$0xf] %v1108
          %1125 = vst [vmem:[#allocation3 + $0x8] sm:$0xf] %v1109
          %1126 = vst [vmem:[#allocation3 + $0xc] sm:$0xf] %v1110
          %1127 = vst [vmem:[#allocation3 + $0x10] sm:$0xf] %v1111
          %1128 = vst [vmem:[#allocation3 + $0x14] sm:$0xf] %v1112
          %1129 = vst [vmem:[#allocation3 + $0x18] sm:$0xf] %v1113
          %1130 = vst [vmem:[#allocation3 + $0x1c] sm:$0xf] %v1114
        $region124: #{tpu_custom_call.1} parent=83 // pred_fallthru
          _
        %v1131 = vld [vmem:[%s639] sm:$0xf]
        %v1132 = vld [vmem:[%s639 + $0x4] sm:$0xf]
        %v1133 = vld [vmem:[%s639 + $0x8] sm:$0xf]
        %v1134 = vld [vmem:[%s639 + $0xc] sm:$0xf]
        %v1135 = vunpack.c.l.bf16 %v1131
        %v1136 = vunpack.c.l.bf16 %v1132
        %v1137 = vunpack.c.l.bf16 %v1133
        %v1138 = vunpack.c.l.bf16 %v1134
        %v1139 = vld [vmem:[#allocation13] sm:$0xf]
        %v1140 = vld [vmem:[#allocation13 + $0x4] sm:$0xf]
        %v1141 = vld [vmem:[#allocation13 + $0x8] sm:$0xf]
        %v1142 = vld [vmem:[#allocation13 + $0xc] sm:$0xf]
        %v1143 = vld [vmem:[#allocation13 + $0x10] sm:$0xf]
        %v1144 = vld [vmem:[#allocation13 + $0x14] sm:$0xf]
        %v1145 = vld [vmem:[#allocation13 + $0x18] sm:$0xf]
        %v1146 = vld [vmem:[#allocation13 + $0x1c] sm:$0xf]
        %v1147 = vld [vmem:[#allocation13 + $0x20] sm:$0xf]
        %v1148 = vld [vmem:[#allocation13 + $0x24] sm:$0xf]
        %v1149 = vld [vmem:[#allocation13 + $0x28] sm:$0xf]
        %v1150 = vld [vmem:[#allocation13 + $0x2c] sm:$0xf]
        %v1151 = vld [vmem:[#allocation13 + $0x30] sm:$0xf]
        %v1152 = vld [vmem:[#allocation13 + $0x34] sm:$0xf]
        %v1153 = vld [vmem:[#allocation13 + $0x38] sm:$0xf]
        %v1154 = vld [vmem:[#allocation13 + $0x3c] sm:$0xf]
        %v1159 = vunpack.c.l.b16 %v1131
        %v1160 = vunpack.c.l.b16 %v1132
        %v1161 = vunpack.c.l.b16 %v1133
        %v1162 = vunpack.c.l.b16 %v1134
        %v1163 = vpack.c.b16 %v1160, %v1159
        %v1164 = vpack.c.b16 %v1162, %v1161
        %v1183 = vunpack.c.l.b16 %v1139
        %v1184 = vunpack.c.l.b16 %v1140
        %v1185 = vunpack.c.l.b16 %v1141
        %v1186 = vunpack.c.l.b16 %v1142
        %v1187 = vunpack.c.l.b16 %v1143
        %v1188 = vunpack.c.l.b16 %v1144
        %v1189 = vunpack.c.l.b16 %v1145
        %v1190 = vunpack.c.l.b16 %v1146
        %v1191 = vunpack.c.l.b16 %v1147
        %v1192 = vunpack.c.l.b16 %v1148
        %v1193 = vunpack.c.l.b16 %v1149
        %v1194 = vunpack.c.l.b16 %v1150
        %v1195 = vunpack.c.l.b16 %v1151
        %v1196 = vunpack.c.l.b16 %v1152
        %v1197 = vunpack.c.l.b16 %v1153
        %v1198 = vunpack.c.l.b16 %v1154
        %v1199 = vpack.c.b16 %v1184, %v1183
        %v1200 = vpack.c.b16 %v1186, %v1185
        %v1201 = vpack.c.b16 %v1188, %v1187
        %v1202 = vpack.c.b16 %v1190, %v1189
        %v1203 = vpack.c.b16 %v1192, %v1191
        %v1204 = vpack.c.b16 %v1194, %v1193
        %v1205 = vpack.c.b16 %v1196, %v1195
        %v1206 = vpack.c.b16 %v1198, %v1197
        %1215 = vmatprep.subr.bf16.mxu0 0
        %1216 = vmatpush1.bf16.msra.mxu0 %v1206
        %1217 = vmatprep.subr.bf16.mxu0 0
        %1218 = vmatpush1.bf16.msra.mxu0 %v1205
        %1219 = vmatprep.subr.bf16.mxu0 0
        %1220 = vmatpush1.bf16.msra.mxu0 %v1204
        %1221 = vmatprep.subr.bf16.mxu0 0
        %1222 = vmatpush1.bf16.msra.mxu0 %v1203
        %1223 = vmatprep.subr.bf16.mxu0 0
        %1224 = vmatpush1.bf16.msra.mxu0 %v1202
        %1225 = vmatprep.subr.bf16.mxu0 0
        %1226 = vmatpush1.bf16.msra.mxu0 %v1201
        %1227 = vmatprep.subr.bf16.mxu0 0
        %1228 = vmatpush1.bf16.msra.mxu0 %v1200
        %1229 = vmatprep.subr.bf16.mxu0 0
        %1230 = vmatpush1.bf16.msra.mxu0 %v1199
        %1231 = vmatprep.subr.bf16.mxu0 0
        %1232 = vmatpush2.bf16.msra.mxu0 0
        %1233 = vmatprep.subr.bf16.mxu0 0
        %1234 = vmatpush2.bf16.msra.mxu0 0
        %1235 = vmatprep.subr.bf16.mxu0 0
        %1236 = vmatpush2.bf16.msra.mxu0 0
        %1237 = vmatprep.subr.bf16.mxu0 0
        %1238 = vmatpush2.bf16.msra.mxu0 0
        %1239 = vmatprep.subr.bf16.mxu0 0
        %1240 = vmatpush2.bf16.msra.mxu0 0
        %1241 = vmatprep.subr.bf16.mxu0 0
        %1242 = vmatpush2.bf16.msra.mxu0 0
        %1243 = vmatprep.subr.bf16.mxu0 0
        %1244 = vmatpush2.bf16.msra.mxu0 0
        %1245 = vmatprep.subr.bf16.mxu0 0
        %1246 = vmatpush2.bf16.msra.mxu0 0
        %1247 = vmatprep.mubr.bf16.mxu0 0
        %1248 = vmatmul.mubr.bf16.gmra.mxu0 %v1163
        %v1249 = vpop.f32.mrf.mxu0
        %v1250 = vadd.f32 0.0, %v1249
        %v1251 = vpop.f32.mrf.mxu0
        %v1252 = vpop.f32.mrf.mxu0
        %v1253 = vadd.f32 0.0, %v1252
        %v1254 = vpop.f32.mrf.mxu0
        %1255 = vmatprep.mubr.bf16.mxu0 0
        %1256 = vmatmul.mubr.bf16.gmra.mxu0 %v1164
        %v1257 = vpop.f32.mrf.mxu0
        %v1258 = vadd.f32 0.0, %v1257
        %v1259 = vpop.f32.mrf.mxu0
        %v1260 = vpop.f32.mrf.mxu0
        %v1261 = vadd.f32 0.0, %v1260
        %v1262 = vpop.f32.mrf.mxu0
        %1263 = vdwg.mxu0
        %v1264 = vmul.f32 %v1250, 0.088388346
        %v1265 = vmul.f32 %v1253, 0.088388346
        %v1266 = vmul.f32 %v1258, 0.088388346
        %v1267 = vmul.f32 %v1261, 0.088388346
        %v1268 = vpack.c.bf16 %v1265, %v1264
        %v1269 = vpack.c.bf16 %v1267, %v1266
        %s1270 = smul.u32 %s44, 32
        %v1271 = vlaneseq
        %v1272 = vshrl.u32 %v1271, 7
        %v1273 = vadd.s32 %v1272, 8
        %v1274 = vadd.s32 %v1272, 16
        %v1275 = vadd.s32 %v1272, 24
        %v1276 = vstv %s1270
        %v1277 = vadd.s32 %v1272, %v1276
        %v1278 = vadd.s32 %v1273, %v1276
        %v1279 = vadd.s32 %v1274, %v1276
        %v1280 = vadd.s32 %v1275, %v1276
        %v1281 = vlaneseq
        %v1282 = vand.u32 %v1281, 127
        %vm1283 = vcmp.ge.s32.totalorder %v1277, %v1282
        %vm1284 = vcmp.ge.s32.totalorder %v1278, %v1282
        %vm1285 = vcmp.ge.s32.totalorder %v1279, %v1282
        %vm1286 = vcmp.ge.s32.totalorder %v1280, %v1282
        %1289 = vrot.lane.b32.xlu0 %v1268, 96
        %v1290 = vpop.permute.xlu0 %1289
        %1291 = vrot.lane.b32.xlu0 %v1269, 96
        %v1292 = vpop.permute.xlu0 %1291
        %1293 = vrot.lane.b32.xlu0 %v1268, 64
        %v1294 = vpop.permute.xlu0 %1293
        %1295 = vrot.lane.b32.xlu0 %v1269, 64
        %v1296 = vpop.permute.xlu0 %1295
        %1297 = vrot.lane.b32.xlu0 %v1268, 32
        %v1298 = vpop.permute.xlu0 %1297
        %1299 = vrot.lane.b32.xlu0 %v1269, 32
        %v1300 = vpop.permute.xlu0 %1299
        %v1303 = vpack.i.b16 %v1290, %v1268
        %v1305 = vshrl.u32 %v1268, 16
        %v1306 = vshrl.u32 %v1290, 16
        %v1307 = vpack.i.b16 %v1306, %v1305
        %v1311 = vpack.i.b16 %v1298, %v1294
        %v1313 = vshrl.u32 %v1294, 16
        %v1314 = vshrl.u32 %v1298, 16
        %v1315 = vpack.i.b16 %v1314, %v1313
        %v1318 = vpack.i.b16 0, 0
        %v1320 = vshrl.u32 0, 16
        %v1321 = vpack.i.b16 %v1320, %v1320
        %v1325 = vpack.i.b16 %v1292, %v1269
        %v1327 = vshrl.u32 %v1269, 16
        %v1328 = vshrl.u32 %v1292, 16
        %v1329 = vpack.i.b16 %v1328, %v1327
        %v1333 = vpack.i.b16 %v1300, %v1296
        %v1335 = vshrl.u32 %v1296, 16
        %v1336 = vshrl.u32 %v1300, 16
        %v1337 = vpack.i.b16 %v1336, %v1335
        %v1339 = vcombine.high %v1303, %v1318
        %v1341 = vunpack.c.l.s4 1983009808
        %v1342 = vunpack.c.0.s8 %v1341
        %v1343 = vlaneseq
        %v1344 = vshrl.u32 %v1343, 7
        %v1345 = vsub.s32 %v1342, %v1344
        %v1346 = vrot.slane %v1303, %v1345
        %v1348 = vunpack.c.l.s4 1983009808
        %v1349 = vunpack.c.0.s8 %v1348
        %v1350 = vlaneseq
        %v1351 = vshrl.u32 %v1350, 7
        %v1352 = vsub.s32 %v1349, %v1351
        %v1353 = vrot.slane %v1339, %v1352
        %v1354 = vcombine.high %v1311, %v1318
        %v1356 = vunpack.c.l.s4 1983009808
        %v1357 = vunpack.c.0.s8 %v1356
        %v1358 = vlaneseq
        %v1359 = vshrl.u32 %v1358, 7
        %v1360 = vsub.s32 %v1357, %v1359
        %v1361 = vrot.slane %v1311, %v1360
        %v1363 = vunpack.c.l.s4 1983009808
        %v1364 = vunpack.c.0.s8 %v1363
        %v1365 = vlaneseq
        %v1366 = vshrl.u32 %v1365, 7
        %v1367 = vsub.s32 %v1364, %v1366
        %v1368 = vrot.slane %v1354, %v1367
        %v1369 = vcombine.low %v1346, %v1361
        %v1370 = vcombine.high %v1346, %v1361
        %v1372 = vunpack.c.l.s4 1934713408
        %v1373 = vunpack.c.0.s8 %v1372
        %v1374 = vlaneseq
        %v1375 = vshrl.u32 %v1374, 7
        %v1376 = vsub.s32 %v1373, %v1375
        %v1377 = vrot.slane %v1369, %v1376
        %v1379 = vunpack.c.l.s4 1934713408
        %v1380 = vunpack.c.0.s8 %v1379
        %v1381 = vlaneseq
        %v1382 = vshrl.u32 %v1381, 7
        %v1383 = vsub.s32 %v1380, %v1382
        %v1384 = vrot.slane %v1370, %v1383
        %v1385 = vcombine.low %v1353, %v1368
        %v1386 = vcombine.high %v1353, %v1368
        %v1388 = vunpack.c.l.s4 1934713408
        %v1389 = vunpack.c.0.s8 %v1388
        %v1390 = vlaneseq
        %v1391 = vshrl.u32 %v1390, 7
        %v1392 = vsub.s32 %v1389, %v1391
        %v1393 = vrot.slane %v1385, %v1392
        %v1395 = vunpack.c.l.s4 1934713408
        %v1396 = vunpack.c.0.s8 %v1395
        %v1397 = vlaneseq
        %v1398 = vshrl.u32 %v1397, 7
        %v1399 = vsub.s32 %v1396, %v1398
        %v1400 = vrot.slane %v1386, %v1399
        %v1401 = vcombine.high %v1377, 0
        %v1402 = vcombine.high %v1384, 0
        %v1403 = vcombine.high %v1393, 0
        %v1404 = vcombine.high %v1400, 0
        %v1405 = vcombine.high %v1307, %v1321
        %v1407 = vunpack.c.l.s4 1983009808
        %v1408 = vunpack.c.0.s8 %v1407
        %v1409 = vlaneseq
        %v1410 = vshrl.u32 %v1409, 7
        %v1411 = vsub.s32 %v1408, %v1410
        %v1412 = vrot.slane %v1307, %v1411
        %v1414 = vunpack.c.l.s4 1983009808
        %v1415 = vunpack.c.0.s8 %v1414
        %v1416 = vlaneseq
        %v1417 = vshrl.u32 %v1416, 7
        %v1418 = vsub.s32 %v1415, %v1417
        %v1419 = vrot.slane %v1405, %v1418
        %v1420 = vcombine.high %v1315, %v1321
        %v1422 = vunpack.c.l.s4 1983009808
        %v1423 = vunpack.c.0.s8 %v1422
        %v1424 = vlaneseq
        %v1425 = vshrl.u32 %v1424, 7
        %v1426 = vsub.s32 %v1423, %v1425
        %v1427 = vrot.slane %v1315, %v1426
        %v1429 = vunpack.c.l.s4 1983009808
        %v1430 = vunpack.c.0.s8 %v1429
        %v1431 = vlaneseq
        %v1432 = vshrl.u32 %v1431, 7
        %v1433 = vsub.s32 %v1430, %v1432
        %v1434 = vrot.slane %v1420, %v1433
        %v1435 = vcombine.low %v1412, %v1427
        %v1436 = vcombine.high %v1412, %v1427
        %v1438 = vunpack.c.l.s4 1934713408
        %v1439 = vunpack.c.0.s8 %v1438
        %v1440 = vlaneseq
        %v1441 = vshrl.u32 %v1440, 7
        %v1442 = vsub.s32 %v1439, %v1441
        %v1443 = vrot.slane %v1435, %v1442
        %v1445 = vunpack.c.l.s4 1934713408
        %v1446 = vunpack.c.0.s8 %v1445
        %v1447 = vlaneseq
        %v1448 = vshrl.u32 %v1447, 7
        %v1449 = vsub.s32 %v1446, %v1448
        %v1450 = vrot.slane %v1436, %v1449
        %v1451 = vcombine.low %v1419, %v1434
        %v1452 = vcombine.high %v1419, %v1434
        %v1454 = vunpack.c.l.s4 1934713408
        %v1455 = vunpack.c.0.s8 %v1454
        %v1456 = vlaneseq
        %v1457 = vshrl.u32 %v1456, 7
        %v1458 = vsub.s32 %v1455, %v1457
        %v1459 = vrot.slane %v1451, %v1458
        %v1461 = vunpack.c.l.s4 1934713408
        %v1462 = vunpack.c.0.s8 %v1461
        %v1463 = vlaneseq
        %v1464 = vshrl.u32 %v1463, 7
        %v1465 = vsub.s32 %v1462, %v1464
        %v1466 = vrot.slane %v1452, %v1465
        %v1467 = vcombine.high %v1443, 0
        %v1468 = vcombine.high %v1450, 0
        %v1469 = vcombine.high %v1459, 0
        %v1470 = vcombine.high %v1466, 0
        %v1471 = vcombine.high %v1325, %v1318
        %v1473 = vunpack.c.l.s4 1983009808
        %v1474 = vunpack.c.0.s8 %v1473
        %v1475 = vlaneseq
        %v1476 = vshrl.u32 %v1475, 7
        %v1477 = vsub.s32 %v1474, %v1476
        %v1478 = vrot.slane %v1325, %v1477
        %v1480 = vunpack.c.l.s4 1983009808
        %v1481 = vunpack.c.0.s8 %v1480
        %v1482 = vlaneseq
        %v1483 = vshrl.u32 %v1482, 7
        %v1484 = vsub.s32 %v1481, %v1483
        %v1485 = vrot.slane %v1471, %v1484
        %v1486 = vcombine.high %v1333, %v1318
        %v1488 = vunpack.c.l.s4 1983009808
        %v1489 = vunpack.c.0.s8 %v1488
        %v1490 = vlaneseq
        %v1491 = vshrl.u32 %v1490, 7
        %v1492 = vsub.s32 %v1489, %v1491
        %v1493 = vrot.slane %v1333, %v1492
        %v1495 = vunpack.c.l.s4 1983009808
        %v1496 = vunpack.c.0.s8 %v1495
        %v1497 = vlaneseq
        %v1498 = vshrl.u32 %v1497, 7
        %v1499 = vsub.s32 %v1496, %v1498
        %v1500 = vrot.slane %v1486, %v1499
        %v1501 = vcombine.low %v1478, %v1493
        %v1502 = vcombine.high %v1478, %v1493
        %v1504 = vunpack.c.l.s4 1934713408
        %v1505 = vunpack.c.0.s8 %v1504
        %v1506 = vlaneseq
        %v1507 = vshrl.u32 %v1506, 7
        %v1508 = vsub.s32 %v1505, %v1507
        %v1509 = vrot.slane %v1501, %v1508
        %v1511 = vunpack.c.l.s4 1934713408
        %v1512 = vunpack.c.0.s8 %v1511
        %v1513 = vlaneseq
        %v1514 = vshrl.u32 %v1513, 7
        %v1515 = vsub.s32 %v1512, %v1514
        %v1516 = vrot.slane %v1502, %v1515
        %v1517 = vcombine.low %v1485, %v1500
        %v1518 = vcombine.high %v1485, %v1500
        %v1520 = vunpack.c.l.s4 1934713408
        %v1521 = vunpack.c.0.s8 %v1520
        %v1522 = vlaneseq
        %v1523 = vshrl.u32 %v1522, 7
        %v1524 = vsub.s32 %v1521, %v1523
        %v1525 = vrot.slane %v1517, %v1524
        %v1527 = vunpack.c.l.s4 1934713408
        %v1528 = vunpack.c.0.s8 %v1527
        %v1529 = vlaneseq
        %v1530 = vshrl.u32 %v1529, 7
        %v1531 = vsub.s32 %v1528, %v1530
        %v1532 = vrot.slane %v1518, %v1531
        %v1533 = vcombine.high %v1509, 0
        %v1534 = vcombine.high %v1516, 0
        %v1535 = vcombine.high %v1525, 0
        %v1536 = vcombine.high %v1532, 0
        %v1537 = vcombine.high %v1329, %v1321
        %v1539 = vunpack.c.l.s4 1983009808
        %v1540 = vunpack.c.0.s8 %v1539
        %v1541 = vlaneseq
        %v1542 = vshrl.u32 %v1541, 7
        %v1543 = vsub.s32 %v1540, %v1542
        %v1544 = vrot.slane %v1329, %v1543
        %v1546 = vunpack.c.l.s4 1983009808
        %v1547 = vunpack.c.0.s8 %v1546
        %v1548 = vlaneseq
        %v1549 = vshrl.u32 %v1548, 7
        %v1550 = vsub.s32 %v1547, %v1549
        %v1551 = vrot.slane %v1537, %v1550
        %v1552 = vcombine.high %v1337, %v1321
        %v1554 = vunpack.c.l.s4 1983009808
        %v1555 = vunpack.c.0.s8 %v1554
        %v1556 = vlaneseq
        %v1557 = vshrl.u32 %v1556, 7
        %v1558 = vsub.s32 %v1555, %v1557
        %v1559 = vrot.slane %v1337, %v1558
        %v1561 = vunpack.c.l.s4 1983009808
        %v1562 = vunpack.c.0.s8 %v1561
        %v1563 = vlaneseq
        %v1564 = vshrl.u32 %v1563, 7
        %v1565 = vsub.s32 %v1562, %v1564
        %v1566 = vrot.slane %v1552, %v1565
        %v1567 = vcombine.low %v1544, %v1559
        %v1568 = vcombine.high %v1544, %v1559
        %v1570 = vunpack.c.l.s4 1934713408
        %v1571 = vunpack.c.0.s8 %v1570
        %v1572 = vlaneseq
        %v1573 = vshrl.u32 %v1572, 7
        %v1574 = vsub.s32 %v1571, %v1573
        %v1575 = vrot.slane %v1567, %v1574
        %v1577 = vunpack.c.l.s4 1934713408
        %v1578 = vunpack.c.0.s8 %v1577
        %v1579 = vlaneseq
        %v1580 = vshrl.u32 %v1579, 7
        %v1581 = vsub.s32 %v1578, %v1580
        %v1582 = vrot.slane %v1568, %v1581
        %v1583 = vcombine.low %v1551, %v1566
        %v1584 = vcombine.high %v1551, %v1566
        %v1586 = vunpack.c.l.s4 1934713408
        %v1587 = vunpack.c.0.s8 %v1586
        %v1588 = vlaneseq
        %v1589 = vshrl.u32 %v1588, 7
        %v1590 = vsub.s32 %v1587, %v1589
        %v1591 = vrot.slane %v1583, %v1590
        %v1593 = vunpack.c.l.s4 1934713408
        %v1594 = vunpack.c.0.s8 %v1593
        %v1595 = vlaneseq
        %v1596 = vshrl.u32 %v1595, 7
        %v1597 = vsub.s32 %v1594, %v1596
        %v1598 = vrot.slane %v1584, %v1597
        %v1599 = vcombine.high %v1575, 0
        %v1600 = vcombine.high %v1582, 0
        %v1601 = vcombine.high %v1591, 0
        %v1602 = vcombine.high %v1598, 0
        %v1603 = vcombine.low %v1377, %v1384
        %v1605 = vunpack.c.l.s4 1983009808
        %v1606 = vunpack.c.0.s8 %v1605
        %v1607 = vlaneseq
        %v1608 = vshrl.u32 %v1607, 7
        %v1609 = vsub.s32 %v1606, %v1608
        %v1610 = vrot.slane %v1603, %v1609
        %v1611 = vcombine.low %v1401, %v1402
        %v1613 = vunpack.c.l.s4 1983009808
        %v1614 = vunpack.c.0.s8 %v1613
        %v1615 = vlaneseq
        %v1616 = vshrl.u32 %v1615, 7
        %v1617 = vsub.s32 %v1614, %v1616
        %v1618 = vrot.slane %v1611, %v1617
        %v1619 = vcombine.low %v1393, %v1400
        %v1621 = vunpack.c.l.s4 1983009808
        %v1622 = vunpack.c.0.s8 %v1621
        %v1623 = vlaneseq
        %v1624 = vshrl.u32 %v1623, 7
        %v1625 = vsub.s32 %v1622, %v1624
        %v1626 = vrot.slane %v1619, %v1625
        %v1627 = vcombine.low %v1403, %v1404
        %v1629 = vunpack.c.l.s4 1983009808
        %v1630 = vunpack.c.0.s8 %v1629
        %v1631 = vlaneseq
        %v1632 = vshrl.u32 %v1631, 7
        %v1633 = vsub.s32 %v1630, %v1632
        %v1634 = vrot.slane %v1627, %v1633
        %v1635 = vcombine.low %v1610, %v1618
        %v1637 = vunpack.c.l.s4 1934713408
        %v1638 = vunpack.c.0.s8 %v1637
        %v1639 = vlaneseq
        %v1640 = vshrl.u32 %v1639, 7
        %v1641 = vsub.s32 %v1638, %v1640
        %v1642 = vrot.slane %v1635, %v1641
        %v1643 = vcombine.low %v1626, %v1634
        %v1645 = vunpack.c.l.s4 1934713408
        %v1646 = vunpack.c.0.s8 %v1645
        %v1647 = vlaneseq
        %v1648 = vshrl.u32 %v1647, 7
        %v1649 = vsub.s32 %v1646, %v1648
        %v1650 = vrot.slane %v1643, %v1649
        %v1651 = vcombine.low %v1642, %v1650
        %v1652 = vcombine.high %v1642, %v1650
        %v1653 = vcombine.low %v1443, %v1450
        %v1655 = vunpack.c.l.s4 1983009808
        %v1656 = vunpack.c.0.s8 %v1655
        %v1657 = vlaneseq
        %v1658 = vshrl.u32 %v1657, 7
        %v1659 = vsub.s32 %v1656, %v1658
        %v1660 = vrot.slane %v1653, %v1659
        %v1661 = vcombine.low %v1467, %v1468
        %v1663 = vunpack.c.l.s4 1983009808
        %v1664 = vunpack.c.0.s8 %v1663
        %v1665 = vlaneseq
        %v1666 = vshrl.u32 %v1665, 7
        %v1667 = vsub.s32 %v1664, %v1666
        %v1668 = vrot.slane %v1661, %v1667
        %v1669 = vcombine.low %v1459, %v1466
        %v1671 = vunpack.c.l.s4 1983009808
        %v1672 = vunpack.c.0.s8 %v1671
        %v1673 = vlaneseq
        %v1674 = vshrl.u32 %v1673, 7
        %v1675 = vsub.s32 %v1672, %v1674
        %v1676 = vrot.slane %v1669, %v1675
        %v1677 = vcombine.low %v1469, %v1470
        %v1679 = vunpack.c.l.s4 1983009808
        %v1680 = vunpack.c.0.s8 %v1679
        %v1681 = vlaneseq
        %v1682 = vshrl.u32 %v1681, 7
        %v1683 = vsub.s32 %v1680, %v1682
        %v1684 = vrot.slane %v1677, %v1683
        %v1685 = vcombine.low %v1660, %v1668
        %v1687 = vunpack.c.l.s4 1934713408
        %v1688 = vunpack.c.0.s8 %v1687
        %v1689 = vlaneseq
        %v1690 = vshrl.u32 %v1689, 7
        %v1691 = vsub.s32 %v1688, %v1690
        %v1692 = vrot.slane %v1685, %v1691
        %v1693 = vcombine.low %v1676, %v1684
        %v1695 = vunpack.c.l.s4 1934713408
        %v1696 = vunpack.c.0.s8 %v1695
        %v1697 = vlaneseq
        %v1698 = vshrl.u32 %v1697, 7
        %v1699 = vsub.s32 %v1696, %v1698
        %v1700 = vrot.slane %v1693, %v1699
        %v1701 = vcombine.low %v1692, %v1700
        %v1702 = vcombine.high %v1692, %v1700
        %v1703 = vcombine.low %v1509, %v1516
        %v1705 = vunpack.c.l.s4 1983009808
        %v1706 = vunpack.c.0.s8 %v1705
        %v1707 = vlaneseq
        %v1708 = vshrl.u32 %v1707, 7
        %v1709 = vsub.s32 %v1706, %v1708
        %v1710 = vrot.slane %v1703, %v1709
        %v1711 = vcombine.low %v1533, %v1534
        %v1713 = vunpack.c.l.s4 1983009808
        %v1714 = vunpack.c.0.s8 %v1713
        %v1715 = vlaneseq
        %v1716 = vshrl.u32 %v1715, 7
        %v1717 = vsub.s32 %v1714, %v1716
        %v1718 = vrot.slane %v1711, %v1717
        %v1719 = vcombine.low %v1525, %v1532
        %v1721 = vunpack.c.l.s4 1983009808
        %v1722 = vunpack.c.0.s8 %v1721
        %v1723 = vlaneseq
        %v1724 = vshrl.u32 %v1723, 7
        %v1725 = vsub.s32 %v1722, %v1724
        %v1726 = vrot.slane %v1719, %v1725
        %v1727 = vcombine.low %v1535, %v1536
        %v1729 = vunpack.c.l.s4 1983009808
        %v1730 = vunpack.c.0.s8 %v1729
        %v1731 = vlaneseq
        %v1732 = vshrl.u32 %v1731, 7
        %v1733 = vsub.s32 %v1730, %v1732
        %v1734 = vrot.slane %v1727, %v1733
        %v1735 = vcombine.low %v1710, %v1718
        %v1737 = vunpack.c.l.s4 1934713408
        %v1738 = vunpack.c.0.s8 %v1737
        %v1739 = vlaneseq
        %v1740 = vshrl.u32 %v1739, 7
        %v1741 = vsub.s32 %v1738, %v1740
        %v1742 = vrot.slane %v1735, %v1741
        %v1743 = vcombine.low %v1726, %v1734
        %v1745 = vunpack.c.l.s4 1934713408
        %v1746 = vunpack.c.0.s8 %v1745
        %v1747 = vlaneseq
        %v1748 = vshrl.u32 %v1747, 7
        %v1749 = vsub.s32 %v1746, %v1748
        %v1750 = vrot.slane %v1743, %v1749
        %v1751 = vcombine.low %v1742, %v1750
        %v1752 = vcombine.high %v1742, %v1750
        %v1753 = vcombine.low %v1575, %v1582
        %v1755 = vunpack.c.l.s4 1983009808
        %v1756 = vunpack.c.0.s8 %v1755
        %v1757 = vlaneseq
        %v1758 = vshrl.u32 %v1757, 7
        %v1759 = vsub.s32 %v1756, %v1758
        %v1760 = vrot.slane %v1753, %v1759
        %v1761 = vcombine.low %v1599, %v1600
        %v1763 = vunpack.c.l.s4 1983009808
        %v1764 = vunpack.c.0.s8 %v1763
        %v1765 = vlaneseq
        %v1766 = vshrl.u32 %v1765, 7
        %v1767 = vsub.s32 %v1764, %v1766
        %v1768 = vrot.slane %v1761, %v1767
        %v1769 = vcombine.low %v1591, %v1598
        %v1771 = vunpack.c.l.s4 1983009808
        %v1772 = vunpack.c.0.s8 %v1771
        %v1773 = vlaneseq
        %v1774 = vshrl.u32 %v1773, 7
        %v1775 = vsub.s32 %v1772, %v1774
        %v1776 = vrot.slane %v1769, %v1775
        %v1777 = vcombine.low %v1601, %v1602
        %v1779 = vunpack.c.l.s4 1983009808
        %v1780 = vunpack.c.0.s8 %v1779
        %v1781 = vlaneseq
        %v1782 = vshrl.u32 %v1781, 7
        %v1783 = vsub.s32 %v1780, %v1782
        %v1784 = vrot.slane %v1777, %v1783
        %v1785 = vcombine.low %v1760, %v1768
        %v1787 = vunpack.c.l.s4 1934713408
        %v1788 = vunpack.c.0.s8 %v1787
        %v1789 = vlaneseq
        %v1790 = vshrl.u32 %v1789, 7
        %v1791 = vsub.s32 %v1788, %v1790
        %v1792 = vrot.slane %v1785, %v1791
        %v1793 = vcombine.low %v1776, %v1784
        %v1795 = vunpack.c.l.s4 1934713408
        %v1796 = vunpack.c.0.s8 %v1795
        %v1797 = vlaneseq
        %v1798 = vshrl.u32 %v1797, 7
        %v1799 = vsub.s32 %v1796, %v1798
        %v1800 = vrot.slane %v1793, %v1799
        %v1801 = vcombine.low %v1792, %v1800
        %v1802 = vcombine.high %v1792, %v1800
        %v1805 = vpack.i.b16 %v1701, %v1651
        %v1806 = vshrl.u32 %v1651, 16
        %v1807 = vshrl.u32 %v1701, 16
        %v1808 = vpack.i.b16 %v1807, %v1806
        %v1811 = vpack.i.b16 %v1702, %v1652
        %v1812 = vshrl.u32 %v1652, 16
        %v1813 = vshrl.u32 %v1702, 16
        %v1814 = vpack.i.b16 %v1813, %v1812
        %v1817 = vpack.i.b16 %v1801, %v1751
        %v1818 = vshrl.u32 %v1751, 16
        %v1819 = vshrl.u32 %v1801, 16
        %v1820 = vpack.i.b16 %v1819, %v1818
        %v1823 = vpack.i.b16 %v1802, %v1752
        %v1824 = vshrl.u32 %v1752, 16
        %v1825 = vshrl.u32 %v1802, 16
        %v1826 = vpack.i.b16 %v1825, %v1824
        %v1827 = vld [vmem:[#allocation2] sm:$0xf]
        %v1828 = vld [vmem:[#allocation2 + $0x4] sm:$0xf]
        %v1829 = vld [vmem:[#allocation2 + $0x8] sm:$0xf]
        %v1830 = vld [vmem:[#allocation2 + $0xc] sm:$0xf]
        %v1831 = vld [vmem:[#allocation2 + $0x10] sm:$0xf]
        %v1832 = vld [vmem:[#allocation2 + $0x14] sm:$0xf]
        %v1833 = vld [vmem:[#allocation2 + $0x18] sm:$0xf]
        %v1834 = vld [vmem:[#allocation2 + $0x1c] sm:$0xf]
        %1843 = vrot.lane.b32.xlu0 %v1827, 96
        %v1844 = vpop.permute.xlu0 %1843
        %1845 = vrot.lane.b32.xlu0 %v1828, 96
        %v1846 = vpop.permute.xlu0 %1845
        %1847 = vrot.lane.b32.xlu0 %v1829, 96
        %v1848 = vpop.permute.xlu0 %1847
        %1849 = vrot.lane.b32.xlu0 %v1830, 96
        %v1850 = vpop.permute.xlu0 %1849
        %1851 = vrot.lane.b32.xlu0 %v1831, 96
        %v1852 = vpop.permute.xlu0 %1851
        %1853 = vrot.lane.b32.xlu0 %v1832, 96
        %v1854 = vpop.permute.xlu0 %1853
        %1855 = vrot.lane.b32.xlu0 %v1833, 96
        %v1856 = vpop.permute.xlu0 %1855
        %1857 = vrot.lane.b32.xlu0 %v1834, 96
        %v1858 = vpop.permute.xlu0 %1857
        %1859 = vrot.lane.b32.xlu0 %v1827, 64
        %v1860 = vpop.permute.xlu0 %1859
        %1861 = vrot.lane.b32.xlu0 %v1828, 64
        %v1862 = vpop.permute.xlu0 %1861
        %1863 = vrot.lane.b32.xlu0 %v1829, 64
        %v1864 = vpop.permute.xlu0 %1863
        %1865 = vrot.lane.b32.xlu0 %v1830, 64
        %v1866 = vpop.permute.xlu0 %1865
        %1867 = vrot.lane.b32.xlu0 %v1831, 64
        %v1868 = vpop.permute.xlu0 %1867
        %1869 = vrot.lane.b32.xlu0 %v1832, 64
        %v1870 = vpop.permute.xlu0 %1869
        %1871 = vrot.lane.b32.xlu0 %v1833, 64
        %v1872 = vpop.permute.xlu0 %1871
        %1873 = vrot.lane.b32.xlu0 %v1834, 64
        %v1874 = vpop.permute.xlu0 %1873
        %1875 = vrot.lane.b32.xlu0 %v1827, 32
        %v1876 = vpop.permute.xlu0 %1875
        %1877 = vrot.lane.b32.xlu0 %v1828, 32
        %v1878 = vpop.permute.xlu0 %1877
        %1879 = vrot.lane.b32.xlu0 %v1829, 32
        %v1880 = vpop.permute.xlu0 %1879
        %1881 = vrot.lane.b32.xlu0 %v1830, 32
        %v1882 = vpop.permute.xlu0 %1881
        %1883 = vrot.lane.b32.xlu0 %v1831, 32
        %v1884 = vpop.permute.xlu0 %1883
        %1885 = vrot.lane.b32.xlu0 %v1832, 32
        %v1886 = vpop.permute.xlu0 %1885
        %1887 = vrot.lane.b32.xlu0 %v1833, 32
        %v1888 = vpop.permute.xlu0 %1887
        %1889 = vrot.lane.b32.xlu0 %v1834, 32
        %v1890 = vpop.permute.xlu0 %1889
        %v1893 = vpack.i.b16 %v1844, %v1827
        %v1894 = vshrl.u32 %v1827, 16
        %v1895 = vshrl.u32 %v1844, 16
        %v1896 = vpack.i.b16 %v1895, %v1894
        %v1899 = vpack.i.b16 %v1876, %v1860
        %v1900 = vshrl.u32 %v1860, 16
        %v1901 = vshrl.u32 %v1876, 16
        %v1902 = vpack.i.b16 %v1901, %v1900
        %v1905 = vpack.i.b16 %v1846, %v1828
        %v1906 = vshrl.u32 %v1828, 16
        %v1907 = vshrl.u32 %v1846, 16
        %v1908 = vpack.i.b16 %v1907, %v1906
        %v1911 = vpack.i.b16 %v1878, %v1862
        %v1912 = vshrl.u32 %v1862, 16
        %v1913 = vshrl.u32 %v1878, 16
        %v1914 = vpack.i.b16 %v1913, %v1912
        %v1917 = vpack.i.b16 %v1848, %v1829
        %v1918 = vshrl.u32 %v1829, 16
        %v1919 = vshrl.u32 %v1848, 16
        %v1920 = vpack.i.b16 %v1919, %v1918
        %v1923 = vpack.i.b16 %v1880, %v1864
        %v1924 = vshrl.u32 %v1864, 16
        %v1925 = vshrl.u32 %v1880, 16
        %v1926 = vpack.i.b16 %v1925, %v1924
        %v1929 = vpack.i.b16 %v1850, %v1830
        %v1930 = vshrl.u32 %v1830, 16
        %v1931 = vshrl.u32 %v1850, 16
        %v1932 = vpack.i.b16 %v1931, %v1930
        %v1935 = vpack.i.b16 %v1882, %v1866
        %v1936 = vshrl.u32 %v1866, 16
        %v1937 = vshrl.u32 %v1882, 16
        %v1938 = vpack.i.b16 %v1937, %v1936
        %v1941 = vpack.i.b16 %v1852, %v1831
        %v1942 = vshrl.u32 %v1831, 16
        %v1943 = vshrl.u32 %v1852, 16
        %v1944 = vpack.i.b16 %v1943, %v1942
        %v1947 = vpack.i.b16 %v1884, %v1868
        %v1948 = vshrl.u32 %v1868, 16
        %v1949 = vshrl.u32 %v1884, 16
        %v1950 = vpack.i.b16 %v1949, %v1948
        %v1953 = vpack.i.b16 %v1854, %v1832
        %v1954 = vshrl.u32 %v1832, 16
        %v1955 = vshrl.u32 %v1854, 16
        %v1956 = vpack.i.b16 %v1955, %v1954
        %v1959 = vpack.i.b16 %v1886, %v1870
        %v1960 = vshrl.u32 %v1870, 16
        %v1961 = vshrl.u32 %v1886, 16
        %v1962 = vpack.i.b16 %v1961, %v1960
        %v1965 = vpack.i.b16 %v1856, %v1833
        %v1966 = vshrl.u32 %v1833, 16
        %v1967 = vshrl.u32 %v1856, 16
        %v1968 = vpack.i.b16 %v1967, %v1966
        %v1971 = vpack.i.b16 %v1888, %v1872
        %v1972 = vshrl.u32 %v1872, 16
        %v1973 = vshrl.u32 %v1888, 16
        %v1974 = vpack.i.b16 %v1973, %v1972
        %v1977 = vpack.i.b16 %v1858, %v1834
        %v1978 = vshrl.u32 %v1834, 16
        %v1979 = vshrl.u32 %v1858, 16
        %v1980 = vpack.i.b16 %v1979, %v1978
        %v1983 = vpack.i.b16 %v1890, %v1874
        %v1984 = vshrl.u32 %v1874, 16
        %v1985 = vshrl.u32 %v1890, 16
        %v1986 = vpack.i.b16 %v1985, %v1984
        %v1989 = vunpack.c.l.s4 1983009808
        %v1990 = vunpack.c.0.s8 %v1989
        %v1991 = vlaneseq
        %v1992 = vshrl.u32 %v1991, 7
        %v1993 = vsub.s32 %v1990, %v1992
        %v1994 = vrot.slane %v1893, %v1993
        %v1997 = vunpack.c.l.s4 1983009808
        %v1998 = vunpack.c.0.s8 %v1997
        %v1999 = vlaneseq
        %v2000 = vshrl.u32 %v1999, 7
        %v2001 = vsub.s32 %v1998, %v2000
        %v2002 = vrot.slane %v1899, %v2001
        %v2003 = vcombine.low %v1994, %v2002
        %v2004 = vcombine.high %v1994, %v2002
        %v2006 = vunpack.c.l.s4 1934713408
        %v2007 = vunpack.c.0.s8 %v2006
        %v2008 = vlaneseq
        %v2009 = vshrl.u32 %v2008, 7
        %v2010 = vsub.s32 %v2007, %v2009
        %v2011 = vrot.slane %v2003, %v2010
        %v2013 = vunpack.c.l.s4 1934713408
        %v2014 = vunpack.c.0.s8 %v2013
        %v2015 = vlaneseq
        %v2016 = vshrl.u32 %v2015, 7
        %v2017 = vsub.s32 %v2014, %v2016
        %v2018 = vrot.slane %v2004, %v2017
        %v2019 = vcombine.high %v2011, 0
        %v2020 = vcombine.high %v2018, 0
        %v2023 = vunpack.c.l.s4 1983009808
        %v2024 = vunpack.c.0.s8 %v2023
        %v2025 = vlaneseq
        %v2026 = vshrl.u32 %v2025, 7
        %v2027 = vsub.s32 %v2024, %v2026
        %v2028 = vrot.slane %v1896, %v2027
        %v2031 = vunpack.c.l.s4 1983009808
        %v2032 = vunpack.c.0.s8 %v2031
        %v2033 = vlaneseq
        %v2034 = vshrl.u32 %v2033, 7
        %v2035 = vsub.s32 %v2032, %v2034
        %v2036 = vrot.slane %v1902, %v2035
        %v2037 = vcombine.low %v2028, %v2036
        %v2038 = vcombine.high %v2028, %v2036
        %v2040 = vunpack.c.l.s4 1934713408
        %v2041 = vunpack.c.0.s8 %v2040
        %v2042 = vlaneseq
        %v2043 = vshrl.u32 %v2042, 7
        %v2044 = vsub.s32 %v2041, %v2043
        %v2045 = vrot.slane %v2037, %v2044
        %v2047 = vunpack.c.l.s4 1934713408
        %v2048 = vunpack.c.0.s8 %v2047
        %v2049 = vlaneseq
        %v2050 = vshrl.u32 %v2049, 7
        %v2051 = vsub.s32 %v2048, %v2050
        %v2052 = vrot.slane %v2038, %v2051
        %v2053 = vcombine.high %v2045, 0
        %v2054 = vcombine.high %v2052, 0
        %v2057 = vunpack.c.l.s4 1983009808
        %v2058 = vunpack.c.0.s8 %v2057
        %v2059 = vlaneseq
        %v2060 = vshrl.u32 %v2059, 7
        %v2061 = vsub.s32 %v2058, %v2060
        %v2062 = vrot.slane %v1905, %v2061
        %v2065 = vunpack.c.l.s4 1983009808
        %v2066 = vunpack.c.0.s8 %v2065
        %v2067 = vlaneseq
        %v2068 = vshrl.u32 %v2067, 7
        %v2069 = vsub.s32 %v2066, %v2068
        %v2070 = vrot.slane %v1911, %v2069
        %v2071 = vcombine.low %v2062, %v2070
        %v2072 = vcombine.high %v2062, %v2070
        %v2074 = vunpack.c.l.s4 1934713408
        %v2075 = vunpack.c.0.s8 %v2074
        %v2076 = vlaneseq
        %v2077 = vshrl.u32 %v2076, 7
        %v2078 = vsub.s32 %v2075, %v2077
        %v2079 = vrot.slane %v2071, %v2078
        %v2081 = vunpack.c.l.s4 1934713408
        %v2082 = vunpack.c.0.s8 %v2081
        %v2083 = vlaneseq
        %v2084 = vshrl.u32 %v2083, 7
        %v2085 = vsub.s32 %v2082, %v2084
        %v2086 = vrot.slane %v2072, %v2085
        %v2087 = vcombine.high %v2079, 0
        %v2088 = vcombine.high %v2086, 0
        %v2091 = vunpack.c.l.s4 1983009808
        %v2092 = vunpack.c.0.s8 %v2091
        %v2093 = vlaneseq
        %v2094 = vshrl.u32 %v2093, 7
        %v2095 = vsub.s32 %v2092, %v2094
        %v2096 = vrot.slane %v1908, %v2095
        %v2099 = vunpack.c.l.s4 1983009808
        %v2100 = vunpack.c.0.s8 %v2099
        %v2101 = vlaneseq
        %v2102 = vshrl.u32 %v2101, 7
        %v2103 = vsub.s32 %v2100, %v2102
        %v2104 = vrot.slane %v1914, %v2103
        %v2105 = vcombine.low %v2096, %v2104
        %v2106 = vcombine.high %v2096, %v2104
        %v2108 = vunpack.c.l.s4 1934713408
        %v2109 = vunpack.c.0.s8 %v2108
        %v2110 = vlaneseq
        %v2111 = vshrl.u32 %v2110, 7
        %v2112 = vsub.s32 %v2109, %v2111
        %v2113 = vrot.slane %v2105, %v2112
        %v2115 = vunpack.c.l.s4 1934713408
        %v2116 = vunpack.c.0.s8 %v2115
        %v2117 = vlaneseq
        %v2118 = vshrl.u32 %v2117, 7
        %v2119 = vsub.s32 %v2116, %v2118
        %v2120 = vrot.slane %v2106, %v2119
        %v2121 = vcombine.high %v2113, 0
        %v2122 = vcombine.high %v2120, 0
        %v2125 = vunpack.c.l.s4 1983009808
        %v2126 = vunpack.c.0.s8 %v2125
        %v2127 = vlaneseq
        %v2128 = vshrl.u32 %v2127, 7
        %v2129 = vsub.s32 %v2126, %v2128
        %v2130 = vrot.slane %v1917, %v2129
        %v2133 = vunpack.c.l.s4 1983009808
        %v2134 = vunpack.c.0.s8 %v2133
        %v2135 = vlaneseq
        %v2136 = vshrl.u32 %v2135, 7
        %v2137 = vsub.s32 %v2134, %v2136
        %v2138 = vrot.slane %v1923, %v2137
        %v2139 = vcombine.low %v2130, %v2138
        %v2140 = vcombine.high %v2130, %v2138
        %v2142 = vunpack.c.l.s4 1934713408
        %v2143 = vunpack.c.0.s8 %v2142
        %v2144 = vlaneseq
        %v2145 = vshrl.u32 %v2144, 7
        %v2146 = vsub.s32 %v2143, %v2145
        %v2147 = vrot.slane %v2139, %v2146
        %v2149 = vunpack.c.l.s4 1934713408
        %v2150 = vunpack.c.0.s8 %v2149
        %v2151 = vlaneseq
        %v2152 = vshrl.u32 %v2151, 7
        %v2153 = vsub.s32 %v2150, %v2152
        %v2154 = vrot.slane %v2140, %v2153
        %v2155 = vcombine.high %v2147, 0
        %v2156 = vcombine.high %v2154, 0
        %v2159 = vunpack.c.l.s4 1983009808
        %v2160 = vunpack.c.0.s8 %v2159
        %v2161 = vlaneseq
        %v2162 = vshrl.u32 %v2161, 7
        %v2163 = vsub.s32 %v2160, %v2162
        %v2164 = vrot.slane %v1920, %v2163
        %v2167 = vunpack.c.l.s4 1983009808
        %v2168 = vunpack.c.0.s8 %v2167
        %v2169 = vlaneseq
        %v2170 = vshrl.u32 %v2169, 7
        %v2171 = vsub.s32 %v2168, %v2170
        %v2172 = vrot.slane %v1926, %v2171
        %v2173 = vcombine.low %v2164, %v2172
        %v2174 = vcombine.high %v2164, %v2172
        %v2176 = vunpack.c.l.s4 1934713408
        %v2177 = vunpack.c.0.s8 %v2176
        %v2178 = vlaneseq
        %v2179 = vshrl.u32 %v2178, 7
        %v2180 = vsub.s32 %v2177, %v2179
        %v2181 = vrot.slane %v2173, %v2180
        %v2183 = vunpack.c.l.s4 1934713408
        %v2184 = vunpack.c.0.s8 %v2183
        %v2185 = vlaneseq
        %v2186 = vshrl.u32 %v2185, 7
        %v2187 = vsub.s32 %v2184, %v2186
        %v2188 = vrot.slane %v2174, %v2187
        %v2189 = vcombine.high %v2181, 0
        %v2190 = vcombine.high %v2188, 0
        %v2193 = vunpack.c.l.s4 1983009808
        %v2194 = vunpack.c.0.s8 %v2193
        %v2195 = vlaneseq
        %v2196 = vshrl.u32 %v2195, 7
        %v2197 = vsub.s32 %v2194, %v2196
        %v2198 = vrot.slane %v1929, %v2197
        %v2201 = vunpack.c.l.s4 1983009808
        %v2202 = vunpack.c.0.s8 %v2201
        %v2203 = vlaneseq
        %v2204 = vshrl.u32 %v2203, 7
        %v2205 = vsub.s32 %v2202, %v2204
        %v2206 = vrot.slane %v1935, %v2205
        %v2207 = vcombine.low %v2198, %v2206
        %v2208 = vcombine.high %v2198, %v2206
        %v2210 = vunpack.c.l.s4 1934713408
        %v2211 = vunpack.c.0.s8 %v2210
        %v2212 = vlaneseq
        %v2213 = vshrl.u32 %v2212, 7
        %v2214 = vsub.s32 %v2211, %v2213
        %v2215 = vrot.slane %v2207, %v2214
        %v2217 = vunpack.c.l.s4 1934713408
        %v2218 = vunpack.c.0.s8 %v2217
        %v2219 = vlaneseq
        %v2220 = vshrl.u32 %v2219, 7
        %v2221 = vsub.s32 %v2218, %v2220
        %v2222 = vrot.slane %v2208, %v2221
        %v2223 = vcombine.high %v2215, 0
        %v2224 = vcombine.high %v2222, 0
        %v2227 = vunpack.c.l.s4 1983009808
        %v2228 = vunpack.c.0.s8 %v2227
        %v2229 = vlaneseq
        %v2230 = vshrl.u32 %v2229, 7
        %v2231 = vsub.s32 %v2228, %v2230
        %v2232 = vrot.slane %v1932, %v2231
        %v2235 = vunpack.c.l.s4 1983009808
        %v2236 = vunpack.c.0.s8 %v2235
        %v2237 = vlaneseq
        %v2238 = vshrl.u32 %v2237, 7
        %v2239 = vsub.s32 %v2236, %v2238
        %v2240 = vrot.slane %v1938, %v2239
        %v2241 = vcombine.low %v2232, %v2240
        %v2242 = vcombine.high %v2232, %v2240
        %v2244 = vunpack.c.l.s4 1934713408
        %v2245 = vunpack.c.0.s8 %v2244
        %v2246 = vlaneseq
        %v2247 = vshrl.u32 %v2246, 7
        %v2248 = vsub.s32 %v2245, %v2247
        %v2249 = vrot.slane %v2241, %v2248
        %v2251 = vunpack.c.l.s4 1934713408
        %v2252 = vunpack.c.0.s8 %v2251
        %v2253 = vlaneseq
        %v2254 = vshrl.u32 %v2253, 7
        %v2255 = vsub.s32 %v2252, %v2254
        %v2256 = vrot.slane %v2242, %v2255
        %v2257 = vcombine.high %v2249, 0
        %v2258 = vcombine.high %v2256, 0
        %v2261 = vunpack.c.l.s4 1983009808
        %v2262 = vunpack.c.0.s8 %v2261
        %v2263 = vlaneseq
        %v2264 = vshrl.u32 %v2263, 7
        %v2265 = vsub.s32 %v2262, %v2264
        %v2266 = vrot.slane %v1941, %v2265
        %v2269 = vunpack.c.l.s4 1983009808
        %v2270 = vunpack.c.0.s8 %v2269
        %v2271 = vlaneseq
        %v2272 = vshrl.u32 %v2271, 7
        %v2273 = vsub.s32 %v2270, %v2272
        %v2274 = vrot.slane %v1947, %v2273
        %v2275 = vcombine.low %v2266, %v2274
        %v2276 = vcombine.high %v2266, %v2274
        %v2278 = vunpack.c.l.s4 1934713408
        %v2279 = vunpack.c.0.s8 %v2278
        %v2280 = vlaneseq
        %v2281 = vshrl.u32 %v2280, 7
        %v2282 = vsub.s32 %v2279, %v2281
        %v2283 = vrot.slane %v2275, %v2282
        %v2285 = vunpack.c.l.s4 1934713408
        %v2286 = vunpack.c.0.s8 %v2285
        %v2287 = vlaneseq
        %v2288 = vshrl.u32 %v2287, 7
        %v2289 = vsub.s32 %v2286, %v2288
        %v2290 = vrot.slane %v2276, %v2289
        %v2291 = vcombine.high %v2283, 0
        %v2292 = vcombine.high %v2290, 0
        %v2295 = vunpack.c.l.s4 1983009808
        %v2296 = vunpack.c.0.s8 %v2295
        %v2297 = vlaneseq
        %v2298 = vshrl.u32 %v2297, 7
        %v2299 = vsub.s32 %v2296, %v2298
        %v2300 = vrot.slane %v1944, %v2299
        %v2303 = vunpack.c.l.s4 1983009808
        %v2304 = vunpack.c.0.s8 %v2303
        %v2305 = vlaneseq
        %v2306 = vshrl.u32 %v2305, 7
        %v2307 = vsub.s32 %v2304, %v2306
        %v2308 = vrot.slane %v1950, %v2307
        %v2309 = vcombine.low %v2300, %v2308
        %v2310 = vcombine.high %v2300, %v2308
        %v2312 = vunpack.c.l.s4 1934713408
        %v2313 = vunpack.c.0.s8 %v2312
        %v2314 = vlaneseq
        %v2315 = vshrl.u32 %v2314, 7
        %v2316 = vsub.s32 %v2313, %v2315
        %v2317 = vrot.slane %v2309, %v2316
        %v2319 = vunpack.c.l.s4 1934713408
        %v2320 = vunpack.c.0.s8 %v2319
        %v2321 = vlaneseq
        %v2322 = vshrl.u32 %v2321, 7
        %v2323 = vsub.s32 %v2320, %v2322
        %v2324 = vrot.slane %v2310, %v2323
        %v2325 = vcombine.high %v2317, 0
        %v2326 = vcombine.high %v2324, 0
        %v2329 = vunpack.c.l.s4 1983009808
        %v2330 = vunpack.c.0.s8 %v2329
        %v2331 = vlaneseq
        %v2332 = vshrl.u32 %v2331, 7
        %v2333 = vsub.s32 %v2330, %v2332
        %v2334 = vrot.slane %v1953, %v2333
        %v2337 = vunpack.c.l.s4 1983009808
        %v2338 = vunpack.c.0.s8 %v2337
        %v2339 = vlaneseq
        %v2340 = vshrl.u32 %v2339, 7
        %v2341 = vsub.s32 %v2338, %v2340
        %v2342 = vrot.slane %v1959, %v2341
        %v2343 = vcombine.low %v2334, %v2342
        %v2344 = vcombine.high %v2334, %v2342
        %v2346 = vunpack.c.l.s4 1934713408
        %v2347 = vunpack.c.0.s8 %v2346
        %v2348 = vlaneseq
        %v2349 = vshrl.u32 %v2348, 7
        %v2350 = vsub.s32 %v2347, %v2349
        %v2351 = vrot.slane %v2343, %v2350
        %v2353 = vunpack.c.l.s4 1934713408
        %v2354 = vunpack.c.0.s8 %v2353
        %v2355 = vlaneseq
        %v2356 = vshrl.u32 %v2355, 7
        %v2357 = vsub.s32 %v2354, %v2356
        %v2358 = vrot.slane %v2344, %v2357
        %v2359 = vcombine.high %v2351, 0
        %v2360 = vcombine.high %v2358, 0
        %v2363 = vunpack.c.l.s4 1983009808
        %v2364 = vunpack.c.0.s8 %v2363
        %v2365 = vlaneseq
        %v2366 = vshrl.u32 %v2365, 7
        %v2367 = vsub.s32 %v2364, %v2366
        %v2368 = vrot.slane %v1956, %v2367
        %v2371 = vunpack.c.l.s4 1983009808
        %v2372 = vunpack.c.0.s8 %v2371
        %v2373 = vlaneseq
        %v2374 = vshrl.u32 %v2373, 7
        %v2375 = vsub.s32 %v2372, %v2374
        %v2376 = vrot.slane %v1962, %v2375
        %v2377 = vcombine.low %v2368, %v2376
        %v2378 = vcombine.high %v2368, %v2376
        %v2380 = vunpack.c.l.s4 1934713408
        %v2381 = vunpack.c.0.s8 %v2380
        %v2382 = vlaneseq
        %v2383 = vshrl.u32 %v2382, 7
        %v2384 = vsub.s32 %v2381, %v2383
        %v2385 = vrot.slane %v2377, %v2384
        %v2387 = vunpack.c.l.s4 1934713408
        %v2388 = vunpack.c.0.s8 %v2387
        %v2389 = vlaneseq
        %v2390 = vshrl.u32 %v2389, 7
        %v2391 = vsub.s32 %v2388, %v2390
        %v2392 = vrot.slane %v2378, %v2391
        %v2393 = vcombine.high %v2385, 0
        %v2394 = vcombine.high %v2392, 0
        %v2397 = vunpack.c.l.s4 1983009808
        %v2398 = vunpack.c.0.s8 %v2397
        %v2399 = vlaneseq
        %v2400 = vshrl.u32 %v2399, 7
        %v2401 = vsub.s32 %v2398, %v2400
        %v2402 = vrot.slane %v1965, %v2401
        %v2405 = vunpack.c.l.s4 1983009808
        %v2406 = vunpack.c.0.s8 %v2405
        %v2407 = vlaneseq
        %v2408 = vshrl.u32 %v2407, 7
        %v2409 = vsub.s32 %v2406, %v2408
        %v2410 = vrot.slane %v1971, %v2409
        %v2411 = vcombine.low %v2402, %v2410
        %v2412 = vcombine.high %v2402, %v2410
        %v2414 = vunpack.c.l.s4 1934713408
        %v2415 = vunpack.c.0.s8 %v2414
        %v2416 = vlaneseq
        %v2417 = vshrl.u32 %v2416, 7
        %v2418 = vsub.s32 %v2415, %v2417
        %v2419 = vrot.slane %v2411, %v2418
        %v2421 = vunpack.c.l.s4 1934713408
        %v2422 = vunpack.c.0.s8 %v2421
        %v2423 = vlaneseq
        %v2424 = vshrl.u32 %v2423, 7
        %v2425 = vsub.s32 %v2422, %v2424
        %v2426 = vrot.slane %v2412, %v2425
        %v2427 = vcombine.high %v2419, 0
        %v2428 = vcombine.high %v2426, 0
        %v2431 = vunpack.c.l.s4 1983009808
        %v2432 = vunpack.c.0.s8 %v2431
        %v2433 = vlaneseq
        %v2434 = vshrl.u32 %v2433, 7
        %v2435 = vsub.s32 %v2432, %v2434
        %v2436 = vrot.slane %v1968, %v2435
        %v2439 = vunpack.c.l.s4 1983009808
        %v2440 = vunpack.c.0.s8 %v2439
        %v2441 = vlaneseq
        %v2442 = vshrl.u32 %v2441, 7
        %v2443 = vsub.s32 %v2440, %v2442
        %v2444 = vrot.slane %v1974, %v2443
        %v2445 = vcombine.low %v2436, %v2444
        %v2446 = vcombine.high %v2436, %v2444
        %v2448 = vunpack.c.l.s4 1934713408
        %v2449 = vunpack.c.0.s8 %v2448
        %v2450 = vlaneseq
        %v2451 = vshrl.u32 %v2450, 7
        %v2452 = vsub.s32 %v2449, %v2451
        %v2453 = vrot.slane %v2445, %v2452
        %v2455 = vunpack.c.l.s4 1934713408
        %v2456 = vunpack.c.0.s8 %v2455
        %v2457 = vlaneseq
        %v2458 = vshrl.u32 %v2457, 7
        %v2459 = vsub.s32 %v2456, %v2458
        %v2460 = vrot.slane %v2446, %v2459
        %v2461 = vcombine.high %v2453, 0
        %v2462 = vcombine.high %v2460, 0
        %v2465 = vunpack.c.l.s4 1983009808
        %v2466 = vunpack.c.0.s8 %v2465
        %v2467 = vlaneseq
        %v2468 = vshrl.u32 %v2467, 7
        %v2469 = vsub.s32 %v2466, %v2468
        %v2470 = vrot.slane %v1977, %v2469
        %v2473 = vunpack.c.l.s4 1983009808
        %v2474 = vunpack.c.0.s8 %v2473
        %v2475 = vlaneseq
        %v2476 = vshrl.u32 %v2475, 7
        %v2477 = vsub.s32 %v2474, %v2476
        %v2478 = vrot.slane %v1983, %v2477
        %v2479 = vcombine.low %v2470, %v2478
        %v2480 = vcombine.high %v2470, %v2478
        %v2482 = vunpack.c.l.s4 1934713408
        %v2483 = vunpack.c.0.s8 %v2482
        %v2484 = vlaneseq
        %v2485 = vshrl.u32 %v2484, 7
        %v2486 = vsub.s32 %v2483, %v2485
        %v2487 = vrot.slane %v2479, %v2486
        %v2489 = vunpack.c.l.s4 1934713408
        %v2490 = vunpack.c.0.s8 %v2489
        %v2491 = vlaneseq
        %v2492 = vshrl.u32 %v2491, 7
        %v2493 = vsub.s32 %v2490, %v2492
        %v2494 = vrot.slane %v2480, %v2493
        %v2495 = vcombine.high %v2487, 0
        %v2496 = vcombine.high %v2494, 0
        %v2499 = vunpack.c.l.s4 1983009808
        %v2500 = vunpack.c.0.s8 %v2499
        %v2501 = vlaneseq
        %v2502 = vshrl.u32 %v2501, 7
        %v2503 = vsub.s32 %v2500, %v2502
        %v2504 = vrot.slane %v1980, %v2503
        %v2507 = vunpack.c.l.s4 1983009808
        %v2508 = vunpack.c.0.s8 %v2507
        %v2509 = vlaneseq
        %v2510 = vshrl.u32 %v2509, 7
        %v2511 = vsub.s32 %v2508, %v2510
        %v2512 = vrot.slane %v1986, %v2511
        %v2513 = vcombine.low %v2504, %v2512
        %v2514 = vcombine.high %v2504, %v2512
        %v2516 = vunpack.c.l.s4 1934713408
        %v2517 = vunpack.c.0.s8 %v2516
        %v2518 = vlaneseq
        %v2519 = vshrl.u32 %v2518, 7
        %v2520 = vsub.s32 %v2517, %v2519
        %v2521 = vrot.slane %v2513, %v2520
        %v2523 = vunpack.c.l.s4 1934713408
        %v2524 = vunpack.c.0.s8 %v2523
        %v2525 = vlaneseq
        %v2526 = vshrl.u32 %v2525, 7
        %v2527 = vsub.s32 %v2524, %v2526
        %v2528 = vrot.slane %v2514, %v2527
        %v2529 = vcombine.high %v2521, 0
        %v2530 = vcombine.high %v2528, 0
        %v2531 = vcombine.low %v2011, %v2018
        %v2533 = vunpack.c.l.s4 1983009808
        %v2534 = vunpack.c.0.s8 %v2533
        %v2535 = vlaneseq
        %v2536 = vshrl.u32 %v2535, 7
        %v2537 = vsub.s32 %v2534, %v2536
        %v2538 = vrot.slane %v2531, %v2537
        %v2539 = vcombine.low %v2019, %v2020
        %v2541 = vunpack.c.l.s4 1983009808
        %v2542 = vunpack.c.0.s8 %v2541
        %v2543 = vlaneseq
        %v2544 = vshrl.u32 %v2543, 7
        %v2545 = vsub.s32 %v2542, %v2544
        %v2546 = vrot.slane %v2539, %v2545
        %v2547 = vcombine.low %v2538, %v2546
        %v2549 = vunpack.c.l.s4 1934713408
        %v2550 = vunpack.c.0.s8 %v2549
        %v2551 = vlaneseq
        %v2552 = vshrl.u32 %v2551, 7
        %v2553 = vsub.s32 %v2550, %v2552
        %v2554 = vrot.slane %v2547, %v2553
        %v2555 = vcombine.high %v2554, 0
        %v2556 = vcombine.low %v2045, %v2052
        %v2558 = vunpack.c.l.s4 1983009808
        %v2559 = vunpack.c.0.s8 %v2558
        %v2560 = vlaneseq
        %v2561 = vshrl.u32 %v2560, 7
        %v2562 = vsub.s32 %v2559, %v2561
        %v2563 = vrot.slane %v2556, %v2562
        %v2564 = vcombine.low %v2053, %v2054
        %v2566 = vunpack.c.l.s4 1983009808
        %v2567 = vunpack.c.0.s8 %v2566
        %v2568 = vlaneseq
        %v2569 = vshrl.u32 %v2568, 7
        %v2570 = vsub.s32 %v2567, %v2569
        %v2571 = vrot.slane %v2564, %v2570
        %v2572 = vcombine.low %v2563, %v2571
        %v2574 = vunpack.c.l.s4 1934713408
        %v2575 = vunpack.c.0.s8 %v2574
        %v2576 = vlaneseq
        %v2577 = vshrl.u32 %v2576, 7
        %v2578 = vsub.s32 %v2575, %v2577
        %v2579 = vrot.slane %v2572, %v2578
        %v2580 = vcombine.high %v2579, 0
        %v2581 = vcombine.low %v2079, %v2086
        %v2583 = vunpack.c.l.s4 1983009808
        %v2584 = vunpack.c.0.s8 %v2583
        %v2585 = vlaneseq
        %v2586 = vshrl.u32 %v2585, 7
        %v2587 = vsub.s32 %v2584, %v2586
        %v2588 = vrot.slane %v2581, %v2587
        %v2589 = vcombine.low %v2087, %v2088
        %v2591 = vunpack.c.l.s4 1983009808
        %v2592 = vunpack.c.0.s8 %v2591
        %v2593 = vlaneseq
        %v2594 = vshrl.u32 %v2593, 7
        %v2595 = vsub.s32 %v2592, %v2594
        %v2596 = vrot.slane %v2589, %v2595
        %v2597 = vcombine.low %v2588, %v2596
        %v2599 = vunpack.c.l.s4 1934713408
        %v2600 = vunpack.c.0.s8 %v2599
        %v2601 = vlaneseq
        %v2602 = vshrl.u32 %v2601, 7
        %v2603 = vsub.s32 %v2600, %v2602
        %v2604 = vrot.slane %v2597, %v2603
        %v2605 = vcombine.high %v2604, 0
        %v2606 = vcombine.low %v2113, %v2120
        %v2608 = vunpack.c.l.s4 1983009808
        %v2609 = vunpack.c.0.s8 %v2608
        %v2610 = vlaneseq
        %v2611 = vshrl.u32 %v2610, 7
        %v2612 = vsub.s32 %v2609, %v2611
        %v2613 = vrot.slane %v2606, %v2612
        %v2614 = vcombine.low %v2121, %v2122
        %v2616 = vunpack.c.l.s4 1983009808
        %v2617 = vunpack.c.0.s8 %v2616
        %v2618 = vlaneseq
        %v2619 = vshrl.u32 %v2618, 7
        %v2620 = vsub.s32 %v2617, %v2619
        %v2621 = vrot.slane %v2614, %v2620
        %v2622 = vcombine.low %v2613, %v2621
        %v2624 = vunpack.c.l.s4 1934713408
        %v2625 = vunpack.c.0.s8 %v2624
        %v2626 = vlaneseq
        %v2627 = vshrl.u32 %v2626, 7
        %v2628 = vsub.s32 %v2625, %v2627
        %v2629 = vrot.slane %v2622, %v2628
        %v2630 = vcombine.high %v2629, 0
        %v2631 = vcombine.low %v2147, %v2154
        %v2633 = vunpack.c.l.s4 1983009808
        %v2634 = vunpack.c.0.s8 %v2633
        %v2635 = vlaneseq
        %v2636 = vshrl.u32 %v2635, 7
        %v2637 = vsub.s32 %v2634, %v2636
        %v2638 = vrot.slane %v2631, %v2637
        %v2639 = vcombine.low %v2155, %v2156
        %v2641 = vunpack.c.l.s4 1983009808
        %v2642 = vunpack.c.0.s8 %v2641
        %v2643 = vlaneseq
        %v2644 = vshrl.u32 %v2643, 7
        %v2645 = vsub.s32 %v2642, %v2644
        %v2646 = vrot.slane %v2639, %v2645
        %v2647 = vcombine.low %v2638, %v2646
        %v2649 = vunpack.c.l.s4 1934713408
        %v2650 = vunpack.c.0.s8 %v2649
        %v2651 = vlaneseq
        %v2652 = vshrl.u32 %v2651, 7
        %v2653 = vsub.s32 %v2650, %v2652
        %v2654 = vrot.slane %v2647, %v2653
        %v2655 = vcombine.high %v2654, 0
        %v2656 = vcombine.low %v2181, %v2188
        %v2658 = vunpack.c.l.s4 1983009808
        %v2659 = vunpack.c.0.s8 %v2658
        %v2660 = vlaneseq
        %v2661 = vshrl.u32 %v2660, 7
        %v2662 = vsub.s32 %v2659, %v2661
        %v2663 = vrot.slane %v2656, %v2662
        %v2664 = vcombine.low %v2189, %v2190
        %v2666 = vunpack.c.l.s4 1983009808
        %v2667 = vunpack.c.0.s8 %v2666
        %v2668 = vlaneseq
        %v2669 = vshrl.u32 %v2668, 7
        %v2670 = vsub.s32 %v2667, %v2669
        %v2671 = vrot.slane %v2664, %v2670
        %v2672 = vcombine.low %v2663, %v2671
        %v2674 = vunpack.c.l.s4 1934713408
        %v2675 = vunpack.c.0.s8 %v2674
        %v2676 = vlaneseq
        %v2677 = vshrl.u32 %v2676, 7
        %v2678 = vsub.s32 %v2675, %v2677
        %v2679 = vrot.slane %v2672, %v2678
        %v2680 = vcombine.high %v2679, 0
        %v2681 = vcombine.low %v2215, %v2222
        %v2683 = vunpack.c.l.s4 1983009808
        %v2684 = vunpack.c.0.s8 %v2683
        %v2685 = vlaneseq
        %v2686 = vshrl.u32 %v2685, 7
        %v2687 = vsub.s32 %v2684, %v2686
        %v2688 = vrot.slane %v2681, %v2687
        %v2689 = vcombine.low %v2223, %v2224
        %v2691 = vunpack.c.l.s4 1983009808
        %v2692 = vunpack.c.0.s8 %v2691
        %v2693 = vlaneseq
        %v2694 = vshrl.u32 %v2693, 7
        %v2695 = vsub.s32 %v2692, %v2694
        %v2696 = vrot.slane %v2689, %v2695
        %v2697 = vcombine.low %v2688, %v2696
        %v2699 = vunpack.c.l.s4 1934713408
        %v2700 = vunpack.c.0.s8 %v2699
        %v2701 = vlaneseq
        %v2702 = vshrl.u32 %v2701, 7
        %v2703 = vsub.s32 %v2700, %v2702
        %v2704 = vrot.slane %v2697, %v2703
        %v2705 = vcombine.high %v2704, 0
        %v2706 = vcombine.low %v2249, %v2256
        %v2708 = vunpack.c.l.s4 1983009808
        %v2709 = vunpack.c.0.s8 %v2708
        %v2710 = vlaneseq
        %v2711 = vshrl.u32 %v2710, 7
        %v2712 = vsub.s32 %v2709, %v2711
        %v2713 = vrot.slane %v2706, %v2712
        %v2714 = vcombine.low %v2257, %v2258
        %v2716 = vunpack.c.l.s4 1983009808
        %v2717 = vunpack.c.0.s8 %v2716
        %v2718 = vlaneseq
        %v2719 = vshrl.u32 %v2718, 7
        %v2720 = vsub.s32 %v2717, %v2719
        %v2721 = vrot.slane %v2714, %v2720
        %v2722 = vcombine.low %v2713, %v2721
        %v2724 = vunpack.c.l.s4 1934713408
        %v2725 = vunpack.c.0.s8 %v2724
        %v2726 = vlaneseq
        %v2727 = vshrl.u32 %v2726, 7
        %v2728 = vsub.s32 %v2725, %v2727
        %v2729 = vrot.slane %v2722, %v2728
        %v2730 = vcombine.high %v2729, 0
        %v2731 = vcombine.low %v2283, %v2290
        %v2733 = vunpack.c.l.s4 1983009808
        %v2734 = vunpack.c.0.s8 %v2733
        %v2735 = vlaneseq
        %v2736 = vshrl.u32 %v2735, 7
        %v2737 = vsub.s32 %v2734, %v2736
        %v2738 = vrot.slane %v2731, %v2737
        %v2739 = vcombine.low %v2291, %v2292
        %v2741 = vunpack.c.l.s4 1983009808
        %v2742 = vunpack.c.0.s8 %v2741
        %v2743 = vlaneseq
        %v2744 = vshrl.u32 %v2743, 7
        %v2745 = vsub.s32 %v2742, %v2744
        %v2746 = vrot.slane %v2739, %v2745
        %v2747 = vcombine.low %v2738, %v2746
        %v2749 = vunpack.c.l.s4 1934713408
        %v2750 = vunpack.c.0.s8 %v2749
        %v2751 = vlaneseq
        %v2752 = vshrl.u32 %v2751, 7
        %v2753 = vsub.s32 %v2750, %v2752
        %v2754 = vrot.slane %v2747, %v2753
        %v2755 = vcombine.high %v2754, 0
        %v2756 = vcombine.low %v2317, %v2324
        %v2758 = vunpack.c.l.s4 1983009808
        %v2759 = vunpack.c.0.s8 %v2758
        %v2760 = vlaneseq
        %v2761 = vshrl.u32 %v2760, 7
        %v2762 = vsub.s32 %v2759, %v2761
        %v2763 = vrot.slane %v2756, %v2762
        %v2764 = vcombine.low %v2325, %v2326
        %v2766 = vunpack.c.l.s4 1983009808
        %v2767 = vunpack.c.0.s8 %v2766
        %v2768 = vlaneseq
        %v2769 = vshrl.u32 %v2768, 7
        %v2770 = vsub.s32 %v2767, %v2769
        %v2771 = vrot.slane %v2764, %v2770
        %v2772 = vcombine.low %v2763, %v2771
        %v2774 = vunpack.c.l.s4 1934713408
        %v2775 = vunpack.c.0.s8 %v2774
        %v2776 = vlaneseq
        %v2777 = vshrl.u32 %v2776, 7
        %v2778 = vsub.s32 %v2775, %v2777
        %v2779 = vrot.slane %v2772, %v2778
        %v2780 = vcombine.high %v2779, 0
        %v2781 = vcombine.low %v2351, %v2358
        %v2783 = vunpack.c.l.s4 1983009808
        %v2784 = vunpack.c.0.s8 %v2783
        %v2785 = vlaneseq
        %v2786 = vshrl.u32 %v2785, 7
        %v2787 = vsub.s32 %v2784, %v2786
        %v2788 = vrot.slane %v2781, %v2787
        %v2789 = vcombine.low %v2359, %v2360
        %v2791 = vunpack.c.l.s4 1983009808
        %v2792 = vunpack.c.0.s8 %v2791
        %v2793 = vlaneseq
        %v2794 = vshrl.u32 %v2793, 7
        %v2795 = vsub.s32 %v2792, %v2794
        %v2796 = vrot.slane %v2789, %v2795
        %v2797 = vcombine.low %v2788, %v2796
        %v2799 = vunpack.c.l.s4 1934713408
        %v2800 = vunpack.c.0.s8 %v2799
        %v2801 = vlaneseq
        %v2802 = vshrl.u32 %v2801, 7
        %v2803 = vsub.s32 %v2800, %v2802
        %v2804 = vrot.slane %v2797, %v2803
        %v2805 = vcombine.high %v2804, 0
        %v2806 = vcombine.low %v2385, %v2392
        %v2808 = vunpack.c.l.s4 1983009808
        %v2809 = vunpack.c.0.s8 %v2808
        %v2810 = vlaneseq
        %v2811 = vshrl.u32 %v2810, 7
        %v2812 = vsub.s32 %v2809, %v2811
        %v2813 = vrot.slane %v2806, %v2812
        %v2814 = vcombine.low %v2393, %v2394
        %v2816 = vunpack.c.l.s4 1983009808
        %v2817 = vunpack.c.0.s8 %v2816
        %v2818 = vlaneseq
        %v2819 = vshrl.u32 %v2818, 7
        %v2820 = vsub.s32 %v2817, %v2819
        %v2821 = vrot.slane %v2814, %v2820
        %v2822 = vcombine.low %v2813, %v2821
        %v2824 = vunpack.c.l.s4 1934713408
        %v2825 = vunpack.c.0.s8 %v2824
        %v2826 = vlaneseq
        %v2827 = vshrl.u32 %v2826, 7
        %v2828 = vsub.s32 %v2825, %v2827
        %v2829 = vrot.slane %v2822, %v2828
        %v2830 = vcombine.high %v2829, 0
        %v2831 = vcombine.low %v2419, %v2426
        %v2833 = vunpack.c.l.s4 1983009808
        %v2834 = vunpack.c.0.s8 %v2833
        %v2835 = vlaneseq
        %v2836 = vshrl.u32 %v2835, 7
        %v2837 = vsub.s32 %v2834, %v2836
        %v2838 = vrot.slane %v2831, %v2837
        %v2839 = vcombine.low %v2427, %v2428
        %v2841 = vunpack.c.l.s4 1983009808
        %v2842 = vunpack.c.0.s8 %v2841
        %v2843 = vlaneseq
        %v2844 = vshrl.u32 %v2843, 7
        %v2845 = vsub.s32 %v2842, %v2844
        %v2846 = vrot.slane %v2839, %v2845
        %v2847 = vcombine.low %v2838, %v2846
        %v2849 = vunpack.c.l.s4 1934713408
        %v2850 = vunpack.c.0.s8 %v2849
        %v2851 = vlaneseq
        %v2852 = vshrl.u32 %v2851, 7
        %v2853 = vsub.s32 %v2850, %v2852
        %v2854 = vrot.slane %v2847, %v2853
        %v2855 = vcombine.high %v2854, 0
        %v2856 = vcombine.low %v2453, %v2460
        %v2858 = vunpack.c.l.s4 1983009808
        %v2859 = vunpack.c.0.s8 %v2858
        %v2860 = vlaneseq
        %v2861 = vshrl.u32 %v2860, 7
        %v2862 = vsub.s32 %v2859, %v2861
        %v2863 = vrot.slane %v2856, %v2862
        %v2864 = vcombine.low %v2461, %v2462
        %v2866 = vunpack.c.l.s4 1983009808
        %v2867 = vunpack.c.0.s8 %v2866
        %v2868 = vlaneseq
        %v2869 = vshrl.u32 %v2868, 7
        %v2870 = vsub.s32 %v2867, %v2869
        %v2871 = vrot.slane %v2864, %v2870
        %v2872 = vcombine.low %v2863, %v2871
        %v2874 = vunpack.c.l.s4 1934713408
        %v2875 = vunpack.c.0.s8 %v2874
        %v2876 = vlaneseq
        %v2877 = vshrl.u32 %v2876, 7
        %v2878 = vsub.s32 %v2875, %v2877
        %v2879 = vrot.slane %v2872, %v2878
        %v2880 = vcombine.high %v2879, 0
        %v2881 = vcombine.low %v2487, %v2494
        %v2883 = vunpack.c.l.s4 1983009808
        %v2884 = vunpack.c.0.s8 %v2883
        %v2885 = vlaneseq
        %v2886 = vshrl.u32 %v2885, 7
        %v2887 = vsub.s32 %v2884, %v2886
        %v2888 = vrot.slane %v2881, %v2887
        %v2889 = vcombine.low %v2495, %v2496
        %v2891 = vunpack.c.l.s4 1983009808
        %v2892 = vunpack.c.0.s8 %v2891
        %v2893 = vlaneseq
        %v2894 = vshrl.u32 %v2893, 7
        %v2895 = vsub.s32 %v2892, %v2894
        %v2896 = vrot.slane %v2889, %v2895
        %v2897 = vcombine.low %v2888, %v2896
        %v2899 = vunpack.c.l.s4 1934713408
        %v2900 = vunpack.c.0.s8 %v2899
        %v2901 = vlaneseq
        %v2902 = vshrl.u32 %v2901, 7
        %v2903 = vsub.s32 %v2900, %v2902
        %v2904 = vrot.slane %v2897, %v2903
        %v2905 = vcombine.high %v2904, 0
        %v2906 = vcombine.low %v2521, %v2528
        %v2908 = vunpack.c.l.s4 1983009808
        %v2909 = vunpack.c.0.s8 %v2908
        %v2910 = vlaneseq
        %v2911 = vshrl.u32 %v2910, 7
        %v2912 = vsub.s32 %v2909, %v2911
        %v2913 = vrot.slane %v2906, %v2912
        %v2914 = vcombine.low %v2529, %v2530
        %v2916 = vunpack.c.l.s4 1983009808
        %v2917 = vunpack.c.0.s8 %v2916
        %v2918 = vlaneseq
        %v2919 = vshrl.u32 %v2918, 7
        %v2920 = vsub.s32 %v2917, %v2919
        %v2921 = vrot.slane %v2914, %v2920
        %v2922 = vcombine.low %v2913, %v2921
        %v2924 = vunpack.c.l.s4 1934713408
        %v2925 = vunpack.c.0.s8 %v2924
        %v2926 = vlaneseq
        %v2927 = vshrl.u32 %v2926, 7
        %v2928 = vsub.s32 %v2925, %v2927
        %v2929 = vrot.slane %v2922, %v2928
        %v2930 = vcombine.high %v2929, 0
        %v2933 = vpack.i.b16 %v2579, %v2554
        %v2934 = vshrl.u32 %v2554, 16
        %v2935 = vshrl.u32 %v2579, 16
        %v2936 = vpack.i.b16 %v2935, %v2934
        %v2939 = vpack.i.b16 %v2580, %v2555
        %v2940 = vshrl.u32 %v2555, 16
        %v2941 = vshrl.u32 %v2580, 16
        %v2942 = vpack.i.b16 %v2941, %v2940
        %v2945 = vpack.i.b16 %v2629, %v2604
        %v2946 = vshrl.u32 %v2604, 16
        %v2947 = vshrl.u32 %v2629, 16
        %v2948 = vpack.i.b16 %v2947, %v2946
        %v2951 = vpack.i.b16 %v2630, %v2605
        %v2952 = vshrl.u32 %v2605, 16
        %v2953 = vshrl.u32 %v2630, 16
        %v2954 = vpack.i.b16 %v2953, %v2952
        %v2957 = vpack.i.b16 %v2679, %v2654
        %v2958 = vshrl.u32 %v2654, 16
        %v2959 = vshrl.u32 %v2679, 16
        %v2960 = vpack.i.b16 %v2959, %v2958
        %v2963 = vpack.i.b16 %v2680, %v2655
        %v2964 = vshrl.u32 %v2655, 16
        %v2965 = vshrl.u32 %v2680, 16
        %v2966 = vpack.i.b16 %v2965, %v2964
        %v2969 = vpack.i.b16 %v2729, %v2704
        %v2970 = vshrl.u32 %v2704, 16
        %v2971 = vshrl.u32 %v2729, 16
        %v2972 = vpack.i.b16 %v2971, %v2970
        %v2975 = vpack.i.b16 %v2730, %v2705
        %v2976 = vshrl.u32 %v2705, 16
        %v2977 = vshrl.u32 %v2730, 16
        %v2978 = vpack.i.b16 %v2977, %v2976
        %v2981 = vpack.i.b16 %v2779, %v2754
        %v2982 = vshrl.u32 %v2754, 16
        %v2983 = vshrl.u32 %v2779, 16
        %v2984 = vpack.i.b16 %v2983, %v2982
        %v2987 = vpack.i.b16 %v2780, %v2755
        %v2988 = vshrl.u32 %v2755, 16
        %v2989 = vshrl.u32 %v2780, 16
        %v2990 = vpack.i.b16 %v2989, %v2988
        %v2993 = vpack.i.b16 %v2829, %v2804
        %v2994 = vshrl.u32 %v2804, 16
        %v2995 = vshrl.u32 %v2829, 16
        %v2996 = vpack.i.b16 %v2995, %v2994
        %v2999 = vpack.i.b16 %v2830, %v2805
        %v3000 = vshrl.u32 %v2805, 16
        %v3001 = vshrl.u32 %v2830, 16
        %v3002 = vpack.i.b16 %v3001, %v3000
        %v3005 = vpack.i.b16 %v2879, %v2854
        %v3006 = vshrl.u32 %v2854, 16
        %v3007 = vshrl.u32 %v2879, 16
        %v3008 = vpack.i.b16 %v3007, %v3006
        %v3011 = vpack.i.b16 %v2880, %v2855
        %v3012 = vshrl.u32 %v2855, 16
        %v3013 = vshrl.u32 %v2880, 16
        %v3014 = vpack.i.b16 %v3013, %v3012
        %v3017 = vpack.i.b16 %v2929, %v2904
        %v3018 = vshrl.u32 %v2904, 16
        %v3019 = vshrl.u32 %v2929, 16
        %v3020 = vpack.i.b16 %v3019, %v3018
        %v3023 = vpack.i.b16 %v2930, %v2905
        %v3024 = vshrl.u32 %v2905, 16
        %v3025 = vshrl.u32 %v2930, 16
        %v3026 = vpack.i.b16 %v3025, %v3024
        %v3027 = vld [vmem:[#allocation3] sm:$0xf]
        %v3028 = vld [vmem:[#allocation3 + $0x4] sm:$0xf]
        %v3029 = vld [vmem:[#allocation3 + $0x8] sm:$0xf]
        %v3030 = vld [vmem:[#allocation3 + $0xc] sm:$0xf]
        %v3031 = vld [vmem:[#allocation3 + $0x10] sm:$0xf]
        %v3032 = vld [vmem:[#allocation3 + $0x14] sm:$0xf]
        %v3033 = vld [vmem:[#allocation3 + $0x18] sm:$0xf]
        %v3034 = vld [vmem:[#allocation3 + $0x1c] sm:$0xf]
        %3043 = vrot.lane.b32.xlu0 %v3027, 96
        %v3044 = vpop.permute.xlu0 %3043
        %3045 = vrot.lane.b32.xlu0 %v3028, 96
        %v3046 = vpop.permute.xlu0 %3045
        %3047 = vrot.lane.b32.xlu0 %v3029, 96
        %v3048 = vpop.permute.xlu0 %3047
        %3049 = vrot.lane.b32.xlu0 %v3030, 96
        %v3050 = vpop.permute.xlu0 %3049
        %3051 = vrot.lane.b32.xlu0 %v3031, 96
        %v3052 = vpop.permute.xlu0 %3051
        %3053 = vrot.lane.b32.xlu0 %v3032, 96
        %v3054 = vpop.permute.xlu0 %3053
        %3055 = vrot.lane.b32.xlu0 %v3033, 96
        %v3056 = vpop.permute.xlu0 %3055
        %3057 = vrot.lane.b32.xlu0 %v3034, 96
        %v3058 = vpop.permute.xlu0 %3057
        %3059 = vrot.lane.b32.xlu0 %v3027, 64
        %v3060 = vpop.permute.xlu0 %3059
        %3061 = vrot.lane.b32.xlu0 %v3028, 64
        %v3062 = vpop.permute.xlu0 %3061
        %3063 = vrot.lane.b32.xlu0 %v3029, 64
        %v3064 = vpop.permute.xlu0 %3063
        %3065 = vrot.lane.b32.xlu0 %v3030, 64
        %v3066 = vpop.permute.xlu0 %3065
        %3067 = vrot.lane.b32.xlu0 %v3031, 64
        %v3068 = vpop.permute.xlu0 %3067
        %3069 = vrot.lane.b32.xlu0 %v3032, 64
        %v3070 = vpop.permute.xlu0 %3069
        %3071 = vrot.lane.b32.xlu0 %v3033, 64
        %v3072 = vpop.permute.xlu0 %3071
        %3073 = vrot.lane.b32.xlu0 %v3034, 64
        %v3074 = vpop.permute.xlu0 %3073
        %3075 = vrot.lane.b32.xlu0 %v3027, 32
        %v3076 = vpop.permute.xlu0 %3075
        %3077 = vrot.lane.b32.xlu0 %v3028, 32
        %v3078 = vpop.permute.xlu0 %3077
        %3079 = vrot.lane.b32.xlu0 %v3029, 32
        %v3080 = vpop.permute.xlu0 %3079
        %3081 = vrot.lane.b32.xlu0 %v3030, 32
        %v3082 = vpop.permute.xlu0 %3081
        %3083 = vrot.lane.b32.xlu0 %v3031, 32
        %v3084 = vpop.permute.xlu0 %3083
        %3085 = vrot.lane.b32.xlu0 %v3032, 32
        %v3086 = vpop.permute.xlu0 %3085
        %3087 = vrot.lane.b32.xlu0 %v3033, 32
        %v3088 = vpop.permute.xlu0 %3087
        %3089 = vrot.lane.b32.xlu0 %v3034, 32
        %v3090 = vpop.permute.xlu0 %3089
        %v3093 = vpack.i.b16 %v3044, %v3027
        %v3094 = vshrl.u32 %v3027, 16
        %v3095 = vshrl.u32 %v3044, 16
        %v3096 = vpack.i.b16 %v3095, %v3094
        %v3099 = vpack.i.b16 %v3076, %v3060
        %v3100 = vshrl.u32 %v3060, 16
        %v3101 = vshrl.u32 %v3076, 16
        %v3102 = vpack.i.b16 %v3101, %v3100
        %v3105 = vpack.i.b16 %v3046, %v3028
        %v3106 = vshrl.u32 %v3028, 16
        %v3107 = vshrl.u32 %v3046, 16
        %v3108 = vpack.i.b16 %v3107, %v3106
        %v3111 = vpack.i.b16 %v3078, %v3062
        %v3112 = vshrl.u32 %v3062, 16
        %v3113 = vshrl.u32 %v3078, 16
        %v3114 = vpack.i.b16 %v3113, %v3112
        %v3117 = vpack.i.b16 %v3048, %v3029
        %v3118 = vshrl.u32 %v3029, 16
        %v3119 = vshrl.u32 %v3048, 16
        %v3120 = vpack.i.b16 %v3119, %v3118
        %v3123 = vpack.i.b16 %v3080, %v3064
        %v3124 = vshrl.u32 %v3064, 16
        %v3125 = vshrl.u32 %v3080, 16
        %v3126 = vpack.i.b16 %v3125, %v3124
        %v3129 = vpack.i.b16 %v3050, %v3030
        %v3130 = vshrl.u32 %v3030, 16
        %v3131 = vshrl.u32 %v3050, 16
        %v3132 = vpack.i.b16 %v3131, %v3130
        %v3135 = vpack.i.b16 %v3082, %v3066
        %v3136 = vshrl.u32 %v3066, 16
        %v3137 = vshrl.u32 %v3082, 16
        %v3138 = vpack.i.b16 %v3137, %v3136
        %v3141 = vpack.i.b16 %v3052, %v3031
        %v3142 = vshrl.u32 %v3031, 16
        %v3143 = vshrl.u32 %v3052, 16
        %v3144 = vpack.i.b16 %v3143, %v3142
        %v3147 = vpack.i.b16 %v3084, %v3068
        %v3148 = vshrl.u32 %v3068, 16
        %v3149 = vshrl.u32 %v3084, 16
        %v3150 = vpack.i.b16 %v3149, %v3148
        %v3153 = vpack.i.b16 %v3054, %v3032
        %v3154 = vshrl.u32 %v3032, 16
        %v3155 = vshrl.u32 %v3054, 16
        %v3156 = vpack.i.b16 %v3155, %v3154
        %v3159 = vpack.i.b16 %v3086, %v3070
        %v3160 = vshrl.u32 %v3070, 16
        %v3161 = vshrl.u32 %v3086, 16
        %v3162 = vpack.i.b16 %v3161, %v3160
        %v3165 = vpack.i.b16 %v3056, %v3033
        %v3166 = vshrl.u32 %v3033, 16
        %v3167 = vshrl.u32 %v3056, 16
        %v3168 = vpack.i.b16 %v3167, %v3166
        %v3171 = vpack.i.b16 %v3088, %v3072
        %v3172 = vshrl.u32 %v3072, 16
        %v3173 = vshrl.u32 %v3088, 16
        %v3174 = vpack.i.b16 %v3173, %v3172
        %v3177 = vpack.i.b16 %v3058, %v3034
        %v3178 = vshrl.u32 %v3034, 16
        %v3179 = vshrl.u32 %v3058, 16
        %v3180 = vpack.i.b16 %v3179, %v3178
        %v3183 = vpack.i.b16 %v3090, %v3074
        %v3184 = vshrl.u32 %v3074, 16
        %v3185 = vshrl.u32 %v3090, 16
        %v3186 = vpack.i.b16 %v3185, %v3184
        %v3189 = vunpack.c.l.s4 1983009808
        %v3190 = vunpack.c.0.s8 %v3189
        %v3191 = vlaneseq
        %v3192 = vshrl.u32 %v3191, 7
        %v3193 = vsub.s32 %v3190, %v3192
        %v3194 = vrot.slane %v3093, %v3193
        %v3197 = vunpack.c.l.s4 1983009808
        %v3198 = vunpack.c.0.s8 %v3197
        %v3199 = vlaneseq
        %v3200 = vshrl.u32 %v3199, 7
        %v3201 = vsub.s32 %v3198, %v3200
        %v3202 = vrot.slane %v3099, %v3201
        %v3203 = vcombine.low %v3194, %v3202
        %v3204 = vcombine.high %v3194, %v3202
        %v3206 = vunpack.c.l.s4 1934713408
        %v3207 = vunpack.c.0.s8 %v3206
        %v3208 = vlaneseq
        %v3209 = vshrl.u32 %v3208, 7
        %v3210 = vsub.s32 %v3207, %v3209
        %v3211 = vrot.slane %v3203, %v3210
        %v3213 = vunpack.c.l.s4 1934713408
        %v3214 = vunpack.c.0.s8 %v3213
        %v3215 = vlaneseq
        %v3216 = vshrl.u32 %v3215, 7
        %v3217 = vsub.s32 %v3214, %v3216
        %v3218 = vrot.slane %v3204, %v3217
        %v3219 = vcombine.high %v3211, 0
        %v3220 = vcombine.high %v3218, 0
        %v3223 = vunpack.c.l.s4 1983009808
        %v3224 = vunpack.c.0.s8 %v3223
        %v3225 = vlaneseq
        %v3226 = vshrl.u32 %v3225, 7
        %v3227 = vsub.s32 %v3224, %v3226
        %v3228 = vrot.slane %v3096, %v3227
        %v3231 = vunpack.c.l.s4 1983009808
        %v3232 = vunpack.c.0.s8 %v3231
        %v3233 = vlaneseq
        %v3234 = vshrl.u32 %v3233, 7
        %v3235 = vsub.s32 %v3232, %v3234
        %v3236 = vrot.slane %v3102, %v3235
        %v3237 = vcombine.low %v3228, %v3236
        %v3238 = vcombine.high %v3228, %v3236
        %v3240 = vunpack.c.l.s4 1934713408
        %v3241 = vunpack.c.0.s8 %v3240
        %v3242 = vlaneseq
        %v3243 = vshrl.u32 %v3242, 7
        %v3244 = vsub.s32 %v3241, %v3243
        %v3245 = vrot.slane %v3237, %v3244
        %v3247 = vunpack.c.l.s4 1934713408
        %v3248 = vunpack.c.0.s8 %v3247
        %v3249 = vlaneseq
        %v3250 = vshrl.u32 %v3249, 7
        %v3251 = vsub.s32 %v3248, %v3250
        %v3252 = vrot.slane %v3238, %v3251
        %v3253 = vcombine.high %v3245, 0
        %v3254 = vcombine.high %v3252, 0
        %v3257 = vunpack.c.l.s4 1983009808
        %v3258 = vunpack.c.0.s8 %v3257
        %v3259 = vlaneseq
        %v3260 = vshrl.u32 %v3259, 7
        %v3261 = vsub.s32 %v3258, %v3260
        %v3262 = vrot.slane %v3105, %v3261
        %v3265 = vunpack.c.l.s4 1983009808
        %v3266 = vunpack.c.0.s8 %v3265
        %v3267 = vlaneseq
        %v3268 = vshrl.u32 %v3267, 7
        %v3269 = vsub.s32 %v3266, %v3268
        %v3270 = vrot.slane %v3111, %v3269
        %v3271 = vcombine.low %v3262, %v3270
        %v3272 = vcombine.high %v3262, %v3270
        %v3274 = vunpack.c.l.s4 1934713408
        %v3275 = vunpack.c.0.s8 %v3274
        %v3276 = vlaneseq
        %v3277 = vshrl.u32 %v3276, 7
        %v3278 = vsub.s32 %v3275, %v3277
        %v3279 = vrot.slane %v3271, %v3278
        %v3281 = vunpack.c.l.s4 1934713408
        %v3282 = vunpack.c.0.s8 %v3281
        %v3283 = vlaneseq
        %v3284 = vshrl.u32 %v3283, 7
        %v3285 = vsub.s32 %v3282, %v3284
        %v3286 = vrot.slane %v3272, %v3285
        %v3287 = vcombine.high %v3279, 0
        %v3288 = vcombine.high %v3286, 0
        %v3291 = vunpack.c.l.s4 1983009808
        %v3292 = vunpack.c.0.s8 %v3291
        %v3293 = vlaneseq
        %v3294 = vshrl.u32 %v3293, 7
        %v3295 = vsub.s32 %v3292, %v3294
        %v3296 = vrot.slane %v3108, %v3295
        %v3299 = vunpack.c.l.s4 1983009808
        %v3300 = vunpack.c.0.s8 %v3299
        %v3301 = vlaneseq
        %v3302 = vshrl.u32 %v3301, 7
        %v3303 = vsub.s32 %v3300, %v3302
        %v3304 = vrot.slane %v3114, %v3303
        %v3305 = vcombine.low %v3296, %v3304
        %v3306 = vcombine.high %v3296, %v3304
        %v3308 = vunpack.c.l.s4 1934713408
        %v3309 = vunpack.c.0.s8 %v3308
        %v3310 = vlaneseq
        %v3311 = vshrl.u32 %v3310, 7
        %v3312 = vsub.s32 %v3309, %v3311
        %v3313 = vrot.slane %v3305, %v3312
        %v3315 = vunpack.c.l.s4 1934713408
        %v3316 = vunpack.c.0.s8 %v3315
        %v3317 = vlaneseq
        %v3318 = vshrl.u32 %v3317, 7
        %v3319 = vsub.s32 %v3316, %v3318
        %v3320 = vrot.slane %v3306, %v3319
        %v3321 = vcombine.high %v3313, 0
        %v3322 = vcombine.high %v3320, 0
        %v3325 = vunpack.c.l.s4 1983009808
        %v3326 = vunpack.c.0.s8 %v3325
        %v3327 = vlaneseq
        %v3328 = vshrl.u32 %v3327, 7
        %v3329 = vsub.s32 %v3326, %v3328
        %v3330 = vrot.slane %v3117, %v3329
        %v3333 = vunpack.c.l.s4 1983009808
        %v3334 = vunpack.c.0.s8 %v3333
        %v3335 = vlaneseq
        %v3336 = vshrl.u32 %v3335, 7
        %v3337 = vsub.s32 %v3334, %v3336
        %v3338 = vrot.slane %v3123, %v3337
        %v3339 = vcombine.low %v3330, %v3338
        %v3340 = vcombine.high %v3330, %v3338
        %v3342 = vunpack.c.l.s4 1934713408
        %v3343 = vunpack.c.0.s8 %v3342
        %v3344 = vlaneseq
        %v3345 = vshrl.u32 %v3344, 7
        %v3346 = vsub.s32 %v3343, %v3345
        %v3347 = vrot.slane %v3339, %v3346
        %v3349 = vunpack.c.l.s4 1934713408
        %v3350 = vunpack.c.0.s8 %v3349
        %v3351 = vlaneseq
        %v3352 = vshrl.u32 %v3351, 7
        %v3353 = vsub.s32 %v3350, %v3352
        %v3354 = vrot.slane %v3340, %v3353
        %v3355 = vcombine.high %v3347, 0
        %v3356 = vcombine.high %v3354, 0
        %v3359 = vunpack.c.l.s4 1983009808
        %v3360 = vunpack.c.0.s8 %v3359
        %v3361 = vlaneseq
        %v3362 = vshrl.u32 %v3361, 7
        %v3363 = vsub.s32 %v3360, %v3362
        %v3364 = vrot.slane %v3120, %v3363
        %v3367 = vunpack.c.l.s4 1983009808
        %v3368 = vunpack.c.0.s8 %v3367
        %v3369 = vlaneseq
        %v3370 = vshrl.u32 %v3369, 7
        %v3371 = vsub.s32 %v3368, %v3370
        %v3372 = vrot.slane %v3126, %v3371
        %v3373 = vcombine.low %v3364, %v3372
        %v3374 = vcombine.high %v3364, %v3372
        %v3376 = vunpack.c.l.s4 1934713408
        %v3377 = vunpack.c.0.s8 %v3376
        %v3378 = vlaneseq
        %v3379 = vshrl.u32 %v3378, 7
        %v3380 = vsub.s32 %v3377, %v3379
        %v3381 = vrot.slane %v3373, %v3380
        %v3383 = vunpack.c.l.s4 1934713408
        %v3384 = vunpack.c.0.s8 %v3383
        %v3385 = vlaneseq
        %v3386 = vshrl.u32 %v3385, 7
        %v3387 = vsub.s32 %v3384, %v3386
        %v3388 = vrot.slane %v3374, %v3387
        %v3389 = vcombine.high %v3381, 0
        %v3390 = vcombine.high %v3388, 0
        %v3393 = vunpack.c.l.s4 1983009808
        %v3394 = vunpack.c.0.s8 %v3393
        %v3395 = vlaneseq
        %v3396 = vshrl.u32 %v3395, 7
        %v3397 = vsub.s32 %v3394, %v3396
        %v3398 = vrot.slane %v3129, %v3397
        %v3401 = vunpack.c.l.s4 1983009808
        %v3402 = vunpack.c.0.s8 %v3401
        %v3403 = vlaneseq
        %v3404 = vshrl.u32 %v3403, 7
        %v3405 = vsub.s32 %v3402, %v3404
        %v3406 = vrot.slane %v3135, %v3405
        %v3407 = vcombine.low %v3398, %v3406
        %v3408 = vcombine.high %v3398, %v3406
        %v3410 = vunpack.c.l.s4 1934713408
        %v3411 = vunpack.c.0.s8 %v3410
        %v3412 = vlaneseq
        %v3413 = vshrl.u32 %v3412, 7
        %v3414 = vsub.s32 %v3411, %v3413
        %v3415 = vrot.slane %v3407, %v3414
        %v3417 = vunpack.c.l.s4 1934713408
        %v3418 = vunpack.c.0.s8 %v3417
        %v3419 = vlaneseq
        %v3420 = vshrl.u32 %v3419, 7
        %v3421 = vsub.s32 %v3418, %v3420
        %v3422 = vrot.slane %v3408, %v3421
        %v3423 = vcombine.high %v3415, 0
        %v3424 = vcombine.high %v3422, 0
        %v3427 = vunpack.c.l.s4 1983009808
        %v3428 = vunpack.c.0.s8 %v3427
        %v3429 = vlaneseq
        %v3430 = vshrl.u32 %v3429, 7
        %v3431 = vsub.s32 %v3428, %v3430
        %v3432 = vrot.slane %v3132, %v3431
        %v3435 = vunpack.c.l.s4 1983009808
        %v3436 = vunpack.c.0.s8 %v3435
        %v3437 = vlaneseq
        %v3438 = vshrl.u32 %v3437, 7
        %v3439 = vsub.s32 %v3436, %v3438
        %v3440 = vrot.slane %v3138, %v3439
        %v3441 = vcombine.low %v3432, %v3440
        %v3442 = vcombine.high %v3432, %v3440
        %v3444 = vunpack.c.l.s4 1934713408
        %v3445 = vunpack.c.0.s8 %v3444
        %v3446 = vlaneseq
        %v3447 = vshrl.u32 %v3446, 7
        %v3448 = vsub.s32 %v3445, %v3447
        %v3449 = vrot.slane %v3441, %v3448
        %v3451 = vunpack.c.l.s4 1934713408
        %v3452 = vunpack.c.0.s8 %v3451
        %v3453 = vlaneseq
        %v3454 = vshrl.u32 %v3453, 7
        %v3455 = vsub.s32 %v3452, %v3454
        %v3456 = vrot.slane %v3442, %v3455
        %v3457 = vcombine.high %v3449, 0
        %v3458 = vcombine.high %v3456, 0
        %v3461 = vunpack.c.l.s4 1983009808
        %v3462 = vunpack.c.0.s8 %v3461
        %v3463 = vlaneseq
        %v3464 = vshrl.u32 %v3463, 7
        %v3465 = vsub.s32 %v3462, %v3464
        %v3466 = vrot.slane %v3141, %v3465
        %v3469 = vunpack.c.l.s4 1983009808
        %v3470 = vunpack.c.0.s8 %v3469
        %v3471 = vlaneseq
        %v3472 = vshrl.u32 %v3471, 7
        %v3473 = vsub.s32 %v3470, %v3472
        %v3474 = vrot.slane %v3147, %v3473
        %v3475 = vcombine.low %v3466, %v3474
        %v3476 = vcombine.high %v3466, %v3474
        %v3478 = vunpack.c.l.s4 1934713408
        %v3479 = vunpack.c.0.s8 %v3478
        %v3480 = vlaneseq
        %v3481 = vshrl.u32 %v3480, 7
        %v3482 = vsub.s32 %v3479, %v3481
        %v3483 = vrot.slane %v3475, %v3482
        %v3485 = vunpack.c.l.s4 1934713408
        %v3486 = vunpack.c.0.s8 %v3485
        %v3487 = vlaneseq
        %v3488 = vshrl.u32 %v3487, 7
        %v3489 = vsub.s32 %v3486, %v3488
        %v3490 = vrot.slane %v3476, %v3489
        %v3491 = vcombine.high %v3483, 0
        %v3492 = vcombine.high %v3490, 0
        %v3495 = vunpack.c.l.s4 1983009808
        %v3496 = vunpack.c.0.s8 %v3495
        %v3497 = vlaneseq
        %v3498 = vshrl.u32 %v3497, 7
        %v3499 = vsub.s32 %v3496, %v3498
        %v3500 = vrot.slane %v3144, %v3499
        %v3503 = vunpack.c.l.s4 1983009808
        %v3504 = vunpack.c.0.s8 %v3503
        %v3505 = vlaneseq
        %v3506 = vshrl.u32 %v3505, 7
        %v3507 = vsub.s32 %v3504, %v3506
        %v3508 = vrot.slane %v3150, %v3507
        %v3509 = vcombine.low %v3500, %v3508
        %v3510 = vcombine.high %v3500, %v3508
        %v3512 = vunpack.c.l.s4 1934713408
        %v3513 = vunpack.c.0.s8 %v3512
        %v3514 = vlaneseq
        %v3515 = vshrl.u32 %v3514, 7
        %v3516 = vsub.s32 %v3513, %v3515
        %v3517 = vrot.slane %v3509, %v3516
        %v3519 = vunpack.c.l.s4 1934713408
        %v3520 = vunpack.c.0.s8 %v3519
        %v3521 = vlaneseq
        %v3522 = vshrl.u32 %v3521, 7
        %v3523 = vsub.s32 %v3520, %v3522
        %v3524 = vrot.slane %v3510, %v3523
        %v3525 = vcombine.high %v3517, 0
        %v3526 = vcombine.high %v3524, 0
        %v3529 = vunpack.c.l.s4 1983009808
        %v3530 = vunpack.c.0.s8 %v3529
        %v3531 = vlaneseq
        %v3532 = vshrl.u32 %v3531, 7
        %v3533 = vsub.s32 %v3530, %v3532
        %v3534 = vrot.slane %v3153, %v3533
        %v3537 = vunpack.c.l.s4 1983009808
        %v3538 = vunpack.c.0.s8 %v3537
        %v3539 = vlaneseq
        %v3540 = vshrl.u32 %v3539, 7
        %v3541 = vsub.s32 %v3538, %v3540
        %v3542 = vrot.slane %v3159, %v3541
        %v3543 = vcombine.low %v3534, %v3542
        %v3544 = vcombine.high %v3534, %v3542
        %v3546 = vunpack.c.l.s4 1934713408
        %v3547 = vunpack.c.0.s8 %v3546
        %v3548 = vlaneseq
        %v3549 = vshrl.u32 %v3548, 7
        %v3550 = vsub.s32 %v3547, %v3549
        %v3551 = vrot.slane %v3543, %v3550
        %v3553 = vunpack.c.l.s4 1934713408
        %v3554 = vunpack.c.0.s8 %v3553
        %v3555 = vlaneseq
        %v3556 = vshrl.u32 %v3555, 7
        %v3557 = vsub.s32 %v3554, %v3556
        %v3558 = vrot.slane %v3544, %v3557
        %v3559 = vcombine.high %v3551, 0
        %v3560 = vcombine.high %v3558, 0
        %v3563 = vunpack.c.l.s4 1983009808
        %v3564 = vunpack.c.0.s8 %v3563
        %v3565 = vlaneseq
        %v3566 = vshrl.u32 %v3565, 7
        %v3567 = vsub.s32 %v3564, %v3566
        %v3568 = vrot.slane %v3156, %v3567
        %v3571 = vunpack.c.l.s4 1983009808
        %v3572 = vunpack.c.0.s8 %v3571
        %v3573 = vlaneseq
        %v3574 = vshrl.u32 %v3573, 7
        %v3575 = vsub.s32 %v3572, %v3574
        %v3576 = vrot.slane %v3162, %v3575
        %v3577 = vcombine.low %v3568, %v3576
        %v3578 = vcombine.high %v3568, %v3576
        %v3580 = vunpack.c.l.s4 1934713408
        %v3581 = vunpack.c.0.s8 %v3580
        %v3582 = vlaneseq
        %v3583 = vshrl.u32 %v3582, 7
        %v3584 = vsub.s32 %v3581, %v3583
        %v3585 = vrot.slane %v3577, %v3584
        %v3587 = vunpack.c.l.s4 1934713408
        %v3588 = vunpack.c.0.s8 %v3587
        %v3589 = vlaneseq
        %v3590 = vshrl.u32 %v3589, 7
        %v3591 = vsub.s32 %v3588, %v3590
        %v3592 = vrot.slane %v3578, %v3591
        %v3593 = vcombine.high %v3585, 0
        %v3594 = vcombine.high %v3592, 0
        %v3597 = vunpack.c.l.s4 1983009808
        %v3598 = vunpack.c.0.s8 %v3597
        %v3599 = vlaneseq
        %v3600 = vshrl.u32 %v3599, 7
        %v3601 = vsub.s32 %v3598, %v3600
        %v3602 = vrot.slane %v3165, %v3601
        %v3605 = vunpack.c.l.s4 1983009808
        %v3606 = vunpack.c.0.s8 %v3605
        %v3607 = vlaneseq
        %v3608 = vshrl.u32 %v3607, 7
        %v3609 = vsub.s32 %v3606, %v3608
        %v3610 = vrot.slane %v3171, %v3609
        %v3611 = vcombine.low %v3602, %v3610
        %v3612 = vcombine.high %v3602, %v3610
        %v3614 = vunpack.c.l.s4 1934713408
        %v3615 = vunpack.c.0.s8 %v3614
        %v3616 = vlaneseq
        %v3617 = vshrl.u32 %v3616, 7
        %v3618 = vsub.s32 %v3615, %v3617
        %v3619 = vrot.slane %v3611, %v3618
        %v3621 = vunpack.c.l.s4 1934713408
        %v3622 = vunpack.c.0.s8 %v3621
        %v3623 = vlaneseq
        %v3624 = vshrl.u32 %v3623, 7
        %v3625 = vsub.s32 %v3622, %v3624
        %v3626 = vrot.slane %v3612, %v3625
        %v3627 = vcombine.high %v3619, 0
        %v3628 = vcombine.high %v3626, 0
        %v3631 = vunpack.c.l.s4 1983009808
        %v3632 = vunpack.c.0.s8 %v3631
        %v3633 = vlaneseq
        %v3634 = vshrl.u32 %v3633, 7
        %v3635 = vsub.s32 %v3632, %v3634
        %v3636 = vrot.slane %v3168, %v3635
        %v3639 = vunpack.c.l.s4 1983009808
        %v3640 = vunpack.c.0.s8 %v3639
        %v3641 = vlaneseq
        %v3642 = vshrl.u32 %v3641, 7
        %v3643 = vsub.s32 %v3640, %v3642
        %v3644 = vrot.slane %v3174, %v3643
        %v3645 = vcombine.low %v3636, %v3644
        %v3646 = vcombine.high %v3636, %v3644
        %v3648 = vunpack.c.l.s4 1934713408
        %v3649 = vunpack.c.0.s8 %v3648
        %v3650 = vlaneseq
        %v3651 = vshrl.u32 %v3650, 7
        %v3652 = vsub.s32 %v3649, %v3651
        %v3653 = vrot.slane %v3645, %v3652
        %v3655 = vunpack.c.l.s4 1934713408
        %v3656 = vunpack.c.0.s8 %v3655
        %v3657 = vlaneseq
        %v3658 = vshrl.u32 %v3657, 7
        %v3659 = vsub.s32 %v3656, %v3658
        %v3660 = vrot.slane %v3646, %v3659
        %v3661 = vcombine.high %v3653, 0
        %v3662 = vcombine.high %v3660, 0
        %v3665 = vunpack.c.l.s4 1983009808
        %v3666 = vunpack.c.0.s8 %v3665
        %v3667 = vlaneseq
        %v3668 = vshrl.u32 %v3667, 7
        %v3669 = vsub.s32 %v3666, %v3668
        %v3670 = vrot.slane %v3177, %v3669
        %v3673 = vunpack.c.l.s4 1983009808
        %v3674 = vunpack.c.0.s8 %v3673
        %v3675 = vlaneseq
        %v3676 = vshrl.u32 %v3675, 7
        %v3677 = vsub.s32 %v3674, %v3676
        %v3678 = vrot.slane %v3183, %v3677
        %v3679 = vcombine.low %v3670, %v3678
        %v3680 = vcombine.high %v3670, %v3678
        %v3682 = vunpack.c.l.s4 1934713408
        %v3683 = vunpack.c.0.s8 %v3682
        %v3684 = vlaneseq
        %v3685 = vshrl.u32 %v3684, 7
        %v3686 = vsub.s32 %v3683, %v3685
        %v3687 = vrot.slane %v3679, %v3686
        %v3689 = vunpack.c.l.s4 1934713408
        %v3690 = vunpack.c.0.s8 %v3689
        %v3691 = vlaneseq
        %v3692 = vshrl.u32 %v3691, 7
        %v3693 = vsub.s32 %v3690, %v3692
        %v3694 = vrot.slane %v3680, %v3693
        %v3695 = vcombine.high %v3687, 0
        %v3696 = vcombine.high %v3694, 0
        %v3699 = vunpack.c.l.s4 1983009808
        %v3700 = vunpack.c.0.s8 %v3699
        %v3701 = vlaneseq
        %v3702 = vshrl.u32 %v3701, 7
        %v3703 = vsub.s32 %v3700, %v3702
        %v3704 = vrot.slane %v3180, %v3703
        %v3707 = vunpack.c.l.s4 1983009808
        %v3708 = vunpack.c.0.s8 %v3707
        %v3709 = vlaneseq
        %v3710 = vshrl.u32 %v3709, 7
        %v3711 = vsub.s32 %v3708, %v3710
        %v3712 = vrot.slane %v3186, %v3711
        %v3713 = vcombine.low %v3704, %v3712
        %v3714 = vcombine.high %v3704, %v3712
        %v3716 = vunpack.c.l.s4 1934713408
        %v3717 = vunpack.c.0.s8 %v3716
        %v3718 = vlaneseq
        %v3719 = vshrl.u32 %v3718, 7
        %v3720 = vsub.s32 %v3717, %v3719
        %v3721 = vrot.slane %v3713, %v3720
        %v3723 = vunpack.c.l.s4 1934713408
        %v3724 = vunpack.c.0.s8 %v3723
        %v3725 = vlaneseq
        %v3726 = vshrl.u32 %v3725, 7
        %v3727 = vsub.s32 %v3724, %v3726
        %v3728 = vrot.slane %v3714, %v3727
        %v3729 = vcombine.high %v3721, 0
        %v3730 = vcombine.high %v3728, 0
        %v3731 = vcombine.low %v3211, %v3218
        %v3733 = vunpack.c.l.s4 1983009808
        %v3734 = vunpack.c.0.s8 %v3733
        %v3735 = vlaneseq
        %v3736 = vshrl.u32 %v3735, 7
        %v3737 = vsub.s32 %v3734, %v3736
        %v3738 = vrot.slane %v3731, %v3737
        %v3739 = vcombine.low %v3219, %v3220
        %v3741 = vunpack.c.l.s4 1983009808
        %v3742 = vunpack.c.0.s8 %v3741
        %v3743 = vlaneseq
        %v3744 = vshrl.u32 %v3743, 7
        %v3745 = vsub.s32 %v3742, %v3744
        %v3746 = vrot.slane %v3739, %v3745
        %v3747 = vcombine.low %v3738, %v3746
        %v3749 = vunpack.c.l.s4 1934713408
        %v3750 = vunpack.c.0.s8 %v3749
        %v3751 = vlaneseq
        %v3752 = vshrl.u32 %v3751, 7
        %v3753 = vsub.s32 %v3750, %v3752
        %v3754 = vrot.slane %v3747, %v3753
        %v3755 = vcombine.high %v3754, 0
        %v3756 = vcombine.low %v3245, %v3252
        %v3758 = vunpack.c.l.s4 1983009808
        %v3759 = vunpack.c.0.s8 %v3758
        %v3760 = vlaneseq
        %v3761 = vshrl.u32 %v3760, 7
        %v3762 = vsub.s32 %v3759, %v3761
        %v3763 = vrot.slane %v3756, %v3762
        %v3764 = vcombine.low %v3253, %v3254
        %v3766 = vunpack.c.l.s4 1983009808
        %v3767 = vunpack.c.0.s8 %v3766
        %v3768 = vlaneseq
        %v3769 = vshrl.u32 %v3768, 7
        %v3770 = vsub.s32 %v3767, %v3769
        %v3771 = vrot.slane %v3764, %v3770
        %v3772 = vcombine.low %v3763, %v3771
        %v3774 = vunpack.c.l.s4 1934713408
        %v3775 = vunpack.c.0.s8 %v3774
        %v3776 = vlaneseq
        %v3777 = vshrl.u32 %v3776, 7
        %v3778 = vsub.s32 %v3775, %v3777
        %v3779 = vrot.slane %v3772, %v3778
        %v3780 = vcombine.high %v3779, 0
        %v3781 = vcombine.low %v3279, %v3286
        %v3783 = vunpack.c.l.s4 1983009808
        %v3784 = vunpack.c.0.s8 %v3783
        %v3785 = vlaneseq
        %v3786 = vshrl.u32 %v3785, 7
        %v3787 = vsub.s32 %v3784, %v3786
        %v3788 = vrot.slane %v3781, %v3787
        %v3789 = vcombine.low %v3287, %v3288
        %v3791 = vunpack.c.l.s4 1983009808
        %v3792 = vunpack.c.0.s8 %v3791
        %v3793 = vlaneseq
        %v3794 = vshrl.u32 %v3793, 7
        %v3795 = vsub.s32 %v3792, %v3794
        %v3796 = vrot.slane %v3789, %v3795
        %v3797 = vcombine.low %v3788, %v3796
        %v3799 = vunpack.c.l.s4 1934713408
        %v3800 = vunpack.c.0.s8 %v3799
        %v3801 = vlaneseq
        %v3802 = vshrl.u32 %v3801, 7
        %v3803 = vsub.s32 %v3800, %v3802
        %v3804 = vrot.slane %v3797, %v3803
        %v3805 = vcombine.high %v3804, 0
        %v3806 = vcombine.low %v3313, %v3320
        %v3808 = vunpack.c.l.s4 1983009808
        %v3809 = vunpack.c.0.s8 %v3808
        %v3810 = vlaneseq
        %v3811 = vshrl.u32 %v3810, 7
        %v3812 = vsub.s32 %v3809, %v3811
        %v3813 = vrot.slane %v3806, %v3812
        %v3814 = vcombine.low %v3321, %v3322
        %v3816 = vunpack.c.l.s4 1983009808
        %v3817 = vunpack.c.0.s8 %v3816
        %v3818 = vlaneseq
        %v3819 = vshrl.u32 %v3818, 7
        %v3820 = vsub.s32 %v3817, %v3819
        %v3821 = vrot.slane %v3814, %v3820
        %v3822 = vcombine.low %v3813, %v3821
        %v3824 = vunpack.c.l.s4 1934713408
        %v3825 = vunpack.c.0.s8 %v3824
        %v3826 = vlaneseq
        %v3827 = vshrl.u32 %v3826, 7
        %v3828 = vsub.s32 %v3825, %v3827
        %v3829 = vrot.slane %v3822, %v3828
        %v3830 = vcombine.high %v3829, 0
        %v3831 = vcombine.low %v3347, %v3354
        %v3833 = vunpack.c.l.s4 1983009808
        %v3834 = vunpack.c.0.s8 %v3833
        %v3835 = vlaneseq
        %v3836 = vshrl.u32 %v3835, 7
        %v3837 = vsub.s32 %v3834, %v3836
        %v3838 = vrot.slane %v3831, %v3837
        %v3839 = vcombine.low %v3355, %v3356
        %v3841 = vunpack.c.l.s4 1983009808
        %v3842 = vunpack.c.0.s8 %v3841
        %v3843 = vlaneseq
        %v3844 = vshrl.u32 %v3843, 7
        %v3845 = vsub.s32 %v3842, %v3844
        %v3846 = vrot.slane %v3839, %v3845
        %v3847 = vcombine.low %v3838, %v3846
        %v3849 = vunpack.c.l.s4 1934713408
        %v3850 = vunpack.c.0.s8 %v3849
        %v3851 = vlaneseq
        %v3852 = vshrl.u32 %v3851, 7
        %v3853 = vsub.s32 %v3850, %v3852
        %v3854 = vrot.slane %v3847, %v3853
        %v3855 = vcombine.high %v3854, 0
        %v3856 = vcombine.low %v3381, %v3388
        %v3858 = vunpack.c.l.s4 1983009808
        %v3859 = vunpack.c.0.s8 %v3858
        %v3860 = vlaneseq
        %v3861 = vshrl.u32 %v3860, 7
        %v3862 = vsub.s32 %v3859, %v3861
        %v3863 = vrot.slane %v3856, %v3862
        %v3864 = vcombine.low %v3389, %v3390
        %v3866 = vunpack.c.l.s4 1983009808
        %v3867 = vunpack.c.0.s8 %v3866
        %v3868 = vlaneseq
        %v3869 = vshrl.u32 %v3868, 7
        %v3870 = vsub.s32 %v3867, %v3869
        %v3871 = vrot.slane %v3864, %v3870
        %v3872 = vcombine.low %v3863, %v3871
        %v3874 = vunpack.c.l.s4 1934713408
        %v3875 = vunpack.c.0.s8 %v3874
        %v3876 = vlaneseq
        %v3877 = vshrl.u32 %v3876, 7
        %v3878 = vsub.s32 %v3875, %v3877
        %v3879 = vrot.slane %v3872, %v3878
        %v3880 = vcombine.high %v3879, 0
        %v3881 = vcombine.low %v3415, %v3422
        %v3883 = vunpack.c.l.s4 1983009808
        %v3884 = vunpack.c.0.s8 %v3883
        %v3885 = vlaneseq
        %v3886 = vshrl.u32 %v3885, 7
        %v3887 = vsub.s32 %v3884, %v3886
        %v3888 = vrot.slane %v3881, %v3887
        %v3889 = vcombine.low %v3423, %v3424
        %v3891 = vunpack.c.l.s4 1983009808
        %v3892 = vunpack.c.0.s8 %v3891
        %v3893 = vlaneseq
        %v3894 = vshrl.u32 %v3893, 7
        %v3895 = vsub.s32 %v3892, %v3894
        %v3896 = vrot.slane %v3889, %v3895
        %v3897 = vcombine.low %v3888, %v3896
        %v3899 = vunpack.c.l.s4 1934713408
        %v3900 = vunpack.c.0.s8 %v3899
        %v3901 = vlaneseq
        %v3902 = vshrl.u32 %v3901, 7
        %v3903 = vsub.s32 %v3900, %v3902
        %v3904 = vrot.slane %v3897, %v3903
        %v3905 = vcombine.high %v3904, 0
        %v3906 = vcombine.low %v3449, %v3456
        %v3908 = vunpack.c.l.s4 1983009808
        %v3909 = vunpack.c.0.s8 %v3908
        %v3910 = vlaneseq
        %v3911 = vshrl.u32 %v3910, 7
        %v3912 = vsub.s32 %v3909, %v3911
        %v3913 = vrot.slane %v3906, %v3912
        %v3914 = vcombine.low %v3457, %v3458
        %v3916 = vunpack.c.l.s4 1983009808
        %v3917 = vunpack.c.0.s8 %v3916
        %v3918 = vlaneseq
        %v3919 = vshrl.u32 %v3918, 7
        %v3920 = vsub.s32 %v3917, %v3919
        %v3921 = vrot.slane %v3914, %v3920
        %v3922 = vcombine.low %v3913, %v3921
        %v3924 = vunpack.c.l.s4 1934713408
        %v3925 = vunpack.c.0.s8 %v3924
        %v3926 = vlaneseq
        %v3927 = vshrl.u32 %v3926, 7
        %v3928 = vsub.s32 %v3925, %v3927
        %v3929 = vrot.slane %v3922, %v3928
        %v3930 = vcombine.high %v3929, 0
        %v3931 = vcombine.low %v3483, %v3490
        %v3933 = vunpack.c.l.s4 1983009808
        %v3934 = vunpack.c.0.s8 %v3933
        %v3935 = vlaneseq
        %v3936 = vshrl.u32 %v3935, 7
        %v3937 = vsub.s32 %v3934, %v3936
        %v3938 = vrot.slane %v3931, %v3937
        %v3939 = vcombine.low %v3491, %v3492
        %v3941 = vunpack.c.l.s4 1983009808
        %v3942 = vunpack.c.0.s8 %v3941
        %v3943 = vlaneseq
        %v3944 = vshrl.u32 %v3943, 7
        %v3945 = vsub.s32 %v3942, %v3944
        %v3946 = vrot.slane %v3939, %v3945
        %v3947 = vcombine.low %v3938, %v3946
        %v3949 = vunpack.c.l.s4 1934713408
        %v3950 = vunpack.c.0.s8 %v3949
        %v3951 = vlaneseq
        %v3952 = vshrl.u32 %v3951, 7
        %v3953 = vsub.s32 %v3950, %v3952
        %v3954 = vrot.slane %v3947, %v3953
        %v3955 = vcombine.high %v3954, 0
        %v3956 = vcombine.low %v3517, %v3524
        %v3958 = vunpack.c.l.s4 1983009808
        %v3959 = vunpack.c.0.s8 %v3958
        %v3960 = vlaneseq
        %v3961 = vshrl.u32 %v3960, 7
        %v3962 = vsub.s32 %v3959, %v3961
        %v3963 = vrot.slane %v3956, %v3962
        %v3964 = vcombine.low %v3525, %v3526
        %v3966 = vunpack.c.l.s4 1983009808
        %v3967 = vunpack.c.0.s8 %v3966
        %v3968 = vlaneseq
        %v3969 = vshrl.u32 %v3968, 7
        %v3970 = vsub.s32 %v3967, %v3969
        %v3971 = vrot.slane %v3964, %v3970
        %v3972 = vcombine.low %v3963, %v3971
        %v3974 = vunpack.c.l.s4 1934713408
        %v3975 = vunpack.c.0.s8 %v3974
        %v3976 = vlaneseq
        %v3977 = vshrl.u32 %v3976, 7
        %v3978 = vsub.s32 %v3975, %v3977
        %v3979 = vrot.slane %v3972, %v3978
        %v3980 = vcombine.high %v3979, 0
        %v3981 = vcombine.low %v3551, %v3558
        %v3983 = vunpack.c.l.s4 1983009808
        %v3984 = vunpack.c.0.s8 %v3983
        %v3985 = vlaneseq
        %v3986 = vshrl.u32 %v3985, 7
        %v3987 = vsub.s32 %v3984, %v3986
        %v3988 = vrot.slane %v3981, %v3987
        %v3989 = vcombine.low %v3559, %v3560
        %v3991 = vunpack.c.l.s4 1983009808
        %v3992 = vunpack.c.0.s8 %v3991
        %v3993 = vlaneseq
        %v3994 = vshrl.u32 %v3993, 7
        %v3995 = vsub.s32 %v3992, %v3994
        %v3996 = vrot.slane %v3989, %v3995
        %v3997 = vcombine.low %v3988, %v3996
        %v3999 = vunpack.c.l.s4 1934713408
        %v4000 = vunpack.c.0.s8 %v3999
        %v4001 = vlaneseq
        %v4002 = vshrl.u32 %v4001, 7
        %v4003 = vsub.s32 %v4000, %v4002
        %v4004 = vrot.slane %v3997, %v4003
        %v4005 = vcombine.high %v4004, 0
        %v4006 = vcombine.low %v3585, %v3592
        %v4008 = vunpack.c.l.s4 1983009808
        %v4009 = vunpack.c.0.s8 %v4008
        %v4010 = vlaneseq
        %v4011 = vshrl.u32 %v4010, 7
        %v4012 = vsub.s32 %v4009, %v4011
        %v4013 = vrot.slane %v4006, %v4012
        %v4014 = vcombine.low %v3593, %v3594
        %v4016 = vunpack.c.l.s4 1983009808
        %v4017 = vunpack.c.0.s8 %v4016
        %v4018 = vlaneseq
        %v4019 = vshrl.u32 %v4018, 7
        %v4020 = vsub.s32 %v4017, %v4019
        %v4021 = vrot.slane %v4014, %v4020
        %v4022 = vcombine.low %v4013, %v4021
        %v4024 = vunpack.c.l.s4 1934713408
        %v4025 = vunpack.c.0.s8 %v4024
        %v4026 = vlaneseq
        %v4027 = vshrl.u32 %v4026, 7
        %v4028 = vsub.s32 %v4025, %v4027
        %v4029 = vrot.slane %v4022, %v4028
        %v4030 = vcombine.high %v4029, 0
        %v4031 = vcombine.low %v3619, %v3626
        %v4033 = vunpack.c.l.s4 1983009808
        %v4034 = vunpack.c.0.s8 %v4033
        %v4035 = vlaneseq
        %v4036 = vshrl.u32 %v4035, 7
        %v4037 = vsub.s32 %v4034, %v4036
        %v4038 = vrot.slane %v4031, %v4037
        %v4039 = vcombine.low %v3627, %v3628
        %v4041 = vunpack.c.l.s4 1983009808
        %v4042 = vunpack.c.0.s8 %v4041
        %v4043 = vlaneseq
        %v4044 = vshrl.u32 %v4043, 7
        %v4045 = vsub.s32 %v4042, %v4044
        %v4046 = vrot.slane %v4039, %v4045
        %v4047 = vcombine.low %v4038, %v4046
        %v4049 = vunpack.c.l.s4 1934713408
        %v4050 = vunpack.c.0.s8 %v4049
        %v4051 = vlaneseq
        %v4052 = vshrl.u32 %v4051, 7
        %v4053 = vsub.s32 %v4050, %v4052
        %v4054 = vrot.slane %v4047, %v4053
        %v4055 = vcombine.high %v4054, 0
        %v4056 = vcombine.low %v3653, %v3660
        %v4058 = vunpack.c.l.s4 1983009808
        %v4059 = vunpack.c.0.s8 %v4058
        %v4060 = vlaneseq
        %v4061 = vshrl.u32 %v4060, 7
        %v4062 = vsub.s32 %v4059, %v4061
        %v4063 = vrot.slane %v4056, %v4062
        %v4064 = vcombine.low %v3661, %v3662
        %v4066 = vunpack.c.l.s4 1983009808
        %v4067 = vunpack.c.0.s8 %v4066
        %v4068 = vlaneseq
        %v4069 = vshrl.u32 %v4068, 7
        %v4070 = vsub.s32 %v4067, %v4069
        %v4071 = vrot.slane %v4064, %v4070
        %v4072 = vcombine.low %v4063, %v4071
        %v4074 = vunpack.c.l.s4 1934713408
        %v4075 = vunpack.c.0.s8 %v4074
        %v4076 = vlaneseq
        %v4077 = vshrl.u32 %v4076, 7
        %v4078 = vsub.s32 %v4075, %v4077
        %v4079 = vrot.slane %v4072, %v4078
        %v4080 = vcombine.high %v4079, 0
        %v4081 = vcombine.low %v3687, %v3694
        %v4083 = vunpack.c.l.s4 1983009808
        %v4084 = vunpack.c.0.s8 %v4083
        %v4085 = vlaneseq
        %v4086 = vshrl.u32 %v4085, 7
        %v4087 = vsub.s32 %v4084, %v4086
        %v4088 = vrot.slane %v4081, %v4087
        %v4089 = vcombine.low %v3695, %v3696
        %v4091 = vunpack.c.l.s4 1983009808
        %v4092 = vunpack.c.0.s8 %v4091
        %v4093 = vlaneseq
        %v4094 = vshrl.u32 %v4093, 7
        %v4095 = vsub.s32 %v4092, %v4094
        %v4096 = vrot.slane %v4089, %v4095
        %v4097 = vcombine.low %v4088, %v4096
        %v4099 = vunpack.c.l.s4 1934713408
        %v4100 = vunpack.c.0.s8 %v4099
        %v4101 = vlaneseq
        %v4102 = vshrl.u32 %v4101, 7
        %v4103 = vsub.s32 %v4100, %v4102
        %v4104 = vrot.slane %v4097, %v4103
        %v4105 = vcombine.high %v4104, 0
        %v4106 = vcombine.low %v3721, %v3728
        %v4108 = vunpack.c.l.s4 1983009808
        %v4109 = vunpack.c.0.s8 %v4108
        %v4110 = vlaneseq
        %v4111 = vshrl.u32 %v4110, 7
        %v4112 = vsub.s32 %v4109, %v4111
        %v4113 = vrot.slane %v4106, %v4112
        %v4114 = vcombine.low %v3729, %v3730
        %v4116 = vunpack.c.l.s4 1983009808
        %v4117 = vunpack.c.0.s8 %v4116
        %v4118 = vlaneseq
        %v4119 = vshrl.u32 %v4118, 7
        %v4120 = vsub.s32 %v4117, %v4119
        %v4121 = vrot.slane %v4114, %v4120
        %v4122 = vcombine.low %v4113, %v4121
        %v4124 = vunpack.c.l.s4 1934713408
        %v4125 = vunpack.c.0.s8 %v4124
        %v4126 = vlaneseq
        %v4127 = vshrl.u32 %v4126, 7
        %v4128 = vsub.s32 %v4125, %v4127
        %v4129 = vrot.slane %v4122, %v4128
        %v4130 = vcombine.high %v4129, 0
        %v4133 = vpack.i.b16 %v3779, %v3754
        %v4134 = vshrl.u32 %v3754, 16
        %v4135 = vshrl.u32 %v3779, 16
        %v4136 = vpack.i.b16 %v4135, %v4134
        %v4139 = vpack.i.b16 %v3780, %v3755
        %v4140 = vshrl.u32 %v3755, 16
        %v4141 = vshrl.u32 %v3780, 16
        %v4142 = vpack.i.b16 %v4141, %v4140
        %v4145 = vpack.i.b16 %v3829, %v3804
        %v4146 = vshrl.u32 %v3804, 16
        %v4147 = vshrl.u32 %v3829, 16
        %v4148 = vpack.i.b16 %v4147, %v4146
        %v4151 = vpack.i.b16 %v3830, %v3805
        %v4152 = vshrl.u32 %v3805, 16
        %v4153 = vshrl.u32 %v3830, 16
        %v4154 = vpack.i.b16 %v4153, %v4152
        %v4157 = vpack.i.b16 %v3879, %v3854
        %v4158 = vshrl.u32 %v3854, 16
        %v4159 = vshrl.u32 %v3879, 16
        %v4160 = vpack.i.b16 %v4159, %v4158
        %v4163 = vpack.i.b16 %v3880, %v3855
        %v4164 = vshrl.u32 %v3855, 16
        %v4165 = vshrl.u32 %v3880, 16
        %v4166 = vpack.i.b16 %v4165, %v4164
        %v4169 = vpack.i.b16 %v3929, %v3904
        %v4170 = vshrl.u32 %v3904, 16
        %v4171 = vshrl.u32 %v3929, 16
        %v4172 = vpack.i.b16 %v4171, %v4170
        %v4175 = vpack.i.b16 %v3930, %v3905
        %v4176 = vshrl.u32 %v3905, 16
        %v4177 = vshrl.u32 %v3930, 16
        %v4178 = vpack.i.b16 %v4177, %v4176
        %v4181 = vpack.i.b16 %v3979, %v3954
        %v4182 = vshrl.u32 %v3954, 16
        %v4183 = vshrl.u32 %v3979, 16
        %v4184 = vpack.i.b16 %v4183, %v4182
        %v4187 = vpack.i.b16 %v3980, %v3955
        %v4188 = vshrl.u32 %v3955, 16
        %v4189 = vshrl.u32 %v3980, 16
        %v4190 = vpack.i.b16 %v4189, %v4188
        %v4193 = vpack.i.b16 %v4029, %v4004
        %v4194 = vshrl.u32 %v4004, 16
        %v4195 = vshrl.u32 %v4029, 16
        %v4196 = vpack.i.b16 %v4195, %v4194
        %v4199 = vpack.i.b16 %v4030, %v4005
        %v4200 = vshrl.u32 %v4005, 16
        %v4201 = vshrl.u32 %v4030, 16
        %v4202 = vpack.i.b16 %v4201, %v4200
        %v4205 = vpack.i.b16 %v4079, %v4054
        %v4206 = vshrl.u32 %v4054, 16
        %v4207 = vshrl.u32 %v4079, 16
        %v4208 = vpack.i.b16 %v4207, %v4206
        %v4211 = vpack.i.b16 %v4080, %v4055
        %v4212 = vshrl.u32 %v4055, 16
        %v4213 = vshrl.u32 %v4080, 16
        %v4214 = vpack.i.b16 %v4213, %v4212
        %v4217 = vpack.i.b16 %v4129, %v4104
        %v4218 = vshrl.u32 %v4104, 16
        %v4219 = vshrl.u32 %v4129, 16
        %v4220 = vpack.i.b16 %v4219, %v4218
        %v4223 = vpack.i.b16 %v4130, %v4105
        %v4224 = vshrl.u32 %v4105, 16
        %v4225 = vshrl.u32 %v4130, 16
        %v4226 = vpack.i.b16 %v4225, %v4224
        %v4227 = vunpack.c.l.b16 %v2933
        %v4228 = vunpack.c.l.b16 %v2945
        %v4229 = vunpack.c.l.b16 %v2957
        %v4230 = vunpack.c.l.b16 %v2969
        %v4231 = vunpack.c.l.b16 %v2981
        %v4232 = vunpack.c.l.b16 %v2993
        %v4233 = vunpack.c.l.b16 %v3005
        %v4234 = vunpack.c.l.b16 %v3017
        %v4235 = vpack.c.b16 %v4228, %v4227
        %v4236 = vpack.c.b16 %v4230, %v4229
        %v4237 = vpack.c.b16 %v4232, %v4231
        %v4238 = vpack.c.b16 %v4234, %v4233
        %vm4239 = vcmask 261120
        %v4241 = vsel %vm4239, %v1805, 0
        %v4244 = vsel %vm4239, %v1817, 0
        %v4247 = vsel %vm4239, %v4235, 0
        %v4250 = vsel %vm4239, %v4236, 0
        %v4253 = vsel %vm4239, %v4237, 0
        %v4256 = vsel %vm4239, %v4238, 0
        %4258 = vmatprep.subr.bf16.mxu0 0
        %4259 = vmatpush1.bf16.xpose.msra.mxu0 0
        %4260 = vmatprep.subr.bf16.mxu0 0
        %4261 = vmatpush1.bf16.xpose.msra.mxu0 0
        %4262 = vmatprep.subr.bf16.mxu0 0
        %4263 = vmatpush1.bf16.xpose.msra.mxu0 0
        %4264 = vmatprep.subr.bf16.mxu0 0
        %4265 = vmatpush1.bf16.xpose.msra.mxu0 0
        %4266 = vmatprep.subr.bf16.mxu0 0
        %4267 = vmatpush1.bf16.xpose.msra.mxu0 %v4256
        %4268 = vmatprep.subr.bf16.mxu0 0
        %4269 = vmatpush1.bf16.xpose.msra.mxu0 %v4253
        %4270 = vmatprep.subr.bf16.mxu0 0
        %4271 = vmatpush1.bf16.xpose.msra.mxu0 %v4250
        %4272 = vmatprep.subr.bf16.mxu0 0
        %4273 = vmatpush1.bf16.xpose.msra.mxu0 %v4247
        %4274 = vmatprep.subr.bf16.mxu0 0
        %4275 = vmatpush2.bf16.xpose.msra.mxu0 0
        %4276 = vmatprep.subr.bf16.mxu0 0
        %4277 = vmatpush2.bf16.xpose.msra.mxu0 0
        %4278 = vmatprep.subr.bf16.mxu0 0
        %4279 = vmatpush2.bf16.xpose.msra.mxu0 0
        %4280 = vmatprep.subr.bf16.mxu0 0
        %4281 = vmatpush2.bf16.xpose.msra.mxu0 0
        %4282 = vmatprep.subr.bf16.mxu0 0
        %4283 = vmatpush2.bf16.xpose.msra.mxu0 0
        %4284 = vmatprep.subr.bf16.mxu0 0
        %4285 = vmatpush2.bf16.xpose.msra.mxu0 0
        %4286 = vmatprep.subr.bf16.mxu0 0
        %4287 = vmatpush2.bf16.xpose.msra.mxu0 0
        %4288 = vmatprep.subr.bf16.mxu0 0
        %4289 = vmatpush2.bf16.xpose.msra.mxu0 0
        %4290 = vmatprep.mubr.bf16.mxu0 0
        %4291 = vmatmul.mubr.bf16.gmra.mxu0 %v4241
        %v4292 = vpop.f32.mrf.mxu0
        %v4293 = vadd.f32 0.0, %v4292
        %v4294 = vpop.f32.mrf.mxu0
        %v4295 = vpop.f32.mrf.mxu0
        %v4296 = vadd.f32 0.0, %v4295
        %v4297 = vpop.f32.mrf.mxu0
        %4298 = vmatprep.mubr.bf16.mxu0 0
        %4299 = vmatmul.mubr.bf16.gmra.mxu0 %v4244
        %v4300 = vpop.f32.mrf.mxu0
        %v4301 = vadd.f32 0.0, %v4300
        %v4302 = vpop.f32.mrf.mxu0
        %v4303 = vpop.f32.mrf.mxu0
        %v4304 = vadd.f32 0.0, %v4303
        %v4305 = vpop.f32.mrf.mxu0
        %4306 = vdwg.mxu0
        %v4307 = vunpack.c.l.b16 %v2936
        %v4308 = vunpack.c.l.b16 %v2948
        %v4309 = vunpack.c.l.b16 %v2960
        %v4310 = vunpack.c.l.b16 %v2972
        %v4311 = vunpack.c.l.b16 %v2984
        %v4312 = vunpack.c.l.b16 %v2996
        %v4313 = vunpack.c.l.b16 %v3008
        %v4314 = vunpack.c.l.b16 %v3020
        %v4315 = vpack.c.b16 %v4308, %v4307
        %v4316 = vpack.c.b16 %v4310, %v4309
        %v4317 = vpack.c.b16 %v4312, %v4311
        %v4318 = vpack.c.b16 %v4314, %v4313
        %v4320 = vsel %vm4239, %v1808, 0
        %v4323 = vsel %vm4239, %v1820, 0
        %v4326 = vsel %vm4239, %v4315, 0
        %v4329 = vsel %vm4239, %v4316, 0
        %v4332 = vsel %vm4239, %v4317, 0
        %v4335 = vsel %vm4239, %v4318, 0
        %4337 = vmatprep.subr.bf16.mxu0 0
        %4338 = vmatpush1.bf16.xpose.msra.mxu0 0
        %4339 = vmatprep.subr.bf16.mxu0 0
        %4340 = vmatpush1.bf16.xpose.msra.mxu0 0
        %4341 = vmatprep.subr.bf16.mxu0 0
        %4342 = vmatpush1.bf16.xpose.msra.mxu0 0
        %4343 = vmatprep.subr.bf16.mxu0 0
        %4344 = vmatpush1.bf16.xpose.msra.mxu0 0
        %4345 = vmatprep.subr.bf16.mxu0 0
        %4346 = vmatpush1.bf16.xpose.msra.mxu0 %v4335
        %4347 = vmatprep.subr.bf16.mxu0 0
        %4348 = vmatpush1.bf16.xpose.msra.mxu0 %v4332
        %4349 = vmatprep.subr.bf16.mxu0 0
        %4350 = vmatpush1.bf16.xpose.msra.mxu0 %v4329
        %4351 = vmatprep.subr.bf16.mxu0 0
        %4352 = vmatpush1.bf16.xpose.msra.mxu0 %v4326
        %4353 = vmatprep.subr.bf16.mxu0 0
        %4354 = vmatpush2.bf16.xpose.msra.mxu0 0
        %4355 = vmatprep.subr.bf16.mxu0 0
        %4356 = vmatpush2.bf16.xpose.msra.mxu0 0
        %4357 = vmatprep.subr.bf16.mxu0 0
        %4358 = vmatpush2.bf16.xpose.msra.mxu0 0
        %4359 = vmatprep.subr.bf16.mxu0 0
        %4360 = vmatpush2.bf16.xpose.msra.mxu0 0
        %4361 = vmatprep.subr.bf16.mxu0 0
        %4362 = vmatpush2.bf16.xpose.msra.mxu0 0
        %4363 = vmatprep.subr.bf16.mxu0 0
        %4364 = vmatpush2.bf16.xpose.msra.mxu0 0
        %4365 = vmatprep.subr.bf16.mxu0 0
        %4366 = vmatpush2.bf16.xpose.msra.mxu0 0
        %4367 = vmatprep.subr.bf16.mxu0 0
        %4368 = vmatpush2.bf16.xpose.msra.mxu0 0
        %4369 = vmatprep.mubr.bf16.mxu0 0
        %4370 = vmatmul.mubr.bf16.gmra.mxu0 %v4320
        %v4371 = vpop.f32.mrf.mxu0
        %v4372 = vadd.f32 0.0, %v4371
        %v4373 = vpop.f32.mrf.mxu0
        %v4374 = vpop.f32.mrf.mxu0
        %v4375 = vadd.f32 0.0, %v4374
        %v4376 = vpop.f32.mrf.mxu0
        %4377 = vmatprep.mubr.bf16.mxu0 0
        %4378 = vmatmul.mubr.bf16.gmra.mxu0 %v4323
        %v4379 = vpop.f32.mrf.mxu0
        %v4380 = vadd.f32 0.0, %v4379
        %v4381 = vpop.f32.mrf.mxu0
        %v4382 = vpop.f32.mrf.mxu0
        %v4383 = vadd.f32 0.0, %v4382
        %v4384 = vpop.f32.mrf.mxu0
        %4385 = vdwg.mxu0
        %v4386 = vunpack.c.l.b16 %v2939
        %v4387 = vunpack.c.l.b16 %v2951
        %v4388 = vunpack.c.l.b16 %v2963
        %v4389 = vunpack.c.l.b16 %v2975
        %v4390 = vunpack.c.l.b16 %v2987
        %v4391 = vunpack.c.l.b16 %v2999
        %v4392 = vunpack.c.l.b16 %v3011
        %v4393 = vunpack.c.l.b16 %v3023
        %v4394 = vpack.c.b16 %v4387, %v4386
        %v4395 = vpack.c.b16 %v4389, %v4388
        %v4396 = vpack.c.b16 %v4391, %v4390
        %v4397 = vpack.c.b16 %v4393, %v4392
        %v4399 = vsel %vm4239, %v1811, 0
        %v4402 = vsel %vm4239, %v1823, 0
        %v4405 = vsel %vm4239, %v4394, 0
        %v4408 = vsel %vm4239, %v4395, 0
        %v4411 = vsel %vm4239, %v4396, 0
        %v4414 = vsel %vm4239, %v4397, 0
        %4416 = vmatprep.subr.bf16.mxu0 0
        %4417 = vmatpush1.bf16.xpose.msra.mxu0 0
        %4418 = vmatprep.subr.bf16.mxu0 0
        %4419 = vmatpush1.bf16.xpose.msra.mxu0 0
        %4420 = vmatprep.subr.bf16.mxu0 0
        %4421 = vmatpush1.bf16.xpose.msra.mxu0 0
        %4422 = vmatprep.subr.bf16.mxu0 0
        %4423 = vmatpush1.bf16.xpose.msra.mxu0 0
        %4424 = vmatprep.subr.bf16.mxu0 0
        %4425 = vmatpush1.bf16.xpose.msra.mxu0 %v4414
        %4426 = vmatprep.subr.bf16.mxu0 0
        %4427 = vmatpush1.bf16.xpose.msra.mxu0 %v4411
        %4428 = vmatprep.subr.bf16.mxu0 0
        %4429 = vmatpush1.bf16.xpose.msra.mxu0 %v4408
        %4430 = vmatprep.subr.bf16.mxu0 0
        %4431 = vmatpush1.bf16.xpose.msra.mxu0 %v4405
        %4432 = vmatprep.subr.bf16.mxu0 0
        %4433 = vmatpush2.bf16.xpose.msra.mxu0 0
        %4434 = vmatprep.subr.bf16.mxu0 0
        %4435 = vmatpush2.bf16.xpose.msra.mxu0 0
        %4436 = vmatprep.subr.bf16.mxu0 0
        %4437 = vmatpush2.bf16.xpose.msra.mxu0 0
        %4438 = vmatprep.subr.bf16.mxu0 0
        %4439 = vmatpush2.bf16.xpose.msra.mxu0 0
        %4440 = vmatprep.subr.bf16.mxu0 0
        %4441 = vmatpush2.bf16.xpose.msra.mxu0 0
        %4442 = vmatprep.subr.bf16.mxu0 0
        %4443 = vmatpush2.bf16.xpose.msra.mxu0 0
        %4444 = vmatprep.subr.bf16.mxu0 0
        %4445 = vmatpush2.bf16.xpose.msra.mxu0 0
        %4446 = vmatprep.subr.bf16.mxu0 0
        %4447 = vmatpush2.bf16.xpose.msra.mxu0 0
        %4448 = vmatprep.mubr.bf16.mxu0 0
        %4449 = vmatmul.mubr.bf16.gmra.mxu0 %v4399
        %v4450 = vpop.f32.mrf.mxu0
        %v4451 = vadd.f32 0.0, %v4450
        %v4452 = vpop.f32.mrf.mxu0
        %v4453 = vpop.f32.mrf.mxu0
        %v4454 = vadd.f32 0.0, %v4453
        %v4455 = vpop.f32.mrf.mxu0
        %4456 = vmatprep.mubr.bf16.mxu0 0
        %4457 = vmatmul.mubr.bf16.gmra.mxu0 %v4402
        %v4458 = vpop.f32.mrf.mxu0
        %v4459 = vadd.f32 0.0, %v4458
        %v4460 = vpop.f32.mrf.mxu0
        %v4461 = vpop.f32.mrf.mxu0
        %v4462 = vadd.f32 0.0, %v4461
        %v4463 = vpop.f32.mrf.mxu0
        %4464 = vdwg.mxu0
        %v4465 = vunpack.c.l.b16 %v2942
        %v4466 = vunpack.c.l.b16 %v2954
        %v4467 = vunpack.c.l.b16 %v2966
        %v4468 = vunpack.c.l.b16 %v2978
        %v4469 = vunpack.c.l.b16 %v2990
        %v4470 = vunpack.c.l.b16 %v3002
        %v4471 = vunpack.c.l.b16 %v3014
        %v4472 = vunpack.c.l.b16 %v3026
        %v4473 = vpack.c.b16 %v4466, %v4465
        %v4474 = vpack.c.b16 %v4468, %v4467
        %v4475 = vpack.c.b16 %v4470, %v4469
        %v4476 = vpack.c.b16 %v4472, %v4471
        %v4478 = vsel %vm4239, %v1814, 0
        %v4481 = vsel %vm4239, %v1826, 0
        %v4484 = vsel %vm4239, %v4473, 0
        %v4487 = vsel %vm4239, %v4474, 0
        %v4490 = vsel %vm4239, %v4475, 0
        %v4493 = vsel %vm4239, %v4476, 0
        %4495 = vmatprep.subr.bf16.mxu0 0
        %4496 = vmatpush1.bf16.xpose.msra.mxu0 0
        %4497 = vmatprep.subr.bf16.mxu0 0
        %4498 = vmatpush1.bf16.xpose.msra.mxu0 0
        %4499 = vmatprep.subr.bf16.mxu0 0
        %4500 = vmatpush1.bf16.xpose.msra.mxu0 0
        %4501 = vmatprep.subr.bf16.mxu0 0
        %4502 = vmatpush1.bf16.xpose.msra.mxu0 0
        %4503 = vmatprep.subr.bf16.mxu0 0
        %4504 = vmatpush1.bf16.xpose.msra.mxu0 %v4493
        %4505 = vmatprep.subr.bf16.mxu0 0
        %4506 = vmatpush1.bf16.xpose.msra.mxu0 %v4490
        %4507 = vmatprep.subr.bf16.mxu0 0
        %4508 = vmatpush1.bf16.xpose.msra.mxu0 %v4487
        %4509 = vmatprep.subr.bf16.mxu0 0
        %4510 = vmatpush1.bf16.xpose.msra.mxu0 %v4484
        %4511 = vmatprep.subr.bf16.mxu0 0
        %4512 = vmatpush2.bf16.xpose.msra.mxu0 0
        %4513 = vmatprep.subr.bf16.mxu0 0
        %4514 = vmatpush2.bf16.xpose.msra.mxu0 0
        %4515 = vmatprep.subr.bf16.mxu0 0
        %4516 = vmatpush2.bf16.xpose.msra.mxu0 0
        %4517 = vmatprep.subr.bf16.mxu0 0
        %4518 = vmatpush2.bf16.xpose.msra.mxu0 0
        %4519 = vmatprep.subr.bf16.mxu0 0
        %4520 = vmatpush2.bf16.xpose.msra.mxu0 0
        %4521 = vmatprep.subr.bf16.mxu0 0
        %4522 = vmatpush2.bf16.xpose.msra.mxu0 0
        %4523 = vmatprep.subr.bf16.mxu0 0
        %4524 = vmatpush2.bf16.xpose.msra.mxu0 0
        %4525 = vmatprep.subr.bf16.mxu0 0
        %4526 = vmatpush2.bf16.xpose.msra.mxu0 0
        %4527 = vmatprep.mubr.bf16.mxu0 0
        %4528 = vmatmul.mubr.bf16.gmra.mxu0 %v4478
        %v4529 = vpop.f32.mrf.mxu0
        %v4530 = vadd.f32 0.0, %v4529
        %v4531 = vpop.f32.mrf.mxu0
        %v4532 = vpop.f32.mrf.mxu0
        %v4533 = vadd.f32 0.0, %v4532
        %v4534 = vpop.f32.mrf.mxu0
        %4535 = vmatprep.mubr.bf16.mxu0 0
        %4536 = vmatmul.mubr.bf16.gmra.mxu0 %v4481
        %v4537 = vpop.f32.mrf.mxu0
        %v4538 = vadd.f32 0.0, %v4537
        %v4539 = vpop.f32.mrf.mxu0
        %v4540 = vpop.f32.mrf.mxu0
        %v4541 = vadd.f32 0.0, %v4540
        %v4542 = vpop.f32.mrf.mxu0
        %4543 = vdwg.mxu0
        %v4544 = vsel %vm1283, 1, 0
        %v4545 = vsel %vm1284, 1, 0
        %v4546 = vsel %vm1285, 1, 0
        %v4547 = vsel %vm1286, 1, 0
        %vm4548 = vcmp.eq.s32.totalorder %v4544, 1
        %vm4549 = vcmp.eq.s32.totalorder %v4545, 1
        %vm4550 = vcmp.eq.s32.totalorder %v4546, 1
        %vm4551 = vcmp.eq.s32.totalorder %v4547, 1
        %v4552 = vsel %vm4548, %v4293, -1e+20
        %v4553 = vsel %vm4549, %v4296, -1e+20
        %v4554 = vsel %vm4550, %v4301, -1e+20
        %v4555 = vsel %vm4551, %v4304, -1e+20
        %v4556 = vsel %vm4548, %v4372, -1e+20
        %v4557 = vsel %vm4549, %v4375, -1e+20
        %v4558 = vsel %vm4550, %v4380, -1e+20
        %v4559 = vsel %vm4551, %v4383, -1e+20
        %v4560 = vsel %vm4548, %v4451, -1e+20
        %v4561 = vsel %vm4549, %v4454, -1e+20
        %v4562 = vsel %vm4550, %v4459, -1e+20
        %v4563 = vsel %vm4551, %v4462, -1e+20
        %v4564 = vsel %vm4548, %v4530, -1e+20
        %v4565 = vsel %vm4549, %v4533, -1e+20
        %v4566 = vsel %vm4550, %v4538, -1e+20
        %v4567 = vsel %vm4551, %v4541, -1e+20
        %vm4568 = vcmask 523264
        %v4569 = vsel %vm4568, %v4552, -inf
        %4570 = vmax.xlane.f32.xlu0 %v4569
        %v4571 = vpop.xlane.xlu0 %4570
        %v4572 = vsel %vm4568, %v4553, -inf
        %4573 = vmax.xlane.f32.xlu0 %v4572
        %v4574 = vpop.xlane.xlu0 %4573
        %v4575 = vsel %vm4568, %v4554, -inf
        %4576 = vmax.xlane.f32.xlu0 %v4575
        %v4577 = vpop.xlane.xlu0 %4576
        %v4578 = vsel %vm4568, %v4555, -inf
        %4579 = vmax.xlane.f32.xlu0 %v4578
        %v4580 = vpop.xlane.xlu0 %4579
        %v4581 = vsel %vm4568, %v4556, -inf
        %4582 = vmax.xlane.f32.xlu0 %v4581
        %v4583 = vpop.xlane.xlu0 %4582
        %v4584 = vsel %vm4568, %v4557, -inf
        %4585 = vmax.xlane.f32.xlu0 %v4584
        %v4586 = vpop.xlane.xlu0 %4585
        %v4587 = vsel %vm4568, %v4558, -inf
        %4588 = vmax.xlane.f32.xlu0 %v4587
        %v4589 = vpop.xlane.xlu0 %4588
        %v4590 = vsel %vm4568, %v4559, -inf
        %4591 = vmax.xlane.f32.xlu0 %v4590
        %v4592 = vpop.xlane.xlu0 %4591
        %v4593 = vsel %vm4568, %v4560, -inf
        %4594 = vmax.xlane.f32.xlu0 %v4593
        %v4595 = vpop.xlane.xlu0 %4594
        %v4596 = vsel %vm4568, %v4561, -inf
        %4597 = vmax.xlane.f32.xlu0 %v4596
        %v4598 = vpop.xlane.xlu0 %4597
        %v4599 = vsel %vm4568, %v4562, -inf
        %4600 = vmax.xlane.f32.xlu0 %v4599
        %v4601 = vpop.xlane.xlu0 %4600
        %v4602 = vsel %vm4568, %v4563, -inf
        %4603 = vmax.xlane.f32.xlu0 %v4602
        %v4604 = vpop.xlane.xlu0 %4603
        %v4605 = vsel %vm4568, %v4564, -inf
        %4606 = vmax.xlane.f32.xlu0 %v4605
        %v4607 = vpop.xlane.xlu0 %4606
        %v4608 = vsel %vm4568, %v4565, -inf
        %4609 = vmax.xlane.f32.xlu0 %v4608
        %v4610 = vpop.xlane.xlu0 %4609
        %v4611 = vsel %vm4568, %v4566, -inf
        %4612 = vmax.xlane.f32.xlu0 %v4611
        %v4613 = vpop.xlane.xlu0 %4612
        %v4614 = vsel %vm4568, %v4567, -inf
        %4615 = vmax.xlane.f32.xlu0 %v4614
        %v4616 = vpop.xlane.xlu0 %4615
        %v4617 = vsub.f32 %v4552, %v4571
        %v4618 = vsub.f32 %v4553, %v4574
        %v4619 = vsub.f32 %v4554, %v4577
        %v4620 = vsub.f32 %v4555, %v4580
        %v4621 = vsub.f32 %v4556, %v4583
        %v4622 = vsub.f32 %v4557, %v4586
        %v4623 = vsub.f32 %v4558, %v4589
        %v4624 = vsub.f32 %v4559, %v4592
        %v4625 = vsub.f32 %v4560, %v4595
        %v4626 = vsub.f32 %v4561, %v4598
        %v4627 = vsub.f32 %v4562, %v4601
        %v4628 = vsub.f32 %v4563, %v4604
        %v4629 = vsub.f32 %v4564, %v4607
        %v4630 = vsub.f32 %v4565, %v4610
        %v4631 = vsub.f32 %v4566, %v4613
        %v4632 = vsub.f32 %v4567, %v4616
        %v4633 = vmul.f32 %v4617, 1.442695
        %v4634 = vpow.pop %v4633
        %v4635 = vmul.f32 %v4618, 1.442695
        %v4636 = vpow.pop %v4635
        %v4637 = vmul.f32 %v4619, 1.442695
        %v4638 = vpow.pop %v4637
        %v4639 = vmul.f32 %v4620, 1.442695
        %v4640 = vpow.pop %v4639
        %v4641 = vmul.f32 %v4621, 1.442695
        %v4642 = vpow.pop %v4641
        %v4643 = vmul.f32 %v4622, 1.442695
        %v4644 = vpow.pop %v4643
        %v4645 = vmul.f32 %v4623, 1.442695
        %v4646 = vpow.pop %v4645
        %v4647 = vmul.f32 %v4624, 1.442695
        %v4648 = vpow.pop %v4647
        %v4649 = vmul.f32 %v4625, 1.442695
        %v4650 = vpow.pop %v4649
        %v4651 = vmul.f32 %v4626, 1.442695
        %v4652 = vpow.pop %v4651
        %v4653 = vmul.f32 %v4627, 1.442695
        %v4654 = vpow.pop %v4653
        %v4655 = vmul.f32 %v4628, 1.442695
        %v4656 = vpow.pop %v4655
        %v4657 = vmul.f32 %v4629, 1.442695
        %v4658 = vpow.pop %v4657
        %v4659 = vmul.f32 %v4630, 1.442695
        %v4660 = vpow.pop %v4659
        %v4661 = vmul.f32 %v4631, 1.442695
        %v4662 = vpow.pop %v4661
        %v4663 = vmul.f32 %v4632, 1.442695
        %v4664 = vpow.pop %v4663
        %v4665 = vsel %vm4568, %v4634, 0.0
        %4666 = vadd.xlane.f32.xlu0 %v4665
        %v4667 = vpop.xlane.xlu0 %4666
        %v4668 = vsel %vm4568, %v4636, 0.0
        %4669 = vadd.xlane.f32.xlu0 %v4668
        %v4670 = vpop.xlane.xlu0 %4669
        %v4671 = vsel %vm4568, %v4638, 0.0
        %4672 = vadd.xlane.f32.xlu0 %v4671
        %v4673 = vpop.xlane.xlu0 %4672
        %v4674 = vsel %vm4568, %v4640, 0.0
        %4675 = vadd.xlane.f32.xlu0 %v4674
        %v4676 = vpop.xlane.xlu0 %4675
        %v4677 = vsel %vm4568, %v4642, 0.0
        %4678 = vadd.xlane.f32.xlu0 %v4677
        %v4679 = vpop.xlane.xlu0 %4678
        %v4680 = vsel %vm4568, %v4644, 0.0
        %4681 = vadd.xlane.f32.xlu0 %v4680
        %v4682 = vpop.xlane.xlu0 %4681
        %v4683 = vsel %vm4568, %v4646, 0.0
        %4684 = vadd.xlane.f32.xlu0 %v4683
        %v4685 = vpop.xlane.xlu0 %4684
        %v4686 = vsel %vm4568, %v4648, 0.0
        %4687 = vadd.xlane.f32.xlu0 %v4686
        %v4688 = vpop.xlane.xlu0 %4687
        %v4689 = vsel %vm4568, %v4650, 0.0
        %4690 = vadd.xlane.f32.xlu0 %v4689
        %v4691 = vpop.xlane.xlu0 %4690
        %v4692 = vsel %vm4568, %v4652, 0.0
        %4693 = vadd.xlane.f32.xlu0 %v4692
        %v4694 = vpop.xlane.xlu0 %4693
        %v4695 = vsel %vm4568, %v4654, 0.0
        %4696 = vadd.xlane.f32.xlu0 %v4695
        %v4697 = vpop.xlane.xlu0 %4696
        %v4698 = vsel %vm4568, %v4656, 0.0
        %4699 = vadd.xlane.f32.xlu0 %v4698
        %v4700 = vpop.xlane.xlu0 %4699
        %v4701 = vsel %vm4568, %v4658, 0.0
        %4702 = vadd.xlane.f32.xlu0 %v4701
        %v4703 = vpop.xlane.xlu0 %4702
        %v4704 = vsel %vm4568, %v4660, 0.0
        %4705 = vadd.xlane.f32.xlu0 %v4704
        %v4706 = vpop.xlane.xlu0 %4705
        %v4707 = vsel %vm4568, %v4662, 0.0
        %4708 = vadd.xlane.f32.xlu0 %v4707
        %v4709 = vpop.xlane.xlu0 %4708
        %v4710 = vsel %vm4568, %v4664, 0.0
        %4711 = vadd.xlane.f32.xlu0 %v4710
        %v4712 = vpop.xlane.xlu0 %4711
        %v4713 = vpack.c.bf16 %v4636, %v4634
        %v4714 = vpack.c.bf16 %v4640, %v4638
        %v4715 = vpack.c.bf16 %v4644, %v4642
        %v4716 = vpack.c.bf16 %v4648, %v4646
        %v4717 = vpack.c.bf16 %v4652, %v4650
        %v4718 = vpack.c.bf16 %v4656, %v4654
        %v4719 = vpack.c.bf16 %v4660, %v4658
        %v4720 = vpack.c.bf16 %v4664, %v4662
        %v4721 = vunpack.c.l.b16 %v4133
        %v4722 = vunpack.c.l.b16 %v4145
        %v4723 = vunpack.c.l.b16 %v4157
        %v4724 = vunpack.c.l.b16 %v4169
        %v4725 = vunpack.c.l.b16 %v4181
        %v4726 = vunpack.c.l.b16 %v4193
        %v4727 = vunpack.c.l.b16 %v4205
        %v4728 = vunpack.c.l.b16 %v4217
        %v4729 = vpack.c.b16 %v4722, %v4721
        %v4730 = vpack.c.b16 %v4724, %v4723
        %v4731 = vpack.c.b16 %v4726, %v4725
        %v4732 = vpack.c.b16 %v4728, %v4727
        %v4738 = vsel %vm4568, %v4713, 0
        %v4741 = vsel %vm4568, %v4714, 0
        %4743 = vmatprep.subr.bf16.mxu0 0
        %4744 = vmatpush1.bf16.msra.mxu0 0
        %4745 = vmatprep.subr.bf16.mxu0 0
        %4746 = vmatpush1.bf16.msra.mxu0 0
        %4747 = vmatprep.subr.bf16.mxu0 0
        %4748 = vmatpush1.bf16.msra.mxu0 0
        %4749 = vmatprep.subr.bf16.mxu0 0
        %4750 = vmatpush1.bf16.msra.mxu0 0
        %4751 = vmatprep.subr.bf16.mxu0 0
        %4752 = vmatpush1.bf16.msra.mxu0 %v4732
        %4753 = vmatprep.subr.bf16.mxu0 0
        %4754 = vmatpush1.bf16.msra.mxu0 %v4731
        %4755 = vmatprep.subr.bf16.mxu0 0
        %4756 = vmatpush1.bf16.msra.mxu0 %v4730
        %4757 = vmatprep.subr.bf16.mxu0 0
        %4758 = vmatpush1.bf16.msra.mxu0 %v4729
        %4759 = vmatprep.subr.bf16.mxu0 0
        %4760 = vmatpush2.bf16.msra.mxu0 0
        %4761 = vmatprep.subr.bf16.mxu0 0
        %4762 = vmatpush2.bf16.msra.mxu0 0
        %4763 = vmatprep.subr.bf16.mxu0 0
        %4764 = vmatpush2.bf16.msra.mxu0 0
        %4765 = vmatprep.subr.bf16.mxu0 0
        %4766 = vmatpush2.bf16.msra.mxu0 0
        %4767 = vmatprep.subr.bf16.mxu0 0
        %4768 = vmatpush2.bf16.msra.mxu0 0
        %4769 = vmatprep.subr.bf16.mxu0 0
        %4770 = vmatpush2.bf16.msra.mxu0 0
        %4771 = vmatprep.subr.bf16.mxu0 0
        %4772 = vmatpush2.bf16.msra.mxu0 0
        %4773 = vmatprep.subr.bf16.mxu0 0
        %4774 = vmatpush2.bf16.msra.mxu0 0
        %4775 = vmatprep.mubr.bf16.mxu0 0
        %4776 = vmatmul.mubr.bf16.gmra.mxu0 %v4738
        %v4777 = vpop.f32.mrf.mxu0
        %v4778 = vadd.f32 0.0, %v4777
        %v4779 = vpop.f32.mrf.mxu0
        %v4780 = vpop.f32.mrf.mxu0
        %v4781 = vadd.f32 0.0, %v4780
        %v4782 = vpop.f32.mrf.mxu0
        %4783 = vmatprep.mubr.bf16.mxu0 0
        %4784 = vmatmul.mubr.bf16.gmra.mxu0 %v4741
        %v4785 = vpop.f32.mrf.mxu0
        %v4786 = vadd.f32 0.0, %v4785
        %v4787 = vpop.f32.mrf.mxu0
        %v4788 = vpop.f32.mrf.mxu0
        %v4789 = vadd.f32 0.0, %v4788
        %v4790 = vpop.f32.mrf.mxu0
        %4791 = vdwg.mxu0
        %v4792 = vunpack.c.l.b16 %v4136
        %v4793 = vunpack.c.l.b16 %v4148
        %v4794 = vunpack.c.l.b16 %v4160
        %v4795 = vunpack.c.l.b16 %v4172
        %v4796 = vunpack.c.l.b16 %v4184
        %v4797 = vunpack.c.l.b16 %v4196
        %v4798 = vunpack.c.l.b16 %v4208
        %v4799 = vunpack.c.l.b16 %v4220
        %v4800 = vpack.c.b16 %v4793, %v4792
        %v4801 = vpack.c.b16 %v4795, %v4794
        %v4802 = vpack.c.b16 %v4797, %v4796
        %v4803 = vpack.c.b16 %v4799, %v4798
        %v4809 = vsel %vm4568, %v4715, 0
        %v4812 = vsel %vm4568, %v4716, 0
        %4814 = vmatprep.subr.bf16.mxu0 0
        %4815 = vmatpush1.bf16.msra.mxu0 0
        %4816 = vmatprep.subr.bf16.mxu0 0
        %4817 = vmatpush1.bf16.msra.mxu0 0
        %4818 = vmatprep.subr.bf16.mxu0 0
        %4819 = vmatpush1.bf16.msra.mxu0 0
        %4820 = vmatprep.subr.bf16.mxu0 0
        %4821 = vmatpush1.bf16.msra.mxu0 0
        %4822 = vmatprep.subr.bf16.mxu0 0
        %4823 = vmatpush1.bf16.msra.mxu0 %v4803
        %4824 = vmatprep.subr.bf16.mxu0 0
        %4825 = vmatpush1.bf16.msra.mxu0 %v4802
        %4826 = vmatprep.subr.bf16.mxu0 0
        %4827 = vmatpush1.bf16.msra.mxu0 %v4801
        %4828 = vmatprep.subr.bf16.mxu0 0
        %4829 = vmatpush1.bf16.msra.mxu0 %v4800
        %4830 = vmatprep.subr.bf16.mxu0 0
        %4831 = vmatpush2.bf16.msra.mxu0 0
        %4832 = vmatprep.subr.bf16.mxu0 0
        %4833 = vmatpush2.bf16.msra.mxu0 0
        %4834 = vmatprep.subr.bf16.mxu0 0
        %4835 = vmatpush2.bf16.msra.mxu0 0
        %4836 = vmatprep.subr.bf16.mxu0 0
        %4837 = vmatpush2.bf16.msra.mxu0 0
        %4838 = vmatprep.subr.bf16.mxu0 0
        %4839 = vmatpush2.bf16.msra.mxu0 0
        %4840 = vmatprep.subr.bf16.mxu0 0
        %4841 = vmatpush2.bf16.msra.mxu0 0
        %4842 = vmatprep.subr.bf16.mxu0 0
        %4843 = vmatpush2.bf16.msra.mxu0 0
        %4844 = vmatprep.subr.bf16.mxu0 0
        %4845 = vmatpush2.bf16.msra.mxu0 0
        %4846 = vmatprep.mubr.bf16.mxu0 0
        %4847 = vmatmul.mubr.bf16.gmra.mxu0 %v4809
        %v4848 = vpop.f32.mrf.mxu0
        %v4849 = vadd.f32 0.0, %v4848
        %v4850 = vpop.f32.mrf.mxu0
        %v4851 = vpop.f32.mrf.mxu0
        %v4852 = vadd.f32 0.0, %v4851
        %v4853 = vpop.f32.mrf.mxu0
        %4854 = vmatprep.mubr.bf16.mxu0 0
        %4855 = vmatmul.mubr.bf16.gmra.mxu0 %v4812
        %v4856 = vpop.f32.mrf.mxu0
        %v4857 = vadd.f32 0.0, %v4856
        %v4858 = vpop.f32.mrf.mxu0
        %v4859 = vpop.f32.mrf.mxu0
        %v4860 = vadd.f32 0.0, %v4859
        %v4861 = vpop.f32.mrf.mxu0
        %4862 = vdwg.mxu0
        %v4863 = vunpack.c.l.b16 %v4139
        %v4864 = vunpack.c.l.b16 %v4151
        %v4865 = vunpack.c.l.b16 %v4163
        %v4866 = vunpack.c.l.b16 %v4175
        %v4867 = vunpack.c.l.b16 %v4187
        %v4868 = vunpack.c.l.b16 %v4199
        %v4869 = vunpack.c.l.b16 %v4211
        %v4870 = vunpack.c.l.b16 %v4223
        %v4871 = vpack.c.b16 %v4864, %v4863
        %v4872 = vpack.c.b16 %v4866, %v4865
        %v4873 = vpack.c.b16 %v4868, %v4867
        %v4874 = vpack.c.b16 %v4870, %v4869
        %v4880 = vsel %vm4568, %v4717, 0
        %v4883 = vsel %vm4568, %v4718, 0
        %4885 = vmatprep.subr.bf16.mxu0 0
        %4886 = vmatpush1.bf16.msra.mxu0 0
        %4887 = vmatprep.subr.bf16.mxu0 0
        %4888 = vmatpush1.bf16.msra.mxu0 0
        %4889 = vmatprep.subr.bf16.mxu0 0
        %4890 = vmatpush1.bf16.msra.mxu0 0
        %4891 = vmatprep.subr.bf16.mxu0 0
        %4892 = vmatpush1.bf16.msra.mxu0 0
        %4893 = vmatprep.subr.bf16.mxu0 0
        %4894 = vmatpush1.bf16.msra.mxu0 %v4874
        %4895 = vmatprep.subr.bf16.mxu0 0
        %4896 = vmatpush1.bf16.msra.mxu0 %v4873
        %4897 = vmatprep.subr.bf16.mxu0 0
        %4898 = vmatpush1.bf16.msra.mxu0 %v4872
        %4899 = vmatprep.subr.bf16.mxu0 0
        %4900 = vmatpush1.bf16.msra.mxu0 %v4871
        %4901 = vmatprep.subr.bf16.mxu0 0
        %4902 = vmatpush2.bf16.msra.mxu0 0
        %4903 = vmatprep.subr.bf16.mxu0 0
        %4904 = vmatpush2.bf16.msra.mxu0 0
        %4905 = vmatprep.subr.bf16.mxu0 0
        %4906 = vmatpush2.bf16.msra.mxu0 0
        %4907 = vmatprep.subr.bf16.mxu0 0
        %4908 = vmatpush2.bf16.msra.mxu0 0
        %4909 = vmatprep.subr.bf16.mxu0 0
        %4910 = vmatpush2.bf16.msra.mxu0 0
        %4911 = vmatprep.subr.bf16.mxu0 0
        %4912 = vmatpush2.bf16.msra.mxu0 0
        %4913 = vmatprep.subr.bf16.mxu0 0
        %4914 = vmatpush2.bf16.msra.mxu0 0
        %4915 = vmatprep.subr.bf16.mxu0 0
        %4916 = vmatpush2.bf16.msra.mxu0 0
        %4917 = vmatprep.mubr.bf16.mxu0 0
        %4918 = vmatmul.mubr.bf16.gmra.mxu0 %v4880
        %v4919 = vpop.f32.mrf.mxu0
        %v4920 = vadd.f32 0.0, %v4919
        %v4921 = vpop.f32.mrf.mxu0
        %v4922 = vpop.f32.mrf.mxu0
        %v4923 = vadd.f32 0.0, %v4922
        %v4924 = vpop.f32.mrf.mxu0
        %4925 = vmatprep.mubr.bf16.mxu0 0
        %4926 = vmatmul.mubr.bf16.gmra.mxu0 %v4883
        %v4927 = vpop.f32.mrf.mxu0
        %v4928 = vadd.f32 0.0, %v4927
        %v4929 = vpop.f32.mrf.mxu0
        %v4930 = vpop.f32.mrf.mxu0
        %v4931 = vadd.f32 0.0, %v4930
        %v4932 = vpop.f32.mrf.mxu0
        %4933 = vdwg.mxu0
        %v4934 = vunpack.c.l.b16 %v4142
        %v4935 = vunpack.c.l.b16 %v4154
        %v4936 = vunpack.c.l.b16 %v4166
        %v4937 = vunpack.c.l.b16 %v4178
        %v4938 = vunpack.c.l.b16 %v4190
        %v4939 = vunpack.c.l.b16 %v4202
        %v4940 = vunpack.c.l.b16 %v4214
        %v4941 = vunpack.c.l.b16 %v4226
        %v4942 = vpack.c.b16 %v4935, %v4934
        %v4943 = vpack.c.b16 %v4937, %v4936
        %v4944 = vpack.c.b16 %v4939, %v4938
        %v4945 = vpack.c.b16 %v4941, %v4940
        %v4951 = vsel %vm4568, %v4719, 0
        %v4954 = vsel %vm4568, %v4720, 0
        %4956 = vmatprep.subr.bf16.mxu0 0
        %4957 = vmatpush1.bf16.msra.mxu0 0
        %4958 = vmatprep.subr.bf16.mxu0 0
        %4959 = vmatpush1.bf16.msra.mxu0 0
        %4960 = vmatprep.subr.bf16.mxu0 0
        %4961 = vmatpush1.bf16.msra.mxu0 0
        %4962 = vmatprep.subr.bf16.mxu0 0
        %4963 = vmatpush1.bf16.msra.mxu0 0
        %4964 = vmatprep.subr.bf16.mxu0 0
        %4965 = vmatpush1.bf16.msra.mxu0 %v4945
        %4966 = vmatprep.subr.bf16.mxu0 0
        %4967 = vmatpush1.bf16.msra.mxu0 %v4944
        %4968 = vmatprep.subr.bf16.mxu0 0
        %4969 = vmatpush1.bf16.msra.mxu0 %v4943
        %4970 = vmatprep.subr.bf16.mxu0 0
        %4971 = vmatpush1.bf16.msra.mxu0 %v4942
        %4972 = vmatprep.subr.bf16.mxu0 0
        %4973 = vmatpush2.bf16.msra.mxu0 0
        %4974 = vmatprep.subr.bf16.mxu0 0
        %4975 = vmatpush2.bf16.msra.mxu0 0
        %4976 = vmatprep.subr.bf16.mxu0 0
        %4977 = vmatpush2.bf16.msra.mxu0 0
        %4978 = vmatprep.subr.bf16.mxu0 0
        %4979 = vmatpush2.bf16.msra.mxu0 0
        %4980 = vmatprep.subr.bf16.mxu0 0
        %4981 = vmatpush2.bf16.msra.mxu0 0
        %4982 = vmatprep.subr.bf16.mxu0 0
        %4983 = vmatpush2.bf16.msra.mxu0 0
        %4984 = vmatprep.subr.bf16.mxu0 0
        %4985 = vmatpush2.bf16.msra.mxu0 0
        %4986 = vmatprep.subr.bf16.mxu0 0
        %4987 = vmatpush2.bf16.msra.mxu0 0
        %4988 = vmatprep.mubr.bf16.mxu0 0
        %4989 = vmatmul.mubr.bf16.gmra.mxu0 %v4951
        %v4990 = vpop.f32.mrf.mxu0
        %v4991 = vadd.f32 0.0, %v4990
        %v4992 = vpop.f32.mrf.mxu0
        %v4993 = vpop.f32.mrf.mxu0
        %v4994 = vadd.f32 0.0, %v4993
        %v4995 = vpop.f32.mrf.mxu0
        %4996 = vmatprep.mubr.bf16.mxu0 0
        %4997 = vmatmul.mubr.bf16.gmra.mxu0 %v4954
        %v4998 = vpop.f32.mrf.mxu0
        %v4999 = vadd.f32 0.0, %v4998
        %v5000 = vpop.f32.mrf.mxu0
        %v5001 = vpop.f32.mrf.mxu0
        %v5002 = vadd.f32 0.0, %v5001
        %v5003 = vpop.f32.mrf.mxu0
        %5004 = vdwg.mxu0
        %v5005 = vrcp.pop %v4667
        %v5006 = vrcp.pop %v4670
        %v5007 = vrcp.pop %v4673
        %v5008 = vrcp.pop %v4676
        %v5009 = vrcp.pop %v4679
        %v5010 = vrcp.pop %v4682
        %v5011 = vrcp.pop %v4685
        %v5012 = vrcp.pop %v4688
        %v5013 = vrcp.pop %v4691
        %v5014 = vrcp.pop %v4694
        %v5015 = vrcp.pop %v4697
        %v5016 = vrcp.pop %v4700
        %v5017 = vrcp.pop %v4703
        %v5018 = vrcp.pop %v4706
        %v5019 = vrcp.pop %v4709
        %v5020 = vrcp.pop %v4712
        %v5021 = vmul.f32 %v4778, %v5005
        %v5022 = vmul.f32 %v4781, %v5006
        %v5023 = vmul.f32 %v4786, %v5007
        %v5024 = vmul.f32 %v4789, %v5008
        %v5025 = vmul.f32 %v4849, %v5009
        %v5026 = vmul.f32 %v4852, %v5010
        %v5027 = vmul.f32 %v4857, %v5011
        %v5028 = vmul.f32 %v4860, %v5012
        %v5029 = vmul.f32 %v4920, %v5013
        %v5030 = vmul.f32 %v4923, %v5014
        %v5031 = vmul.f32 %v4928, %v5015
        %v5032 = vmul.f32 %v4931, %v5016
        %v5033 = vmul.f32 %v4991, %v5017
        %v5034 = vmul.f32 %v4994, %v5018
        %v5035 = vmul.f32 %v4999, %v5019
        %v5036 = vmul.f32 %v5002, %v5020
        %v5037 = vcombine.low %v5021, %v5029
        %v5038 = vcombine.high %v5021, %v5029
        %v5040 = vunpack.c.l.s4 1983009808
        %v5041 = vunpack.c.0.s8 %v5040
        %v5042 = vlaneseq
        %v5043 = vshrl.u32 %v5042, 7
        %v5044 = vsub.s32 %v5041, %v5043
        %v5045 = vrot.slane %v5037, %v5044
        %v5047 = vunpack.c.l.s4 1983009808
        %v5048 = vunpack.c.0.s8 %v5047
        %v5049 = vlaneseq
        %v5050 = vshrl.u32 %v5049, 7
        %v5051 = vsub.s32 %v5048, %v5050
        %v5052 = vrot.slane %v5038, %v5051
        %v5053 = vcombine.low %v5025, %v5033
        %v5054 = vcombine.high %v5025, %v5033
        %v5056 = vunpack.c.l.s4 1983009808
        %v5057 = vunpack.c.0.s8 %v5056
        %v5058 = vlaneseq
        %v5059 = vshrl.u32 %v5058, 7
        %v5060 = vsub.s32 %v5057, %v5059
        %v5061 = vrot.slane %v5053, %v5060
        %v5063 = vunpack.c.l.s4 1983009808
        %v5064 = vunpack.c.0.s8 %v5063
        %v5065 = vlaneseq
        %v5066 = vshrl.u32 %v5065, 7
        %v5067 = vsub.s32 %v5064, %v5066
        %v5068 = vrot.slane %v5054, %v5067
        %v5069 = vcombine.low %v5045, %v5061
        %v5070 = vcombine.high %v5045, %v5061
        %v5072 = vunpack.c.l.s4 1934713408
        %v5073 = vunpack.c.0.s8 %v5072
        %v5074 = vlaneseq
        %v5075 = vshrl.u32 %v5074, 7
        %v5076 = vsub.s32 %v5073, %v5075
        %v5077 = vrot.slane %v5069, %v5076
        %v5079 = vunpack.c.l.s4 1934713408
        %v5080 = vunpack.c.0.s8 %v5079
        %v5081 = vlaneseq
        %v5082 = vshrl.u32 %v5081, 7
        %v5083 = vsub.s32 %v5080, %v5082
        %v5084 = vrot.slane %v5070, %v5083
        %v5085 = vcombine.low %v5052, %v5068
        %v5086 = vcombine.high %v5052, %v5068
        %v5088 = vunpack.c.l.s4 1934713408
        %v5089 = vunpack.c.0.s8 %v5088
        %v5090 = vlaneseq
        %v5091 = vshrl.u32 %v5090, 7
        %v5092 = vsub.s32 %v5089, %v5091
        %v5093 = vrot.slane %v5085, %v5092
        %v5095 = vunpack.c.l.s4 1934713408
        %v5096 = vunpack.c.0.s8 %v5095
        %v5097 = vlaneseq
        %v5098 = vshrl.u32 %v5097, 7
        %v5099 = vsub.s32 %v5096, %v5098
        %v5100 = vrot.slane %v5086, %v5099
        %v5101 = vcombine.high %v5077, 0.0
        %v5102 = vcombine.high %v5084, 0.0
        %v5103 = vcombine.high %v5093, 0.0
        %v5104 = vcombine.high %v5100, 0.0
        %v5105 = vcombine.low %v5022, %v5030
        %v5106 = vcombine.high %v5022, %v5030
        %v5108 = vunpack.c.l.s4 1983009808
        %v5109 = vunpack.c.0.s8 %v5108
        %v5110 = vlaneseq
        %v5111 = vshrl.u32 %v5110, 7
        %v5112 = vsub.s32 %v5109, %v5111
        %v5113 = vrot.slane %v5105, %v5112
        %v5115 = vunpack.c.l.s4 1983009808
        %v5116 = vunpack.c.0.s8 %v5115
        %v5117 = vlaneseq
        %v5118 = vshrl.u32 %v5117, 7
        %v5119 = vsub.s32 %v5116, %v5118
        %v5120 = vrot.slane %v5106, %v5119
        %v5121 = vcombine.low %v5026, %v5034
        %v5122 = vcombine.high %v5026, %v5034
        %v5124 = vunpack.c.l.s4 1983009808
        %v5125 = vunpack.c.0.s8 %v5124
        %v5126 = vlaneseq
        %v5127 = vshrl.u32 %v5126, 7
        %v5128 = vsub.s32 %v5125, %v5127
        %v5129 = vrot.slane %v5121, %v5128
        %v5131 = vunpack.c.l.s4 1983009808
        %v5132 = vunpack.c.0.s8 %v5131
        %v5133 = vlaneseq
        %v5134 = vshrl.u32 %v5133, 7
        %v5135 = vsub.s32 %v5132, %v5134
        %v5136 = vrot.slane %v5122, %v5135
        %v5137 = vcombine.low %v5113, %v5129
        %v5138 = vcombine.high %v5113, %v5129
        %v5140 = vunpack.c.l.s4 1934713408
        %v5141 = vunpack.c.0.s8 %v5140
        %v5142 = vlaneseq
        %v5143 = vshrl.u32 %v5142, 7
        %v5144 = vsub.s32 %v5141, %v5143
        %v5145 = vrot.slane %v5137, %v5144
        %v5147 = vunpack.c.l.s4 1934713408
        %v5148 = vunpack.c.0.s8 %v5147
        %v5149 = vlaneseq
        %v5150 = vshrl.u32 %v5149, 7
        %v5151 = vsub.s32 %v5148, %v5150
        %v5152 = vrot.slane %v5138, %v5151
        %v5153 = vcombine.low %v5120, %v5136
        %v5154 = vcombine.high %v5120, %v5136
        %v5156 = vunpack.c.l.s4 1934713408
        %v5157 = vunpack.c.0.s8 %v5156
        %v5158 = vlaneseq
        %v5159 = vshrl.u32 %v5158, 7
        %v5160 = vsub.s32 %v5157, %v5159
        %v5161 = vrot.slane %v5153, %v5160
        %v5163 = vunpack.c.l.s4 1934713408
        %v5164 = vunpack.c.0.s8 %v5163
        %v5165 = vlaneseq
        %v5166 = vshrl.u32 %v5165, 7
        %v5167 = vsub.s32 %v5164, %v5166
        %v5168 = vrot.slane %v5154, %v5167
        %v5169 = vcombine.high %v5145, 0.0
        %v5170 = vcombine.high %v5152, 0.0
        %v5171 = vcombine.high %v5161, 0.0
        %v5172 = vcombine.high %v5168, 0.0
        %v5173 = vcombine.low %v5023, %v5031
        %v5174 = vcombine.high %v5023, %v5031
        %v5176 = vunpack.c.l.s4 1983009808
        %v5177 = vunpack.c.0.s8 %v5176
        %v5178 = vlaneseq
        %v5179 = vshrl.u32 %v5178, 7
        %v5180 = vsub.s32 %v5177, %v5179
        %v5181 = vrot.slane %v5173, %v5180
        %v5183 = vunpack.c.l.s4 1983009808
        %v5184 = vunpack.c.0.s8 %v5183
        %v5185 = vlaneseq
        %v5186 = vshrl.u32 %v5185, 7
        %v5187 = vsub.s32 %v5184, %v5186
        %v5188 = vrot.slane %v5174, %v5187
        %v5189 = vcombine.low %v5027, %v5035
        %v5190 = vcombine.high %v5027, %v5035
        %v5192 = vunpack.c.l.s4 1983009808
        %v5193 = vunpack.c.0.s8 %v5192
        %v5194 = vlaneseq
        %v5195 = vshrl.u32 %v5194, 7
        %v5196 = vsub.s32 %v5193, %v5195
        %v5197 = vrot.slane %v5189, %v5196
        %v5199 = vunpack.c.l.s4 1983009808
        %v5200 = vunpack.c.0.s8 %v5199
        %v5201 = vlaneseq
        %v5202 = vshrl.u32 %v5201, 7
        %v5203 = vsub.s32 %v5200, %v5202
        %v5204 = vrot.slane %v5190, %v5203
        %v5205 = vcombine.low %v5181, %v5197
        %v5206 = vcombine.high %v5181, %v5197
        %v5208 = vunpack.c.l.s4 1934713408
        %v5209 = vunpack.c.0.s8 %v5208
        %v5210 = vlaneseq
        %v5211 = vshrl.u32 %v5210, 7
        %v5212 = vsub.s32 %v5209, %v5211
        %v5213 = vrot.slane %v5205, %v5212
        %v5215 = vunpack.c.l.s4 1934713408
        %v5216 = vunpack.c.0.s8 %v5215
        %v5217 = vlaneseq
        %v5218 = vshrl.u32 %v5217, 7
        %v5219 = vsub.s32 %v5216, %v5218
        %v5220 = vrot.slane %v5206, %v5219
        %v5221 = vcombine.low %v5188, %v5204
        %v5222 = vcombine.high %v5188, %v5204
        %v5224 = vunpack.c.l.s4 1934713408
        %v5225 = vunpack.c.0.s8 %v5224
        %v5226 = vlaneseq
        %v5227 = vshrl.u32 %v5226, 7
        %v5228 = vsub.s32 %v5225, %v5227
        %v5229 = vrot.slane %v5221, %v5228
        %v5231 = vunpack.c.l.s4 1934713408
        %v5232 = vunpack.c.0.s8 %v5231
        %v5233 = vlaneseq
        %v5234 = vshrl.u32 %v5233, 7
        %v5235 = vsub.s32 %v5232, %v5234
        %v5236 = vrot.slane %v5222, %v5235
        %v5237 = vcombine.high %v5213, 0.0
        %v5238 = vcombine.high %v5220, 0.0
        %v5239 = vcombine.high %v5229, 0.0
        %v5240 = vcombine.high %v5236, 0.0
        %v5241 = vcombine.low %v5024, %v5032
        %v5242 = vcombine.high %v5024, %v5032
        %v5244 = vunpack.c.l.s4 1983009808
        %v5245 = vunpack.c.0.s8 %v5244
        %v5246 = vlaneseq
        %v5247 = vshrl.u32 %v5246, 7
        %v5248 = vsub.s32 %v5245, %v5247
        %v5249 = vrot.slane %v5241, %v5248
        %v5251 = vunpack.c.l.s4 1983009808
        %v5252 = vunpack.c.0.s8 %v5251
        %v5253 = vlaneseq
        %v5254 = vshrl.u32 %v5253, 7
        %v5255 = vsub.s32 %v5252, %v5254
        %v5256 = vrot.slane %v5242, %v5255
        %v5257 = vcombine.low %v5028, %v5036
        %v5258 = vcombine.high %v5028, %v5036
        %v5260 = vunpack.c.l.s4 1983009808
        %v5261 = vunpack.c.0.s8 %v5260
        %v5262 = vlaneseq
        %v5263 = vshrl.u32 %v5262, 7
        %v5264 = vsub.s32 %v5261, %v5263
        %v5265 = vrot.slane %v5257, %v5264
        %v5267 = vunpack.c.l.s4 1983009808
        %v5268 = vunpack.c.0.s8 %v5267
        %v5269 = vlaneseq
        %v5270 = vshrl.u32 %v5269, 7
        %v5271 = vsub.s32 %v5268, %v5270
        %v5272 = vrot.slane %v5258, %v5271
        %v5273 = vcombine.low %v5249, %v5265
        %v5274 = vcombine.high %v5249, %v5265
        %v5276 = vunpack.c.l.s4 1934713408
        %v5277 = vunpack.c.0.s8 %v5276
        %v5278 = vlaneseq
        %v5279 = vshrl.u32 %v5278, 7
        %v5280 = vsub.s32 %v5277, %v5279
        %v5281 = vrot.slane %v5273, %v5280
        %v5283 = vunpack.c.l.s4 1934713408
        %v5284 = vunpack.c.0.s8 %v5283
        %v5285 = vlaneseq
        %v5286 = vshrl.u32 %v5285, 7
        %v5287 = vsub.s32 %v5284, %v5286
        %v5288 = vrot.slane %v5274, %v5287
        %v5289 = vcombine.low %v5256, %v5272
        %v5290 = vcombine.high %v5256, %v5272
        %v5292 = vunpack.c.l.s4 1934713408
        %v5293 = vunpack.c.0.s8 %v5292
        %v5294 = vlaneseq
        %v5295 = vshrl.u32 %v5294, 7
        %v5296 = vsub.s32 %v5293, %v5295
        %v5297 = vrot.slane %v5289, %v5296
        %v5299 = vunpack.c.l.s4 1934713408
        %v5300 = vunpack.c.0.s8 %v5299
        %v5301 = vlaneseq
        %v5302 = vshrl.u32 %v5301, 7
        %v5303 = vsub.s32 %v5300, %v5302
        %v5304 = vrot.slane %v5290, %v5303
        %v5305 = vcombine.high %v5281, 0.0
        %v5306 = vcombine.high %v5288, 0.0
        %v5307 = vcombine.high %v5297, 0.0
        %v5308 = vcombine.high %v5304, 0.0
        %v5309 = vcombine.low %v5077, %v5084
        %v5311 = vunpack.c.l.s4 1983009808
        %v5312 = vunpack.c.0.s8 %v5311
        %v5313 = vlaneseq
        %v5314 = vshrl.u32 %v5313, 7
        %v5315 = vsub.s32 %v5312, %v5314
        %v5316 = vrot.slane %v5309, %v5315
        %v5317 = vcombine.low %v5101, %v5102
        %v5319 = vunpack.c.l.s4 1983009808
        %v5320 = vunpack.c.0.s8 %v5319
        %v5321 = vlaneseq
        %v5322 = vshrl.u32 %v5321, 7
        %v5323 = vsub.s32 %v5320, %v5322
        %v5324 = vrot.slane %v5317, %v5323
        %v5325 = vcombine.low %v5093, %v5100
        %v5327 = vunpack.c.l.s4 1983009808
        %v5328 = vunpack.c.0.s8 %v5327
        %v5329 = vlaneseq
        %v5330 = vshrl.u32 %v5329, 7
        %v5331 = vsub.s32 %v5328, %v5330
        %v5332 = vrot.slane %v5325, %v5331
        %v5333 = vcombine.low %v5103, %v5104
        %v5335 = vunpack.c.l.s4 1983009808
        %v5336 = vunpack.c.0.s8 %v5335
        %v5337 = vlaneseq
        %v5338 = vshrl.u32 %v5337, 7
        %v5339 = vsub.s32 %v5336, %v5338
        %v5340 = vrot.slane %v5333, %v5339
        %v5341 = vcombine.low %v5316, %v5324
        %v5342 = vcombine.high %v5316, %v5324
        %v5344 = vunpack.c.l.s4 1934713408
        %v5345 = vunpack.c.0.s8 %v5344
        %v5346 = vlaneseq
        %v5347 = vshrl.u32 %v5346, 7
        %v5348 = vsub.s32 %v5345, %v5347
        %v5349 = vrot.slane %v5341, %v5348
        %v5351 = vunpack.c.l.s4 1934713408
        %v5352 = vunpack.c.0.s8 %v5351
        %v5353 = vlaneseq
        %v5354 = vshrl.u32 %v5353, 7
        %v5355 = vsub.s32 %v5352, %v5354
        %v5356 = vrot.slane %v5342, %v5355
        %v5357 = vcombine.low %v5332, %v5340
        %v5358 = vcombine.high %v5332, %v5340
        %v5360 = vunpack.c.l.s4 1934713408
        %v5361 = vunpack.c.0.s8 %v5360
        %v5362 = vlaneseq
        %v5363 = vshrl.u32 %v5362, 7
        %v5364 = vsub.s32 %v5361, %v5363
        %v5365 = vrot.slane %v5357, %v5364
        %v5367 = vunpack.c.l.s4 1934713408
        %v5368 = vunpack.c.0.s8 %v5367
        %v5369 = vlaneseq
        %v5370 = vshrl.u32 %v5369, 7
        %v5371 = vsub.s32 %v5368, %v5370
        %v5372 = vrot.slane %v5358, %v5371
        %v5373 = vcombine.low %v5349, %v5365
        %v5374 = vcombine.high %v5349, %v5365
        %v5375 = vcombine.low %v5356, %v5372
        %v5376 = vcombine.high %v5356, %v5372
        %v5377 = vcombine.low %v5145, %v5152
        %v5379 = vunpack.c.l.s4 1983009808
        %v5380 = vunpack.c.0.s8 %v5379
        %v5381 = vlaneseq
        %v5382 = vshrl.u32 %v5381, 7
        %v5383 = vsub.s32 %v5380, %v5382
        %v5384 = vrot.slane %v5377, %v5383
        %v5385 = vcombine.low %v5169, %v5170
        %v5387 = vunpack.c.l.s4 1983009808
        %v5388 = vunpack.c.0.s8 %v5387
        %v5389 = vlaneseq
        %v5390 = vshrl.u32 %v5389, 7
        %v5391 = vsub.s32 %v5388, %v5390
        %v5392 = vrot.slane %v5385, %v5391
        %v5393 = vcombine.low %v5161, %v5168
        %v5395 = vunpack.c.l.s4 1983009808
        %v5396 = vunpack.c.0.s8 %v5395
        %v5397 = vlaneseq
        %v5398 = vshrl.u32 %v5397, 7
        %v5399 = vsub.s32 %v5396, %v5398
        %v5400 = vrot.slane %v5393, %v5399
        %v5401 = vcombine.low %v5171, %v5172
        %v5403 = vunpack.c.l.s4 1983009808
        %v5404 = vunpack.c.0.s8 %v5403
        %v5405 = vlaneseq
        %v5406 = vshrl.u32 %v5405, 7
        %v5407 = vsub.s32 %v5404, %v5406
        %v5408 = vrot.slane %v5401, %v5407
        %v5409 = vcombine.low %v5384, %v5392
        %v5410 = vcombine.high %v5384, %v5392
        %v5412 = vunpack.c.l.s4 1934713408
        %v5413 = vunpack.c.0.s8 %v5412
        %v5414 = vlaneseq
        %v5415 = vshrl.u32 %v5414, 7
        %v5416 = vsub.s32 %v5413, %v5415
        %v5417 = vrot.slane %v5409, %v5416
        %v5419 = vunpack.c.l.s4 1934713408
        %v5420 = vunpack.c.0.s8 %v5419
        %v5421 = vlaneseq
        %v5422 = vshrl.u32 %v5421, 7
        %v5423 = vsub.s32 %v5420, %v5422
        %v5424 = vrot.slane %v5410, %v5423
        %v5425 = vcombine.low %v5400, %v5408
        %v5426 = vcombine.high %v5400, %v5408
        %v5428 = vunpack.c.l.s4 1934713408
        %v5429 = vunpack.c.0.s8 %v5428
        %v5430 = vlaneseq
        %v5431 = vshrl.u32 %v5430, 7
        %v5432 = vsub.s32 %v5429, %v5431
        %v5433 = vrot.slane %v5425, %v5432
        %v5435 = vunpack.c.l.s4 1934713408
        %v5436 = vunpack.c.0.s8 %v5435
        %v5437 = vlaneseq
        %v5438 = vshrl.u32 %v5437, 7
        %v5439 = vsub.s32 %v5436, %v5438
        %v5440 = vrot.slane %v5426, %v5439
        %v5441 = vcombine.low %v5417, %v5433
        %v5442 = vcombine.high %v5417, %v5433
        %v5443 = vcombine.low %v5424, %v5440
        %v5444 = vcombine.high %v5424, %v5440
        %v5445 = vcombine.low %v5213, %v5220
        %v5447 = vunpack.c.l.s4 1983009808
        %v5448 = vunpack.c.0.s8 %v5447
        %v5449 = vlaneseq
        %v5450 = vshrl.u32 %v5449, 7
        %v5451 = vsub.s32 %v5448, %v5450
        %v5452 = vrot.slane %v5445, %v5451
        %v5453 = vcombine.low %v5237, %v5238
        %v5455 = vunpack.c.l.s4 1983009808
        %v5456 = vunpack.c.0.s8 %v5455
        %v5457 = vlaneseq
        %v5458 = vshrl.u32 %v5457, 7
        %v5459 = vsub.s32 %v5456, %v5458
        %v5460 = vrot.slane %v5453, %v5459
        %v5461 = vcombine.low %v5229, %v5236
        %v5463 = vunpack.c.l.s4 1983009808
        %v5464 = vunpack.c.0.s8 %v5463
        %v5465 = vlaneseq
        %v5466 = vshrl.u32 %v5465, 7
        %v5467 = vsub.s32 %v5464, %v5466
        %v5468 = vrot.slane %v5461, %v5467
        %v5469 = vcombine.low %v5239, %v5240
        %v5471 = vunpack.c.l.s4 1983009808
        %v5472 = vunpack.c.0.s8 %v5471
        %v5473 = vlaneseq
        %v5474 = vshrl.u32 %v5473, 7
        %v5475 = vsub.s32 %v5472, %v5474
        %v5476 = vrot.slane %v5469, %v5475
        %v5477 = vcombine.low %v5452, %v5460
        %v5478 = vcombine.high %v5452, %v5460
        %v5480 = vunpack.c.l.s4 1934713408
        %v5481 = vunpack.c.0.s8 %v5480
        %v5482 = vlaneseq
        %v5483 = vshrl.u32 %v5482, 7
        %v5484 = vsub.s32 %v5481, %v5483
        %v5485 = vrot.slane %v5477, %v5484
        %v5487 = vunpack.c.l.s4 1934713408
        %v5488 = vunpack.c.0.s8 %v5487
        %v5489 = vlaneseq
        %v5490 = vshrl.u32 %v5489, 7
        %v5491 = vsub.s32 %v5488, %v5490
        %v5492 = vrot.slane %v5478, %v5491
        %v5493 = vcombine.low %v5468, %v5476
        %v5494 = vcombine.high %v5468, %v5476
        %v5496 = vunpack.c.l.s4 1934713408
        %v5497 = vunpack.c.0.s8 %v5496
        %v5498 = vlaneseq
        %v5499 = vshrl.u32 %v5498, 7
        %v5500 = vsub.s32 %v5497, %v5499
        %v5501 = vrot.slane %v5493, %v5500
        %v5503 = vunpack.c.l.s4 1934713408
        %v5504 = vunpack.c.0.s8 %v5503
        %v5505 = vlaneseq
        %v5506 = vshrl.u32 %v5505, 7
        %v5507 = vsub.s32 %v5504, %v5506
        %v5508 = vrot.slane %v5494, %v5507
        %v5509 = vcombine.low %v5485, %v5501
        %v5510 = vcombine.high %v5485, %v5501
        %v5511 = vcombine.low %v5492, %v5508
        %v5512 = vcombine.high %v5492, %v5508
        %v5513 = vcombine.low %v5281, %v5288
        %v5515 = vunpack.c.l.s4 1983009808
        %v5516 = vunpack.c.0.s8 %v5515
        %v5517 = vlaneseq
        %v5518 = vshrl.u32 %v5517, 7
        %v5519 = vsub.s32 %v5516, %v5518
        %v5520 = vrot.slane %v5513, %v5519
        %v5521 = vcombine.low %v5305, %v5306
        %v5523 = vunpack.c.l.s4 1983009808
        %v5524 = vunpack.c.0.s8 %v5523
        %v5525 = vlaneseq
        %v5526 = vshrl.u32 %v5525, 7
        %v5527 = vsub.s32 %v5524, %v5526
        %v5528 = vrot.slane %v5521, %v5527
        %v5529 = vcombine.low %v5297, %v5304
        %v5531 = vunpack.c.l.s4 1983009808
        %v5532 = vunpack.c.0.s8 %v5531
        %v5533 = vlaneseq
        %v5534 = vshrl.u32 %v5533, 7
        %v5535 = vsub.s32 %v5532, %v5534
        %v5536 = vrot.slane %v5529, %v5535
        %v5537 = vcombine.low %v5307, %v5308
        %v5539 = vunpack.c.l.s4 1983009808
        %v5540 = vunpack.c.0.s8 %v5539
        %v5541 = vlaneseq
        %v5542 = vshrl.u32 %v5541, 7
        %v5543 = vsub.s32 %v5540, %v5542
        %v5544 = vrot.slane %v5537, %v5543
        %v5545 = vcombine.low %v5520, %v5528
        %v5546 = vcombine.high %v5520, %v5528
        %v5548 = vunpack.c.l.s4 1934713408
        %v5549 = vunpack.c.0.s8 %v5548
        %v5550 = vlaneseq
        %v5551 = vshrl.u32 %v5550, 7
        %v5552 = vsub.s32 %v5549, %v5551
        %v5553 = vrot.slane %v5545, %v5552
        %v5555 = vunpack.c.l.s4 1934713408
        %v5556 = vunpack.c.0.s8 %v5555
        %v5557 = vlaneseq
        %v5558 = vshrl.u32 %v5557, 7
        %v5559 = vsub.s32 %v5556, %v5558
        %v5560 = vrot.slane %v5546, %v5559
        %v5561 = vcombine.low %v5536, %v5544
        %v5562 = vcombine.high %v5536, %v5544
        %v5564 = vunpack.c.l.s4 1934713408
        %v5565 = vunpack.c.0.s8 %v5564
        %v5566 = vlaneseq
        %v5567 = vshrl.u32 %v5566, 7
        %v5568 = vsub.s32 %v5565, %v5567
        %v5569 = vrot.slane %v5561, %v5568
        %v5571 = vunpack.c.l.s4 1934713408
        %v5572 = vunpack.c.0.s8 %v5571
        %v5573 = vlaneseq
        %v5574 = vshrl.u32 %v5573, 7
        %v5575 = vsub.s32 %v5572, %v5574
        %v5576 = vrot.slane %v5562, %v5575
        %v5577 = vcombine.low %v5553, %v5569
        %v5578 = vcombine.high %v5553, %v5569
        %v5579 = vcombine.low %v5560, %v5576
        %v5580 = vcombine.high %v5560, %v5576
        %5585 = vrot.lane.b32.xlu0 %v5374, 32
        %v5586 = vpop.permute.xlu0 %5585
        %5587 = vrot.lane.b32.xlu0 %v5442, 32
        %v5588 = vpop.permute.xlu0 %5587
        %5589 = vrot.lane.b32.xlu0 %v5510, 32
        %v5590 = vpop.permute.xlu0 %5589
        %5591 = vrot.lane.b32.xlu0 %v5578, 32
        %v5592 = vpop.permute.xlu0 %5591
        %5601 = vrot.lane.b32.xlu0 %v5375, 64
        %v5602 = vpop.permute.xlu0 %5601
        %5603 = vrot.lane.b32.xlu0 %v5443, 64
        %v5604 = vpop.permute.xlu0 %5603
        %5605 = vrot.lane.b32.xlu0 %v5511, 64
        %v5606 = vpop.permute.xlu0 %5605
        %5607 = vrot.lane.b32.xlu0 %v5579, 64
        %v5608 = vpop.permute.xlu0 %5607
        %5617 = vrot.lane.b32.xlu0 %v5376, 96
        %v5618 = vpop.permute.xlu0 %5617
        %5619 = vrot.lane.b32.xlu0 %v5444, 96
        %v5620 = vpop.permute.xlu0 %5619
        %5621 = vrot.lane.b32.xlu0 %v5512, 96
        %v5622 = vpop.permute.xlu0 %5621
        %5623 = vrot.lane.b32.xlu0 %v5580, 96
        %v5624 = vpop.permute.xlu0 %5623
        %v5629 = vsel %vm4239, %v5373, %v5586
        %v5630 = vsel %vm4239, %v5441, %v5588
        %v5631 = vsel %vm4239, %v5509, %v5590
        %v5632 = vsel %vm4239, %v5577, %v5592
        %v5633 = vsel %vm4568, %v5629, %v5602
        %v5634 = vsel %vm4568, %v5630, %v5604
        %v5635 = vsel %vm4568, %v5631, %v5606
        %v5636 = vsel %vm4568, %v5632, %v5608
        %vm5637 = vcmask 785408
        %v5638 = vsel %vm5637, %v5633, %v5618
        %v5639 = vsel %vm5637, %v5634, %v5620
        %v5640 = vsel %vm5637, %v5635, %v5622
        %v5641 = vsel %vm5637, %v5636, %v5624
        %v5642 = vpack.c.bf16 %v5639, %v5638
        %v5643 = vpack.c.bf16 %v5641, %v5640
        %v5644 = vld [vmem:[#allocation15] sm:$0xf]
        %v5645 = vld [vmem:[#allocation15 + $0x4] sm:$0xf]
        %v5646 = vld [vmem:[#allocation15 + $0x8] sm:$0xf]
        %v5647 = vld [vmem:[#allocation15 + $0xc] sm:$0xf]
        %v5648 = vld [vmem:[#allocation15 + $0x10] sm:$0xf]
        %v5649 = vld [vmem:[#allocation15 + $0x14] sm:$0xf]
        %v5650 = vld [vmem:[#allocation15 + $0x18] sm:$0xf]
        %v5651 = vld [vmem:[#allocation15 + $0x1c] sm:$0xf]
        %v5652 = vld [vmem:[#allocation15 + $0x20] sm:$0xf]
        %v5653 = vld [vmem:[#allocation15 + $0x24] sm:$0xf]
        %v5654 = vld [vmem:[#allocation15 + $0x28] sm:$0xf]
        %v5655 = vld [vmem:[#allocation15 + $0x2c] sm:$0xf]
        %v5656 = vld [vmem:[#allocation15 + $0x30] sm:$0xf]
        %v5657 = vld [vmem:[#allocation15 + $0x34] sm:$0xf]
        %v5658 = vld [vmem:[#allocation15 + $0x38] sm:$0xf]
        %v5659 = vld [vmem:[#allocation15 + $0x3c] sm:$0xf]
        %v5660 = vld [vmem:[%s7] sm:$0x1]
        %v5662 = vlaneseq
        %v5663 = vshrl.u32 %v5662, 7
        %v5664 = vsub.s32 0, %v5663
        %v5665 = vrot.slane %v5660, %v5664
        %v5683 = vunpack.c.l.b16 %v5644
        %v5684 = vunpack.c.l.b16 %v5645
        %v5685 = vunpack.c.l.b16 %v5646
        %v5686 = vunpack.c.l.b16 %v5647
        %v5687 = vunpack.c.l.b16 %v5648
        %v5688 = vunpack.c.l.b16 %v5649
        %v5689 = vunpack.c.l.b16 %v5650
        %v5690 = vunpack.c.l.b16 %v5651
        %v5691 = vunpack.c.l.b16 %v5652
        %v5692 = vunpack.c.l.b16 %v5653
        %v5693 = vunpack.c.l.b16 %v5654
        %v5694 = vunpack.c.l.b16 %v5655
        %v5695 = vunpack.c.l.b16 %v5656
        %v5696 = vunpack.c.l.b16 %v5657
        %v5697 = vunpack.c.l.b16 %v5658
        %v5698 = vunpack.c.l.b16 %v5659
        %v5699 = vpack.c.b16 %v5684, %v5683
        %v5700 = vpack.c.b16 %v5686, %v5685
        %v5701 = vpack.c.b16 %v5688, %v5687
        %v5702 = vpack.c.b16 %v5690, %v5689
        %v5703 = vpack.c.b16 %v5692, %v5691
        %v5704 = vpack.c.b16 %v5694, %v5693
        %v5705 = vpack.c.b16 %v5696, %v5695
        %v5706 = vpack.c.b16 %v5698, %v5697
        %5715 = vmatprep.subr.bf16.mxu0 0
        %5716 = vmatpush1.bf16.msra.mxu0 %v5706
        %5717 = vmatprep.subr.bf16.mxu0 0
        %5718 = vmatpush1.bf16.msra.mxu0 %v5705
        %5719 = vmatprep.subr.bf16.mxu0 0
        %5720 = vmatpush1.bf16.msra.mxu0 %v5704
        %5721 = vmatprep.subr.bf16.mxu0 0
        %5722 = vmatpush1.bf16.msra.mxu0 %v5703
        %5723 = vmatprep.subr.bf16.mxu0 0
        %5724 = vmatpush1.bf16.msra.mxu0 %v5702
        %5725 = vmatprep.subr.bf16.mxu0 0
        %5726 = vmatpush1.bf16.msra.mxu0 %v5701
        %5727 = vmatprep.subr.bf16.mxu0 0
        %5728 = vmatpush1.bf16.msra.mxu0 %v5700
        %5729 = vmatprep.subr.bf16.mxu0 0
        %5730 = vmatpush1.bf16.msra.mxu0 %v5699
        %5731 = vmatprep.subr.bf16.mxu0 0
        %5732 = vmatpush2.bf16.msra.mxu0 0
        %5733 = vmatprep.subr.bf16.mxu0 0
        %5734 = vmatpush2.bf16.msra.mxu0 0
        %5735 = vmatprep.subr.bf16.mxu0 0
        %5736 = vmatpush2.bf16.msra.mxu0 0
        %5737 = vmatprep.subr.bf16.mxu0 0
        %5738 = vmatpush2.bf16.msra.mxu0 0
        %5739 = vmatprep.subr.bf16.mxu0 0
        %5740 = vmatpush2.bf16.msra.mxu0 0
        %5741 = vmatprep.subr.bf16.mxu0 0
        %5742 = vmatpush2.bf16.msra.mxu0 0
        %5743 = vmatprep.subr.bf16.mxu0 0
        %5744 = vmatpush2.bf16.msra.mxu0 0
        %5745 = vmatprep.subr.bf16.mxu0 0
        %5746 = vmatpush2.bf16.msra.mxu0 0
        %5747 = vmatprep.mubr.bf16.mxu0 0
        %5748 = vmatmul.mubr.bf16.gmra.mxu0 %v5642
        %v5749 = vpop.f32.mrf.mxu0
        %v5750 = vadd.f32 %v5665, %v5749
        %v5751 = vpop.f32.mrf.mxu0
        %v5752 = vpop.f32.mrf.mxu0
        %v5753 = vadd.f32 %v5665, %v5752
        %v5754 = vpop.f32.mrf.mxu0
        %5755 = vmatprep.mubr.bf16.mxu0 0
        %5756 = vmatmul.mubr.bf16.gmra.mxu0 %v5643
        %v5757 = vpop.f32.mrf.mxu0
        %v5758 = vadd.f32 %v5665, %v5757
        %v5759 = vpop.f32.mrf.mxu0
        %v5760 = vpop.f32.mrf.mxu0
        %v5761 = vadd.f32 %v5665, %v5760
        %v5762 = vpop.f32.mrf.mxu0
        %5763 = vdwg.mxu0
        %v5764 = vadd.f32 %v5750, %v1135
        %v5765 = vadd.f32 %v5753, %v1136
        %v5766 = vadd.f32 %v5758, %v1137
        %v5767 = vadd.f32 %v5761, %v1138
        %v5768 = vld [vmem:[%s8] sm:$0x1]
        %v5769 = vld [vmem:[%s9] sm:$0x1]
        %5770 = vadd.xlane.f32.xlu0 %v5764
        %v5771 = vpop.xlane.xlu0 %5770
        %5772 = vadd.xlane.f32.xlu0 %v5765
        %v5773 = vpop.xlane.xlu0 %5772
        %5774 = vadd.xlane.f32.xlu0 %v5766
        %v5775 = vpop.xlane.xlu0 %5774
        %5776 = vadd.xlane.f32.xlu0 %v5767
        %v5777 = vpop.xlane.xlu0 %5776
        %v5778 = vrcp.pop 128.0
        %v5779 = vmul.f32 %v5771, %v5778
        %v5780 = vmul.f32 %v5773, %v5778
        %v5781 = vmul.f32 %v5775, %v5778
        %v5782 = vmul.f32 %v5777, %v5778
        %v5783 = vsub.f32 %v5764, %v5779
        %v5784 = vsub.f32 %v5765, %v5780
        %v5785 = vsub.f32 %v5766, %v5781
        %v5786 = vsub.f32 %v5767, %v5782
        %v5787 = vmul.f32 %v5783, %v5783
        %v5788 = vmul.f32 %v5784, %v5784
        %v5789 = vmul.f32 %v5785, %v5785
        %v5790 = vmul.f32 %v5786, %v5786
        %5791 = vadd.xlane.f32.xlu0 %v5787
        %v5792 = vpop.xlane.xlu0 %5791
        %5793 = vadd.xlane.f32.xlu0 %v5788
        %v5794 = vpop.xlane.xlu0 %5793
        %5795 = vadd.xlane.f32.xlu0 %v5789
        %v5796 = vpop.xlane.xlu0 %5795
        %5797 = vadd.xlane.f32.xlu0 %v5790
        %v5798 = vpop.xlane.xlu0 %5797
        %v5799 = vmul.f32 %v5792, %v5778
        %v5800 = vmul.f32 %v5794, %v5778
        %v5801 = vmul.f32 %v5796, %v5778
        %v5802 = vmul.f32 %v5798, %v5778
        %v5803 = vadd.f32 %v5799, 1e-05
        %v5804 = vadd.f32 %v5800, 1e-05
        %v5805 = vadd.f32 %v5801, 1e-05
        %v5806 = vadd.f32 %v5802, 1e-05
        %v5807 = vrsqrt.pop %v5803
        %v5808 = vrsqrt.pop %v5804
        %v5809 = vrsqrt.pop %v5805
        %v5810 = vrsqrt.pop %v5806
        %v5811 = vmul.f32 %v5783, %v5807
        %v5812 = vmul.f32 %v5784, %v5808
        %v5813 = vmul.f32 %v5785, %v5809
        %v5814 = vmul.f32 %v5786, %v5810
        %v5816 = vlaneseq
        %v5817 = vshrl.u32 %v5816, 7
        %v5818 = vsub.s32 0, %v5817
        %v5819 = vrot.slane %v5768, %v5818
        %v5821 = vmul.f32 %v5811, %v5819
        %v5822 = vmul.f32 %v5812, %v5819
        %v5823 = vmul.f32 %v5813, %v5819
        %v5824 = vmul.f32 %v5814, %v5819
        %v5826 = vlaneseq
        %v5827 = vshrl.u32 %v5826, 7
        %v5828 = vsub.s32 0, %v5827
        %v5829 = vrot.slane %v5769, %v5828
        %v5831 = vadd.f32 %v5821, %v5829
        %v5832 = vadd.f32 %v5822, %v5829
        %v5833 = vadd.f32 %v5823, %v5829
        %v5834 = vadd.f32 %v5824, %v5829
        %v5835 = vpack.c.bf16 %v5832, %v5831
        %v5836 = vpack.c.bf16 %v5834, %v5833
        %v5837 = vld [vmem:[#allocation16] sm:$0xff]
        %v5838 = vld [vmem:[#allocation16 + $0x8] sm:$0xff]
        %v5839 = vld [vmem:[#allocation16 + $0x10] sm:$0xff]
        %v5840 = vld [vmem:[#allocation16 + $0x18] sm:$0xff]
        %v5841 = vld [vmem:[#allocation16 + $0x20] sm:$0xff]
        %v5842 = vld [vmem:[#allocation16 + $0x28] sm:$0xff]
        %v5843 = vld [vmem:[#allocation16 + $0x30] sm:$0xff]
        %v5844 = vld [vmem:[#allocation16 + $0x38] sm:$0xff]
        %v5845 = vld [vmem:[#allocation16 + $0x40] sm:$0xff]
        %v5846 = vld [vmem:[#allocation16 + $0x48] sm:$0xff]
        %v5847 = vld [vmem:[#allocation16 + $0x50] sm:$0xff]
        %v5848 = vld [vmem:[#allocation16 + $0x58] sm:$0xff]
        %v5849 = vld [vmem:[#allocation16 + $0x60] sm:$0xff]
        %v5850 = vld [vmem:[#allocation16 + $0x68] sm:$0xff]
        %v5851 = vld [vmem:[#allocation16 + $0x70] sm:$0xff]
        %v5852 = vld [vmem:[#allocation16 + $0x78] sm:$0xff]
        %v5853 = vld [vmem:[#allocation16 + $0x80] sm:$0xff]
        %v5854 = vld [vmem:[#allocation16 + $0x88] sm:$0xff]
        %v5855 = vld [vmem:[#allocation16 + $0x90] sm:$0xff]
        %v5856 = vld [vmem:[#allocation16 + $0x98] sm:$0xff]
        %v5857 = vld [vmem:[#allocation16 + $0xa0] sm:$0xff]
        %v5858 = vld [vmem:[#allocation16 + $0xa8] sm:$0xff]
        %v5859 = vld [vmem:[#allocation16 + $0xb0] sm:$0xff]
        %v5860 = vld [vmem:[#allocation16 + $0xb8] sm:$0xff]
        %v5861 = vld [vmem:[#allocation16 + $0xc0] sm:$0xff]
        %v5862 = vld [vmem:[#allocation16 + $0xc8] sm:$0xff]
        %v5863 = vld [vmem:[#allocation16 + $0xd0] sm:$0xff]
        %v5864 = vld [vmem:[#allocation16 + $0xd8] sm:$0xff]
        %v5865 = vld [vmem:[#allocation16 + $0xe0] sm:$0xff]
        %v5866 = vld [vmem:[#allocation16 + $0xe8] sm:$0xff]
        %v5867 = vld [vmem:[#allocation16 + $0xf0] sm:$0xff]
        %v5868 = vld [vmem:[#allocation16 + $0xf8] sm:$0xff]
        %v5869 = vld [vmem:[%s11] sm:$0xf]
        %v5871 = vlaneseq
        %v5872 = vshrl.u32 %v5871, 7
        %v5873 = vsub.s32 0, %v5872
        %v5874 = vrot.slane %v5869, %v5873
        %v5875 = vlaneseq
        %v5876 = vshrl.u32 %v5875, 7
        %v5877 = vsub.s32 1, %v5876
        %v5878 = vrot.slane %v5869, %v5877
        %v5879 = vlaneseq
        %v5880 = vshrl.u32 %v5879, 7
        %v5881 = vsub.s32 2, %v5880
        %v5882 = vrot.slane %v5869, %v5881
        %v5883 = vlaneseq
        %v5884 = vshrl.u32 %v5883, 7
        %v5885 = vsub.s32 3, %v5884
        %v5886 = vrot.slane %v5869, %v5885
        %v5923 = vunpack.c.l.b16 %v5837
        %v5924 = vunpack.c.h.b16 %v5837
        %v5925 = vunpack.c.l.b16 %v5838
        %v5926 = vunpack.c.h.b16 %v5838
        %v5927 = vunpack.c.l.b16 %v5839
        %v5928 = vunpack.c.h.b16 %v5839
        %v5929 = vunpack.c.l.b16 %v5840
        %v5930 = vunpack.c.h.b16 %v5840
        %v5931 = vunpack.c.l.b16 %v5841
        %v5932 = vunpack.c.h.b16 %v5841
        %v5933 = vunpack.c.l.b16 %v5842
        %v5934 = vunpack.c.h.b16 %v5842
        %v5935 = vunpack.c.l.b16 %v5843
        %v5936 = vunpack.c.h.b16 %v5843
        %v5937 = vunpack.c.l.b16 %v5844
        %v5938 = vunpack.c.h.b16 %v5844
        %v5939 = vunpack.c.l.b16 %v5845
        %v5940 = vunpack.c.h.b16 %v5845
        %v5941 = vunpack.c.l.b16 %v5846
        %v5942 = vunpack.c.h.b16 %v5846
        %v5943 = vunpack.c.l.b16 %v5847
        %v5944 = vunpack.c.h.b16 %v5847
        %v5945 = vunpack.c.l.b16 %v5848
        %v5946 = vunpack.c.h.b16 %v5848
        %v5947 = vunpack.c.l.b16 %v5849
        %v5948 = vunpack.c.h.b16 %v5849
        %v5949 = vunpack.c.l.b16 %v5850
        %v5950 = vunpack.c.h.b16 %v5850
        %v5951 = vunpack.c.l.b16 %v5851
        %v5952 = vunpack.c.h.b16 %v5851
        %v5953 = vunpack.c.l.b16 %v5852
        %v5954 = vunpack.c.h.b16 %v5852
        %v5955 = vunpack.c.l.b16 %v5853
        %v5956 = vunpack.c.h.b16 %v5853
        %v5957 = vunpack.c.l.b16 %v5854
        %v5958 = vunpack.c.h.b16 %v5854
        %v5959 = vunpack.c.l.b16 %v5855
        %v5960 = vunpack.c.h.b16 %v5855
        %v5961 = vunpack.c.l.b16 %v5856
        %v5962 = vunpack.c.h.b16 %v5856
        %v5963 = vunpack.c.l.b16 %v5857
        %v5964 = vunpack.c.h.b16 %v5857
        %v5965 = vunpack.c.l.b16 %v5858
        %v5966 = vunpack.c.h.b16 %v5858
        %v5967 = vunpack.c.l.b16 %v5859
        %v5968 = vunpack.c.h.b16 %v5859
        %v5969 = vunpack.c.l.b16 %v5860
        %v5970 = vunpack.c.h.b16 %v5860
        %v5971 = vunpack.c.l.b16 %v5861
        %v5972 = vunpack.c.h.b16 %v5861
        %v5973 = vunpack.c.l.b16 %v5862
        %v5974 = vunpack.c.h.b16 %v5862
        %v5975 = vunpack.c.l.b16 %v5863
        %v5976 = vunpack.c.h.b16 %v5863
        %v5977 = vunpack.c.l.b16 %v5864
        %v5978 = vunpack.c.h.b16 %v5864
        %v5979 = vunpack.c.l.b16 %v5865
        %v5980 = vunpack.c.h.b16 %v5865
        %v5981 = vunpack.c.l.b16 %v5866
        %v5982 = vunpack.c.h.b16 %v5866
        %v5983 = vunpack.c.l.b16 %v5867
        %v5984 = vunpack.c.h.b16 %v5867
        %v5985 = vunpack.c.l.b16 %v5868
        %v5986 = vunpack.c.h.b16 %v5868
        %v5987 = vpack.c.b16 %v5927, %v5923
        %v5988 = vpack.c.b16 %v5928, %v5924
        %v5989 = vpack.c.b16 %v5929, %v5925
        %v5990 = vpack.c.b16 %v5930, %v5926
        %v5991 = vpack.c.b16 %v5935, %v5931
        %v5992 = vpack.c.b16 %v5936, %v5932
        %v5993 = vpack.c.b16 %v5937, %v5933
        %v5994 = vpack.c.b16 %v5938, %v5934
        %v5995 = vpack.c.b16 %v5943, %v5939
        %v5996 = vpack.c.b16 %v5944, %v5940
        %v5997 = vpack.c.b16 %v5945, %v5941
        %v5998 = vpack.c.b16 %v5946, %v5942
        %v5999 = vpack.c.b16 %v5951, %v5947
        %v6000 = vpack.c.b16 %v5952, %v5948
        %v6001 = vpack.c.b16 %v5953, %v5949
        %v6002 = vpack.c.b16 %v5954, %v5950
        %v6003 = vpack.c.b16 %v5959, %v5955
        %v6004 = vpack.c.b16 %v5960, %v5956
        %v6005 = vpack.c.b16 %v5961, %v5957
        %v6006 = vpack.c.b16 %v5962, %v5958
        %v6007 = vpack.c.b16 %v5967, %v5963
        %v6008 = vpack.c.b16 %v5968, %v5964
        %v6009 = vpack.c.b16 %v5969, %v5965
        %v6010 = vpack.c.b16 %v5970, %v5966
        %v6011 = vpack.c.b16 %v5975, %v5971
        %v6012 = vpack.c.b16 %v5976, %v5972
        %v6013 = vpack.c.b16 %v5977, %v5973
        %v6014 = vpack.c.b16 %v5978, %v5974
        %v6015 = vpack.c.b16 %v5983, %v5979
        %v6016 = vpack.c.b16 %v5984, %v5980
        %v6017 = vpack.c.b16 %v5985, %v5981
        %v6018 = vpack.c.b16 %v5986, %v5982
        %6051 = vmatprep.subr.bf16.mxu0 %v6016
        %6052 = vmatpush1.bf16.msra.mxu0 %v6015
        %6053 = vmatprep.subr.bf16.mxu0 %v6012
        %6054 = vmatpush1.bf16.msra.mxu0 %v6011
        %6055 = vmatprep.subr.bf16.mxu0 %v6008
        %6056 = vmatpush1.bf16.msra.mxu0 %v6007
        %6057 = vmatprep.subr.bf16.mxu0 %v6004
        %6058 = vmatpush1.bf16.msra.mxu0 %v6003
        %6059 = vmatprep.subr.bf16.mxu0 %v6000
        %6060 = vmatpush1.bf16.msra.mxu0 %v5999
        %6061 = vmatprep.subr.bf16.mxu0 %v5996
        %6062 = vmatpush1.bf16.msra.mxu0 %v5995
        %6063 = vmatprep.subr.bf16.mxu0 %v5992
        %6064 = vmatpush1.bf16.msra.mxu0 %v5991
        %6065 = vmatprep.subr.bf16.mxu0 %v5988
        %6066 = vmatpush1.bf16.msra.mxu0 %v5987
        %6067 = vmatprep.subr.bf16.mxu0 0
        %6068 = vmatpush2.bf16.msra.mxu0 0
        %6069 = vmatprep.subr.bf16.mxu0 0
        %6070 = vmatpush2.bf16.msra.mxu0 0
        %6071 = vmatprep.subr.bf16.mxu0 0
        %6072 = vmatpush2.bf16.msra.mxu0 0
        %6073 = vmatprep.subr.bf16.mxu0 0
        %6074 = vmatpush2.bf16.msra.mxu0 0
        %6075 = vmatprep.subr.bf16.mxu0 0
        %6076 = vmatpush2.bf16.msra.mxu0 0
        %6077 = vmatprep.subr.bf16.mxu0 0
        %6078 = vmatpush2.bf16.msra.mxu0 0
        %6079 = vmatprep.subr.bf16.mxu0 0
        %6080 = vmatpush2.bf16.msra.mxu0 0
        %6081 = vmatprep.subr.bf16.mxu0 0
        %6082 = vmatpush2.bf16.msra.mxu0 0
        %6083 = vmatprep.mubr.bf16.mxu0 0
        %6084 = vmatmul.mubr.bf16.gmra.mxu0 %v5835
        %v6085 = vpop.f32.mrf.mxu0
        %v6086 = vadd.f32 %v5874, %v6085
        %v6087 = vpop.f32.mrf.mxu0
        %v6088 = vadd.f32 %v5878, %v6087
        %v6089 = vpop.f32.mrf.mxu0
        %v6090 = vadd.f32 %v5874, %v6089
        %v6091 = vpop.f32.mrf.mxu0
        %v6092 = vadd.f32 %v5878, %v6091
        %6093 = vmatprep.mubr.bf16.mxu0 0
        %6094 = vmatmul.mubr.bf16.gmra.mxu0 %v5836
        %v6095 = vpop.f32.mrf.mxu0
        %v6096 = vadd.f32 %v5874, %v6095
        %v6097 = vpop.f32.mrf.mxu0
        %v6098 = vadd.f32 %v5878, %v6097
        %v6099 = vpop.f32.mrf.mxu0
        %v6100 = vadd.f32 %v5874, %v6099
        %v6101 = vpop.f32.mrf.mxu0
        %v6102 = vadd.f32 %v5878, %v6101
        %6103 = vdwg.mxu0
        %6104 = vmatprep.subr.bf16.mxu0 %v6018
        %6105 = vmatpush1.bf16.msra.mxu0 %v6017
        %6106 = vmatprep.subr.bf16.mxu0 %v6014
        %6107 = vmatpush1.bf16.msra.mxu0 %v6013
        %6108 = vmatprep.subr.bf16.mxu0 %v6010
        %6109 = vmatpush1.bf16.msra.mxu0 %v6009
        %6110 = vmatprep.subr.bf16.mxu0 %v6006
        %6111 = vmatpush1.bf16.msra.mxu0 %v6005
        %6112 = vmatprep.subr.bf16.mxu0 %v6002
        %6113 = vmatpush1.bf16.msra.mxu0 %v6001
        %6114 = vmatprep.subr.bf16.mxu0 %v5998
        %6115 = vmatpush1.bf16.msra.mxu0 %v5997
        %6116 = vmatprep.subr.bf16.mxu0 %v5994
        %6117 = vmatpush1.bf16.msra.mxu0 %v5993
        %6118 = vmatprep.subr.bf16.mxu0 %v5990
        %6119 = vmatpush1.bf16.msra.mxu0 %v5989
        %6120 = vmatprep.subr.bf16.mxu0 0
        %6121 = vmatpush2.bf16.msra.mxu0 0
        %6122 = vmatprep.subr.bf16.mxu0 0
        %6123 = vmatpush2.bf16.msra.mxu0 0
        %6124 = vmatprep.subr.bf16.mxu0 0
        %6125 = vmatpush2.bf16.msra.mxu0 0
        %6126 = vmatprep.subr.bf16.mxu0 0
        %6127 = vmatpush2.bf16.msra.mxu0 0
        %6128 = vmatprep.subr.bf16.mxu0 0
        %6129 = vmatpush2.bf16.msra.mxu0 0
        %6130 = vmatprep.subr.bf16.mxu0 0
        %6131 = vmatpush2.bf16.msra.mxu0 0
        %6132 = vmatprep.subr.bf16.mxu0 0
        %6133 = vmatpush2.bf16.msra.mxu0 0
        %6134 = vmatprep.subr.bf16.mxu0 0
        %6135 = vmatpush2.bf16.msra.mxu0 0
        %6136 = vmatprep.mubr.bf16.mxu0 0
        %6137 = vmatmul.mubr.bf16.gmra.mxu0 %v5835
        %v6138 = vpop.f32.mrf.mxu0
        %v6139 = vadd.f32 %v5882, %v6138
        %v6140 = vpop.f32.mrf.mxu0
        %v6141 = vadd.f32 %v5886, %v6140
        %v6142 = vpop.f32.mrf.mxu0
        %v6143 = vadd.f32 %v5882, %v6142
        %v6144 = vpop.f32.mrf.mxu0
        %v6145 = vadd.f32 %v5886, %v6144
        %6146 = vmatprep.mubr.bf16.mxu0 0
        %6147 = vmatmul.mubr.bf16.gmra.mxu0 %v5836
        %v6148 = vpop.f32.mrf.mxu0
        %v6149 = vadd.f32 %v5882, %v6148
        %v6150 = vpop.f32.mrf.mxu0
        %v6151 = vadd.f32 %v5886, %v6150
        %v6152 = vpop.f32.mrf.mxu0
        %v6153 = vadd.f32 %v5882, %v6152
        %v6154 = vpop.f32.mrf.mxu0
        %v6155 = vadd.f32 %v5886, %v6154
        %6156 = vdwg.mxu0
        %v6157 = vmax.f32 %v6086, 0.0
        %v6158 = vmax.f32 %v6088, 0.0
        %v6159 = vmax.f32 %v6139, 0.0
        %v6160 = vmax.f32 %v6141, 0.0
        %v6161 = vmax.f32 %v6090, 0.0
        %v6162 = vmax.f32 %v6092, 0.0
        %v6163 = vmax.f32 %v6143, 0.0
        %v6164 = vmax.f32 %v6145, 0.0
        %v6165 = vmax.f32 %v6096, 0.0
        %v6166 = vmax.f32 %v6098, 0.0
        %v6167 = vmax.f32 %v6149, 0.0
        %v6168 = vmax.f32 %v6151, 0.0
        %v6169 = vmax.f32 %v6100, 0.0
        %v6170 = vmax.f32 %v6102, 0.0
        %v6171 = vmax.f32 %v6153, 0.0
        %v6172 = vmax.f32 %v6155, 0.0
        %v6173 = vpack.c.bf16 %v6161, %v6157
        %v6174 = vpack.c.bf16 %v6162, %v6158
        %v6175 = vpack.c.bf16 %v6163, %v6159
        %v6176 = vpack.c.bf16 %v6164, %v6160
        %v6177 = vpack.c.bf16 %v6169, %v6165
        %v6178 = vpack.c.bf16 %v6170, %v6166
        %v6179 = vpack.c.bf16 %v6171, %v6167
        %v6180 = vpack.c.bf16 %v6172, %v6168
        %v6181 = vld [vmem:[#allocation18] sm:$0xf]
        %v6182 = vld [vmem:[#allocation18 + $0x4] sm:$0xf]
        %v6183 = vld [vmem:[#allocation18 + $0x8] sm:$0xf]
        %v6184 = vld [vmem:[#allocation18 + $0xc] sm:$0xf]
        %v6185 = vld [vmem:[#allocation18 + $0x10] sm:$0xf]
        %v6186 = vld [vmem:[#allocation18 + $0x14] sm:$0xf]
        %v6187 = vld [vmem:[#allocation18 + $0x18] sm:$0xf]
        %v6188 = vld [vmem:[#allocation18 + $0x1c] sm:$0xf]
        %v6189 = vld [vmem:[#allocation18 + $0x20] sm:$0xf]
        %v6190 = vld [vmem:[#allocation18 + $0x24] sm:$0xf]
        %v6191 = vld [vmem:[#allocation18 + $0x28] sm:$0xf]
        %v6192 = vld [vmem:[#allocation18 + $0x2c] sm:$0xf]
        %v6193 = vld [vmem:[#allocation18 + $0x30] sm:$0xf]
        %v6194 = vld [vmem:[#allocation18 + $0x34] sm:$0xf]
        %v6195 = vld [vmem:[#allocation18 + $0x38] sm:$0xf]
        %v6196 = vld [vmem:[#allocation18 + $0x3c] sm:$0xf]
        %v6197 = vld [vmem:[#allocation18 + $0x40] sm:$0xf]
        %v6198 = vld [vmem:[#allocation18 + $0x44] sm:$0xf]
        %v6199 = vld [vmem:[#allocation18 + $0x48] sm:$0xf]
        %v6200 = vld [vmem:[#allocation18 + $0x4c] sm:$0xf]
        %v6201 = vld [vmem:[#allocation18 + $0x50] sm:$0xf]
        %v6202 = vld [vmem:[#allocation18 + $0x54] sm:$0xf]
        %v6203 = vld [vmem:[#allocation18 + $0x58] sm:$0xf]
        %v6204 = vld [vmem:[#allocation18 + $0x5c] sm:$0xf]
        %v6205 = vld [vmem:[#allocation18 + $0x60] sm:$0xf]
        %v6206 = vld [vmem:[#allocation18 + $0x64] sm:$0xf]
        %v6207 = vld [vmem:[#allocation18 + $0x68] sm:$0xf]
        %v6208 = vld [vmem:[#allocation18 + $0x6c] sm:$0xf]
        %v6209 = vld [vmem:[#allocation18 + $0x70] sm:$0xf]
        %v6210 = vld [vmem:[#allocation18 + $0x74] sm:$0xf]
        %v6211 = vld [vmem:[#allocation18 + $0x78] sm:$0xf]
        %v6212 = vld [vmem:[#allocation18 + $0x7c] sm:$0xf]
        %v6213 = vld [vmem:[#allocation18 + $0x80] sm:$0xf]
        %v6214 = vld [vmem:[#allocation18 + $0x84] sm:$0xf]
        %v6215 = vld [vmem:[#allocation18 + $0x88] sm:$0xf]
        %v6216 = vld [vmem:[#allocation18 + $0x8c] sm:$0xf]
        %v6217 = vld [vmem:[#allocation18 + $0x90] sm:$0xf]
        %v6218 = vld [vmem:[#allocation18 + $0x94] sm:$0xf]
        %v6219 = vld [vmem:[#allocation18 + $0x98] sm:$0xf]
        %v6220 = vld [vmem:[#allocation18 + $0x9c] sm:$0xf]
        %v6221 = vld [vmem:[#allocation18 + $0xa0] sm:$0xf]
        %v6222 = vld [vmem:[#allocation18 + $0xa4] sm:$0xf]
        %v6223 = vld [vmem:[#allocation18 + $0xa8] sm:$0xf]
        %v6224 = vld [vmem:[#allocation18 + $0xac] sm:$0xf]
        %v6225 = vld [vmem:[#allocation18 + $0xb0] sm:$0xf]
        %v6226 = vld [vmem:[#allocation18 + $0xb4] sm:$0xf]
        %v6227 = vld [vmem:[#allocation18 + $0xb8] sm:$0xf]
        %v6228 = vld [vmem:[#allocation18 + $0xbc] sm:$0xf]
        %v6229 = vld [vmem:[#allocation18 + $0xc0] sm:$0xf]
        %v6230 = vld [vmem:[#allocation18 + $0xc4] sm:$0xf]
        %v6231 = vld [vmem:[#allocation18 + $0xc8] sm:$0xf]
        %v6232 = vld [vmem:[#allocation18 + $0xcc] sm:$0xf]
        %v6233 = vld [vmem:[#allocation18 + $0xd0] sm:$0xf]
        %v6234 = vld [vmem:[#allocation18 + $0xd4] sm:$0xf]
        %v6235 = vld [vmem:[#allocation18 + $0xd8] sm:$0xf]
        %v6236 = vld [vmem:[#allocation18 + $0xdc] sm:$0xf]
        %v6237 = vld [vmem:[#allocation18 + $0xe0] sm:$0xf]
        %v6238 = vld [vmem:[#allocation18 + $0xe4] sm:$0xf]
        %v6239 = vld [vmem:[#allocation18 + $0xe8] sm:$0xf]
        %v6240 = vld [vmem:[#allocation18 + $0xec] sm:$0xf]
        %v6241 = vld [vmem:[#allocation18 + $0xf0] sm:$0xf]
        %v6242 = vld [vmem:[#allocation18 + $0xf4] sm:$0xf]
        %v6243 = vld [vmem:[#allocation18 + $0xf8] sm:$0xf]
        %v6244 = vld [vmem:[#allocation18 + $0xfc] sm:$0xf]
        %v6245 = vld [vmem:[%s13] sm:$0x1]
        %v6247 = vlaneseq
        %v6248 = vshrl.u32 %v6247, 7
        %v6249 = vsub.s32 0, %v6248
        %v6250 = vrot.slane %v6245, %v6249
        %v6316 = vunpack.c.l.b16 %v6181
        %v6317 = vunpack.c.l.b16 %v6182
        %v6318 = vunpack.c.l.b16 %v6183
        %v6319 = vunpack.c.l.b16 %v6184
        %v6320 = vunpack.c.l.b16 %v6185
        %v6321 = vunpack.c.l.b16 %v6186
        %v6322 = vunpack.c.l.b16 %v6187
        %v6323 = vunpack.c.l.b16 %v6188
        %v6324 = vunpack.c.l.b16 %v6189
        %v6325 = vunpack.c.l.b16 %v6190
        %v6326 = vunpack.c.l.b16 %v6191
        %v6327 = vunpack.c.l.b16 %v6192
        %v6328 = vunpack.c.l.b16 %v6193
        %v6329 = vunpack.c.l.b16 %v6194
        %v6330 = vunpack.c.l.b16 %v6195
        %v6331 = vunpack.c.l.b16 %v6196
        %v6332 = vunpack.c.l.b16 %v6197
        %v6333 = vunpack.c.l.b16 %v6198
        %v6334 = vunpack.c.l.b16 %v6199
        %v6335 = vunpack.c.l.b16 %v6200
        %v6336 = vunpack.c.l.b16 %v6201
        %v6337 = vunpack.c.l.b16 %v6202
        %v6338 = vunpack.c.l.b16 %v6203
        %v6339 = vunpack.c.l.b16 %v6204
        %v6340 = vunpack.c.l.b16 %v6205
        %v6341 = vunpack.c.l.b16 %v6206
        %v6342 = vunpack.c.l.b16 %v6207
        %v6343 = vunpack.c.l.b16 %v6208
        %v6344 = vunpack.c.l.b16 %v6209
        %v6345 = vunpack.c.l.b16 %v6210
        %v6346 = vunpack.c.l.b16 %v6211
        %v6347 = vunpack.c.l.b16 %v6212
        %v6348 = vunpack.c.l.b16 %v6213
        %v6349 = vunpack.c.l.b16 %v6214
        %v6350 = vunpack.c.l.b16 %v6215
        %v6351 = vunpack.c.l.b16 %v6216
        %v6352 = vunpack.c.l.b16 %v6217
        %v6353 = vunpack.c.l.b16 %v6218
        %v6354 = vunpack.c.l.b16 %v6219
        %v6355 = vunpack.c.l.b16 %v6220
        %v6356 = vunpack.c.l.b16 %v6221
        %v6357 = vunpack.c.l.b16 %v6222
        %v6358 = vunpack.c.l.b16 %v6223
        %v6359 = vunpack.c.l.b16 %v6224
        %v6360 = vunpack.c.l.b16 %v6225
        %v6361 = vunpack.c.l.b16 %v6226
        %v6362 = vunpack.c.l.b16 %v6227
        %v6363 = vunpack.c.l.b16 %v6228
        %v6364 = vunpack.c.l.b16 %v6229
        %v6365 = vunpack.c.l.b16 %v6230
        %v6366 = vunpack.c.l.b16 %v6231
        %v6367 = vunpack.c.l.b16 %v6232
        %v6368 = vunpack.c.l.b16 %v6233
        %v6369 = vunpack.c.l.b16 %v6234
        %v6370 = vunpack.c.l.b16 %v6235
        %v6371 = vunpack.c.l.b16 %v6236
        %v6372 = vunpack.c.l.b16 %v6237
        %v6373 = vunpack.c.l.b16 %v6238
        %v6374 = vunpack.c.l.b16 %v6239
        %v6375 = vunpack.c.l.b16 %v6240
        %v6376 = vunpack.c.l.b16 %v6241
        %v6377 = vunpack.c.l.b16 %v6242
        %v6378 = vunpack.c.l.b16 %v6243
        %v6379 = vunpack.c.l.b16 %v6244
        %v6380 = vpack.c.b16 %v6317, %v6316
        %v6381 = vpack.c.b16 %v6319, %v6318
        %v6382 = vpack.c.b16 %v6321, %v6320
        %v6383 = vpack.c.b16 %v6323, %v6322
        %v6384 = vpack.c.b16 %v6325, %v6324
        %v6385 = vpack.c.b16 %v6327, %v6326
        %v6386 = vpack.c.b16 %v6329, %v6328
        %v6387 = vpack.c.b16 %v6331, %v6330
        %v6388 = vpack.c.b16 %v6333, %v6332
        %v6389 = vpack.c.b16 %v6335, %v6334
        %v6390 = vpack.c.b16 %v6337, %v6336
        %v6391 = vpack.c.b16 %v6339, %v6338
        %v6392 = vpack.c.b16 %v6341, %v6340
        %v6393 = vpack.c.b16 %v6343, %v6342
        %v6394 = vpack.c.b16 %v6345, %v6344
        %v6395 = vpack.c.b16 %v6347, %v6346
        %v6396 = vpack.c.b16 %v6349, %v6348
        %v6397 = vpack.c.b16 %v6351, %v6350
        %v6398 = vpack.c.b16 %v6353, %v6352
        %v6399 = vpack.c.b16 %v6355, %v6354
        %v6400 = vpack.c.b16 %v6357, %v6356
        %v6401 = vpack.c.b16 %v6359, %v6358
        %v6402 = vpack.c.b16 %v6361, %v6360
        %v6403 = vpack.c.b16 %v6363, %v6362
        %v6404 = vpack.c.b16 %v6365, %v6364
        %v6405 = vpack.c.b16 %v6367, %v6366
        %v6406 = vpack.c.b16 %v6369, %v6368
        %v6407 = vpack.c.b16 %v6371, %v6370
        %v6408 = vpack.c.b16 %v6373, %v6372
        %v6409 = vpack.c.b16 %v6375, %v6374
        %v6410 = vpack.c.b16 %v6377, %v6376
        %v6411 = vpack.c.b16 %v6379, %v6378
        %6444 = vmatprep.subr.bf16.mxu0 0
        %6445 = vmatpush1.bf16.msra.mxu0 %v6387
        %6446 = vmatprep.subr.bf16.mxu0 0
        %6447 = vmatpush1.bf16.msra.mxu0 %v6386
        %6448 = vmatprep.subr.bf16.mxu0 0
        %6449 = vmatpush1.bf16.msra.mxu0 %v6385
        %6450 = vmatprep.subr.bf16.mxu0 0
        %6451 = vmatpush1.bf16.msra.mxu0 %v6384
        %6452 = vmatprep.subr.bf16.mxu0 0
        %6453 = vmatpush1.bf16.msra.mxu0 %v6383
        %6454 = vmatprep.subr.bf16.mxu0 0
        %6455 = vmatpush1.bf16.msra.mxu0 %v6382
        %6456 = vmatprep.subr.bf16.mxu0 0
        %6457 = vmatpush1.bf16.msra.mxu0 %v6381
        %6458 = vmatprep.subr.bf16.mxu0 0
        %6459 = vmatpush1.bf16.msra.mxu0 %v6380
        %6460 = vmatprep.subr.bf16.mxu0 0
        %6461 = vmatpush2.bf16.msra.mxu0 %v6395
        %6462 = vmatprep.subr.bf16.mxu0 0
        %6463 = vmatpush2.bf16.msra.mxu0 %v6394
        %6464 = vmatprep.subr.bf16.mxu0 0
        %6465 = vmatpush2.bf16.msra.mxu0 %v6393
        %6466 = vmatprep.subr.bf16.mxu0 0
        %6467 = vmatpush2.bf16.msra.mxu0 %v6392
        %6468 = vmatprep.subr.bf16.mxu0 0
        %6469 = vmatpush2.bf16.msra.mxu0 %v6391
        %6470 = vmatprep.subr.bf16.mxu0 0
        %6471 = vmatpush2.bf16.msra.mxu0 %v6390
        %6472 = vmatprep.subr.bf16.mxu0 0
        %6473 = vmatpush2.bf16.msra.mxu0 %v6389
        %6474 = vmatprep.subr.bf16.mxu0 0
        %6475 = vmatpush2.bf16.msra.mxu0 %v6388
        %6476 = vmatprep.mubr.bf16.mxu0 %v6174
        %6477 = vmatmul.mubr.bf16.gmra.mxu0 %v6173
        %v6478 = vpop.f32.mrf.mxu0
        %v6479 = vadd.f32 %v6250, %v6478
        %v6480 = vpop.f32.mrf.mxu0
        %v6481 = vpop.f32.mrf.mxu0
        %v6482 = vadd.f32 %v6250, %v6481
        %v6483 = vpop.f32.mrf.mxu0
        %6484 = vmatprep.mubr.bf16.mxu0 %v6178
        %6485 = vmatmul.mubr.bf16.gmra.mxu0 %v6177
        %v6486 = vpop.f32.mrf.mxu0
        %v6487 = vadd.f32 %v6250, %v6486
        %v6488 = vpop.f32.mrf.mxu0
        %v6489 = vpop.f32.mrf.mxu0
        %v6490 = vadd.f32 %v6250, %v6489
        %v6491 = vpop.f32.mrf.mxu0
        %6492 = vdwg.mxu0
        %6493 = vmatprep.subr.bf16.mxu0 0
        %6494 = vmatpush1.bf16.msra.mxu0 %v6403
        %6495 = vmatprep.subr.bf16.mxu0 0
        %6496 = vmatpush1.bf16.msra.mxu0 %v6402
        %6497 = vmatprep.subr.bf16.mxu0 0
        %6498 = vmatpush1.bf16.msra.mxu0 %v6401
        %6499 = vmatprep.subr.bf16.mxu0 0
        %6500 = vmatpush1.bf16.msra.mxu0 %v6400
        %6501 = vmatprep.subr.bf16.mxu0 0
        %6502 = vmatpush1.bf16.msra.mxu0 %v6399
        %6503 = vmatprep.subr.bf16.mxu0 0
        %6504 = vmatpush1.bf16.msra.mxu0 %v6398
        %6505 = vmatprep.subr.bf16.mxu0 0
        %6506 = vmatpush1.bf16.msra.mxu0 %v6397
        %6507 = vmatprep.subr.bf16.mxu0 0
        %6508 = vmatpush1.bf16.msra.mxu0 %v6396
        %6509 = vmatprep.subr.bf16.mxu0 0
        %6510 = vmatpush2.bf16.msra.mxu0 %v6411
        %6511 = vmatprep.subr.bf16.mxu0 0
        %6512 = vmatpush2.bf16.msra.mxu0 %v6410
        %6513 = vmatprep.subr.bf16.mxu0 0
        %6514 = vmatpush2.bf16.msra.mxu0 %v6409
        %6515 = vmatprep.subr.bf16.mxu0 0
        %6516 = vmatpush2.bf16.msra.mxu0 %v6408
        %6517 = vmatprep.subr.bf16.mxu0 0
        %6518 = vmatpush2.bf16.msra.mxu0 %v6407
        %6519 = vmatprep.subr.bf16.mxu0 0
        %6520 = vmatpush2.bf16.msra.mxu0 %v6406
        %6521 = vmatprep.subr.bf16.mxu0 0
        %6522 = vmatpush2.bf16.msra.mxu0 %v6405
        %6523 = vmatprep.subr.bf16.mxu0 0
        %6524 = vmatpush2.bf16.msra.mxu0 %v6404
        %6525 = vmatprep.mubr.bf16.mxu0 %v6176
        %6526 = vmatmul.mubr.bf16.gmra.mxu0 %v6175
        %v6527 = vpop.f32.mrf.mxu0
        %v6528 = vadd.f32 %v6479, %v6527
        %v6529 = vpop.f32.mrf.mxu0
        %v6530 = vpop.f32.mrf.mxu0
        %v6531 = vadd.f32 %v6482, %v6530
        %v6532 = vpop.f32.mrf.mxu0
        %6533 = vmatprep.mubr.bf16.mxu0 %v6180
        %6534 = vmatmul.mubr.bf16.gmra.mxu0 %v6179
        %v6535 = vpop.f32.mrf.mxu0
        %v6536 = vadd.f32 %v6487, %v6535
        %v6537 = vpop.f32.mrf.mxu0
        %v6538 = vpop.f32.mrf.mxu0
        %v6539 = vadd.f32 %v6490, %v6538
        %v6540 = vpop.f32.mrf.mxu0
        %6541 = vdwg.mxu0
        %v6542 = vadd.f32 %v6528, %v5831
        %v6543 = vadd.f32 %v6531, %v5832
        %v6544 = vadd.f32 %v6536, %v5833
        %v6545 = vadd.f32 %v6539, %v5834
        %v6546 = vld [vmem:[%s14] sm:$0x1]
        %v6547 = vld [vmem:[%s15] sm:$0x1]
        %6548 = vadd.xlane.f32.xlu0 %v6542
        %v6549 = vpop.xlane.xlu0 %6548
        %6550 = vadd.xlane.f32.xlu0 %v6543
        %v6551 = vpop.xlane.xlu0 %6550
        %6552 = vadd.xlane.f32.xlu0 %v6544
        %v6553 = vpop.xlane.xlu0 %6552
        %6554 = vadd.xlane.f32.xlu0 %v6545
        %v6555 = vpop.xlane.xlu0 %6554
        %v6556 = vmul.f32 %v6549, %v5778
        %v6557 = vmul.f32 %v6551, %v5778
        %v6558 = vmul.f32 %v6553, %v5778
        %v6559 = vmul.f32 %v6555, %v5778
        %v6560 = vsub.f32 %v6542, %v6556
        %v6561 = vsub.f32 %v6543, %v6557
        %v6562 = vsub.f32 %v6544, %v6558
        %v6563 = vsub.f32 %v6545, %v6559
        %v6564 = vmul.f32 %v6560, %v6560
        %v6565 = vmul.f32 %v6561, %v6561
        %v6566 = vmul.f32 %v6562, %v6562
        %v6567 = vmul.f32 %v6563, %v6563
        %6568 = vadd.xlane.f32.xlu0 %v6564
        %v6569 = vpop.xlane.xlu0 %6568
        %6570 = vadd.xlane.f32.xlu0 %v6565
        %v6571 = vpop.xlane.xlu0 %6570
        %6572 = vadd.xlane.f32.xlu0 %v6566
        %v6573 = vpop.xlane.xlu0 %6572
        %6574 = vadd.xlane.f32.xlu0 %v6567
        %v6575 = vpop.xlane.xlu0 %6574
        %v6576 = vmul.f32 %v6569, %v5778
        %v6577 = vmul.f32 %v6571, %v5778
        %v6578 = vmul.f32 %v6573, %v5778
        %v6579 = vmul.f32 %v6575, %v5778
        %v6580 = vadd.f32 %v6576, 1e-05
        %v6581 = vadd.f32 %v6577, 1e-05
        %v6582 = vadd.f32 %v6578, 1e-05
        %v6583 = vadd.f32 %v6579, 1e-05
        %v6584 = vrsqrt.pop %v6580
        %v6585 = vrsqrt.pop %v6581
        %v6586 = vrsqrt.pop %v6582
        %v6587 = vrsqrt.pop %v6583
        %v6588 = vmul.f32 %v6560, %v6584
        %v6589 = vmul.f32 %v6561, %v6585
        %v6590 = vmul.f32 %v6562, %v6586
        %v6591 = vmul.f32 %v6563, %v6587
        %v6593 = vlaneseq
        %v6594 = vshrl.u32 %v6593, 7
        %v6595 = vsub.s32 0, %v6594
        %v6596 = vrot.slane %v6546, %v6595
        %v6598 = vmul.f32 %v6588, %v6596
        %v6599 = vmul.f32 %v6589, %v6596
        %v6600 = vmul.f32 %v6590, %v6596
        %v6601 = vmul.f32 %v6591, %v6596
        %v6603 = vlaneseq
        %v6604 = vshrl.u32 %v6603, 7
        %v6605 = vsub.s32 0, %v6604
        %v6606 = vrot.slane %v6547, %v6605
        %v6608 = vadd.f32 %v6598, %v6606
        %v6609 = vadd.f32 %v6599, %v6606
        %v6610 = vadd.f32 %v6600, %v6606
        %v6611 = vadd.f32 %v6601, %v6606
        %6612 = vst [vmem:[%s721] sm:$0xff] %v6608
        %6613 = vst [vmem:[%s721 + $0x8] sm:$0xff] %v6609
        %6614 = vst [vmem:[%s721 + $0x10] sm:$0xff] %v6610
        %6615 = vst [vmem:[%s721 + $0x18] sm:$0xff] %v6611
        %s6616 = sand.u32 %s414, 1
        %s6617 = scalar_lea.sflag [#allocation6], %s6616
        %s6618 = sand.u32 %s414, 1
        %s6619 = smul.addr %s6618, 32
        %s6620 = scalar_lea.vmem [#allocation19], %s6619
        // Predicated region
        $region125: #{tpu_custom_call.1} parent=83 // pred_check
          %p6621 = pneg %p424
        $region126: #{tpu_custom_call.1} parent=83 // pred_check_branch
          %6623 = sbr.rel (%p6621) target = $region128
        $region127: #{tpu_custom_call.1} parent=83 // pred_region
          %s6624 = smul.u32 4, %s44
          %s6626 = ssub.s32 512, 512
          %6627 = vsyncadd %s6617, %s6626
          %s6628 = smul.addr %s43, 8
          %s6629 = sadd.s32 %s6624, %s6628
          %s6630 = smul.addr %s6629, 128
          %s6631 = scalar_lea.hbm %s16, %s6630
          %s6632 = sshll.u32 %s6620, 4
          %s6633 = int_to_ptr.vmem [resolvable:$true] %s6632
          %6638 = dma.vmem_to_hbm [thread:$0]  %s6633, 512, %s6631, %s6617, 128, 128, 8
        $region128: #{tpu_custom_call.1} parent=83 // pred_fallthru
          _
      $region84: #{tpu_custom_call.1} parent=5 // pred_fallthru
        _
      %p6639 = scmp.le.s32.totalorder 2, %s34
      // Predicated region
      $region129: #{tpu_custom_call.1} parent=5 // pred_check
        %p6640 = pneg %p6639
      $region130: #{tpu_custom_call.1} parent=5 // pred_check_branch
        %6642 = sbr.rel (%p6640) target = $region132
      $region131: #{tpu_custom_call.1} parent=5 // pred_region
        %s6643 = ssub.s32 %s34, 2
        // Predicated region
        $region133: #{tpu_custom_call.1} parent=131 // pred_check
          %p6644 = pneg %p430
        $region134: #{tpu_custom_call.1} parent=131 // pred_check_branch
          %6646 = sbr.rel (%p6644) target = $region136
        $region135: #{tpu_custom_call.1} parent=131 // pred_region
          %s6647 = sand.u32 %s415, 1
          %s6648 = scalar_lea.sflag [#allocation6], %s6647
          %s6649 = sand.u32 %s415, 1
          %s6650 = smul.addr %s6649, 32
          %s6651 = scalar_lea.vmem [#allocation19], %s6650
          %6652 = dma.done %s6648, 512
        $region136: #{tpu_custom_call.1} parent=131 // pred_fallthru
          _
      $region132: #{tpu_custom_call.1} parent=5 // pred_fallthru
        _
    $region6: #{tpu_custom_call.1} parent=1 // loop_footer
      %s38 = sadd.s32 1, %s34
    $region7: #{tpu_custom_call.1} parent=1 // loop_footer_branch
      %33 = sbr.rel target = $region3
    $region8: #{tpu_custom_call.1} parent=1 // loop_exit
      _
    %6653 = vsyncpa [#allocation5], 1
    %s6654 = scalar_lea.sflag [#allocation5], 1
    %6655 = vsyncpa %s6654, 1
    %6656 = vsyncpa [#allocation8], 1
    %s6657 = scalar_lea.sflag [#allocation8], 1
    %6658 = vsyncpa %s6657, 1
    %6659 = vsyncpa [#allocation11], 1
    %6660 = vsyncpa [#allocation14], 1
    %6661 = vsyncpa [#allocation17], 1
    %6662 = vsyncpa [#allocation6], 1
    %s6663 = scalar_lea.sflag [#allocation6], 1
    %6664 = vsyncpa %s6663, 1

</llo_original>
